<compile_context>
chip_gen: v5e
topology: v5e:2x2
jax: 0.10.0
libtpu: 0.0.40
codegen_flags: <defaults>
</compile_context>

<pallas_src>
from functools import partial

import jax
import jax.numpy as jnp
from jax import lax
from jax.experimental import pallas as pl
from jax.experimental.pallas import tpu as pltpu


ENC_FIELDS = (
    "wqkv", "bqkv", "wo", "bo", "ln1_g", "ln1_b",
    "w1", "b1", "w2", "b2", "ln2_g", "ln2_b",
)
DEC_FIELDS = (
    "wqkv", "bqkv", "wo", "bo", "ln1_g", "ln1_b",
    "cwq", "cbq", "cwkv", "cbkv", "cwo", "cbo", "ln2_g", "ln2_b",
    "w1", "b1", "w2", "b2", "ln3_g", "ln3_b",
)


# --------------------------- in-kernel helpers ------------------------------ #

def _row(param_ref, l):
    """(L, X) resident param ref -> (1, X) slice for layer l."""
    return param_ref[pl.ds(l, 1), :]


def _matmul_bias(x, w_bf16, b):
    # bf16 MXU matmul, f32 accumulate, f32 bias add. x: (R, din) f32.
    return jnp.dot(x.astype(jnp.bfloat16), w_bf16,
                   preferred_element_type=jnp.float32) + b


def _add_layernorm(x, residual, gamma, beta):
    # post-LN residual block: LayerNorm(x + residual), eps = 1e-5 (torch default)
    y = x + residual
    mu = jnp.mean(y, axis=-1, keepdims=True)
    yc = y - mu
    var = jnp.mean(yc * yc, axis=-1, keepdims=True)
    return yc * lax.rsqrt(var + 1e-5) * gamma + beta


def _ffn(x, w1, b1, w2, b2):
    h = jnp.maximum(_matmul_bias(x, w1, b1), 0.0)   # ReLU (nn.ReLU default)
    return _matmul_bias(h, w2, b2)


def _causal_mask(S):
    # Built once per layer step (hoisted out of the per-head work).
    row = lax.broadcasted_iota(jnp.int32, (S, S), 0)
    col = lax.broadcasted_iota(jnp.int32, (S, S), 1)
    return jnp.where(col > row, jnp.float32(-1e30), jnp.float32(0.0))


def _mha(q, k, v, num_heads, mask):
    """q: (Bt, Sq, D) f32, k/v: (Bt, Sk, D) f32 -> (Bt, Sq, D) f32.

    Heads are folded into the batch dim so the score / PV products are single
    batched contractions (one MXU stream, one softmax) instead of H unrolled
    2-D matmuls."""
    Bt, Sq, D = q.shape
    Sk = k.shape[1]
    Dh = D // num_heads
    q = q * (1.0 / float(Dh) ** 0.5)            # scale q, not the (Sq,Sk) scores
    qb = q.astype(jnp.bfloat16)                 # cast once (not per head)
    kb = k.astype(jnp.bfloat16)
    vb = v.astype(jnp.bfloat16)

    def to_heads(x):                            # (Bt, S, D) -> (H*Bt, S, Dh)
        return jnp.concatenate(
            [x[:, :, h * Dh:(h + 1) * Dh] for h in range(num_heads)], axis=0)

    qh, kh, vh = to_heads(qb), to_heads(kb), to_heads(vb)
    s = jnp.einsum('bqd,bkd->bqk', qh, kh,
                   preferred_element_type=jnp.float32)       # (H*Bt, Sq, Sk)
    if mask is not None:
        s = s + mask                                         # broadcast (Sq,Sk)
    m = jnp.max(s, axis=-1, keepdims=True)
    e = jnp.exp(s - m)
    p = e * pl.reciprocal(jnp.sum(e, axis=-1, keepdims=True), approx=True)
    o = jnp.einsum('bqk,bkd->bqd', p.astype(jnp.bfloat16), vh,
                   preferred_element_type=jnp.float32)       # (H*Bt, Sq, Dh)
    # back to (Bt, Sq, D) with the original head ordering
    return jnp.concatenate(
        [o[h * Bt:(h + 1) * Bt] for h in range(num_heads)], axis=-1)


# ------------------------------ layer kernels ------------------------------- #
# Grid = (batch_blocks, num_layers).  The output block's index_map is constant
# along the layer axis, so it stays resident in VMEM and is used directly as
# the activation carry (init from the input at l == 0).  Matmul weights are
# streamed one layer at a time via their BlockSpec; small (L, X) params stay
# resident and are sliced with pl.ds(l, 1).

def _encoder_kernel(src_ref, *refs, num_heads, causal):
    n = len(ENC_FIELDS)
    p = dict(zip(ENC_FIELDS, refs[:n]))
    out_ref = refs[n]

    l = pl.program_id(1)

    @pl.when(l == 0)
    def _():
        out_ref[...] = src_ref[...]

    Bt, S, D = out_ref.shape
    x = out_ref[...].reshape(Bt * S, D)                     # f32 carry

    # TODO(synk): dropout is stochastic; implemented as identity (eval mode).
    # TODO(synk): the custom Encoder takes `mask`; applied as causal self-attn
    #             (same as the previous accepted version) -- nn.Transformer
    #             would only mask the decoder.
    mask = _causal_mask(S) if causal else None

    qkv = _matmul_bias(x, p["wqkv"][0], _row(p["bqkv"], l))  # (Bt*S, 3D)
    q = qkv[:, :D].reshape(Bt, S, D)
    k = qkv[:, D:2 * D].reshape(Bt, S, D)
    v = qkv[:, 2 * D:].reshape(Bt, S, D)
    a = _mha(q, k, v, num_heads, mask).reshape(Bt * S, D)
    a = _matmul_bias(a, p["wo"][0], _row(p["bo"], l))
    x = _add_layernorm(a, x, _row(p["ln1_g"], l), _row(p["ln1_b"], l))

    f = _ffn(x, p["w1"][0], _row(p["b1"], l), p["w2"][0], _row(p["b2"], l))
    x = _add_layernorm(f, x, _row(p["ln2_g"], l), _row(p["ln2_b"], l))

    out_ref[...] = x.reshape(Bt, S, D)


def _decoder_kernel(tgt_ref, mem_ref, *refs, num_heads, causal):
    n = len(DEC_FIELDS)
    p = dict(zip(DEC_FIELDS, refs[:n]))
    out_ref = refs[n]

    l = pl.program_id(1)

    @pl.when(l == 0)
    def _():
        out_ref[...] = tgt_ref[...]

    Bt, S, D = out_ref.shape
    y = out_ref[...].reshape(Bt * S, D)                     # f32 carry
    mem = mem_ref[...].reshape(Bt * S, D)                   # encoder memory

    mask = _causal_mask(S) if causal else None

    # masked self-attention
    qkv = _matmul_bias(y, p["wqkv"][0], _row(p["bqkv"], l))
    q = qkv[:, :D].reshape(Bt, S, D)
    k = qkv[:, D:2 * D].reshape(Bt, S, D)
    v = qkv[:, 2 * D:].reshape(Bt, S, D)
    a = _mha(q, k, v, num_heads, mask).reshape(Bt * S, D)
    a = _matmul_bias(a, p["wo"][0], _row(p["bo"], l))
    y = _add_layernorm(a, y, _row(p["ln1_g"], l), _row(p["ln1_b"], l))

    # cross-attention against encoder memory (fused KV projection)
    q = _matmul_bias(y, p["cwq"][0], _row(p["cbq"], l)).reshape(Bt, S, D)
    kv = _matmul_bias(mem, p["cwkv"][0], _row(p["cbkv"], l))
    k = kv[:, :D].reshape(Bt, S, D)
    v = kv[:, D:].reshape(Bt, S, D)
    a = _mha(q, k, v, num_heads, None).reshape(Bt * S, D)
    a = _matmul_bias(a, p["cwo"][0], _row(p["cbo"], l))
    y = _add_layernorm(a, y, _row(p["ln2_g"], l), _row(p["ln2_b"], l))

    # feed-forward
    f = _ffn(y, p["w1"][0], _row(p["b1"], l), p["w2"][0], _row(p["b2"], l))
    y = _add_layernorm(f, y, _row(p["ln3_g"], l), _row(p["ln3_b"], l))

    out_ref[...] = y.reshape(Bt, S, D)


# ------------------------------- Model glue --------------------------------- #

def _pick_vmem_limit():
    """Per-chip VMEM budget: ~3/4 of physical, capped at 100 MiB."""
    try:
        info = pltpu.get_tpu_info()
        cap = int(getattr(info, "vmem_capacity_bytes", 0))
        if cap > 0:
            return int(min(cap * 3 // 4, 100 * 1024 * 1024))
    except Exception:
        pass
    return 48 * 1024 * 1024            # safe everywhere (v7x has 64 MiB / TC)


def _pick_batch_block(B, S):
    """Largest divisor of B so Bt*S approaches the MXU M dimension (~256)."""
    target = max(1, 256 // max(S, 1))
    bt = 1
    for d in range(1, B + 1):
        if B % d == 0 and d <= target:
            bt = d
    return bt


def _param_spec(a):
    if a.ndim == 3:
        # big matmul weight: stream one layer per grid step along axis `l`
        return pl.BlockSpec((1,) + a.shape[1:], lambda b, l: (l, 0, 0))
    # small bias / LayerNorm param: keep the whole (L, X) stack resident
    return pl.BlockSpec(a.shape, lambda b, l: (0, 0))


def transformer_forward(src, target, params, *, num_heads, mask):
    B, S, D = src.shape
    enc, dec = params["encoder"], params["decoder"]
    num_enc = enc["wqkv"].shape[0]
    num_dec = dec["wqkv"].shape[0]
    hidden = int(enc["w1"].shape[-1])

    bt = _pick_batch_block(B, S)
    nb = B // bt
    vmem_limit = _pick_vmem_limit()

    # NOTE: at realistic sizes keep D a multiple of 128 so activations,
    # qkv column splits and the output store stay lane-dense.
    act_spec = pl.BlockSpec((bt, S, D), lambda b, l: (b, 0, 0))

    enc_arrays = [enc[f] for f in ENC_FIELDS]
    dec_arrays = [dec[f] for f in DEC_FIELDS]

    def wbytes(arrays):
        return sum(int(a.size) * a.dtype.itemsize for a in arrays)

    cparams = pltpu.CompilerParams(
        dimension_semantics=("parallel", "arbitrary"),
        vmem_limit_bytes=vmem_limit)

    # ------------------------------ Encoder -------------------------------- #
    attn_flops = 4 * S * S * D
    enc_flops = B * num_enc * (2 * S * D * 3 * D + attn_flops
                               + 2 * S * D * D + 4 * S * D * hidden)
    enc_cost = pl.CostEstimate(
        flops=enc_flops,
        transcendentals=B * num_enc * num_heads * S * S,
        bytes_accessed=nb * wbytes(enc_arrays) + 2 * B * S * D * 4)

    memory = pl.pallas_call(
        partial(_encoder_kernel, num_heads=num_heads, causal=mask),
        grid=(nb, num_enc),
        in_specs=[act_spec] + [_param_spec(a) for a in enc_arrays],
        out_specs=act_spec,
        out_shape=jax.ShapeDtypeStruct((B, S, D), jnp.float32),
        compiler_params=cparams,
        cost_estimate=enc_cost,
    )(src, *enc_arrays)

    # ------------------------------ Decoder -------------------------------- #
    dec_flops = B * num_dec * (2 * S * D * 3 * D + attn_flops + 2 * S * D * D
                               + 2 * S * D * D + 2 * S * D * 2 * D
                               + attn_flops + 2 * S * D * D
                               + 4 * S * D * hidden)
    dec_cost = pl.CostEstimate(
        flops=dec_flops,
        transcendentals=2 * B * num_dec * num_heads * S * S,
        bytes_accessed=nb * wbytes(dec_arrays) + 3 * B * S * D * 4)

    out = pl.pallas_call(
        partial(_decoder_kernel, num_heads=num_heads, causal=mask),
        grid=(nb, num_dec),
        in_specs=[act_spec, act_spec] + [_param_spec(a) for a in dec_arrays],
        out_specs=act_spec,
        out_shape=jax.ShapeDtypeStruct((B, S, D), jnp.float32),
        compiler_params=cparams,
        cost_estimate=dec_cost,
    )(target, memory, *dec_arrays)

    return out


# ------------------------------- Param init --------------------------------- #

def _dense(key, din, dout):
    k1, k2 = jax.random.split(key)
    bound = 1.0 / float(din) ** 0.5
    w = jax.random.uniform(k1, (din, dout), jnp.float32, -bound, bound)
    b = jax.random.uniform(k2, (dout,), jnp.float32, -bound, bound)
    return w, b


def _attn_block(key, d_model):
    ks = jax.random.split(key, 4)
    wq, bq = _dense(ks[0], d_model, d_model)
    wk, bk = _dense(ks[1], d_model, d_model)
    wv, bv = _dense(ks[2], d_model, d_model)
    wo, bo = _dense(ks[3], d_model, d_model)
    wqkv = jnp.concatenate([wq, wk, wv], axis=1)     # fused (D, 3D) projection
    bqkv = jnp.concatenate([bq, bk, bv], axis=0)
    return wqkv, bqkv, wo, bo


def init_params(key, num_enc, num_dec, d_model, hidden):
    def ln():
        return (jnp.ones((d_model,), jnp.float32),
                jnp.zeros((d_model,), jnp.float32))

    enc_layers, dec_layers = [], []
    keys = jax.random.split(key, num_enc + num_dec)
    for l in range(num_enc):
        ks = jax.random.split(keys[l], 3)
        wqkv, bqkv, wo, bo = _attn_block(ks[0], d_model)
        w1, b1 = _dense(ks[1], d_model, hidden)
        w2, b2 = _dense(ks[2], hidden, d_model)
        g1, be1 = ln(); g2, be2 = ln()
        enc_layers.append(dict(wqkv=wqkv, bqkv=bqkv, wo=wo, bo=bo,
                               ln1_g=g1, ln1_b=be1,
                               w1=w1, b1=b1, w2=w2, b2=b2,
                               ln2_g=g2, ln2_b=be2))
    for l in range(num_dec):
        ks = jax.random.split(keys[num_enc + l], 4)
        wqkv, bqkv, wo, bo = _attn_block(ks[0], d_model)
        cks = jax.random.split(ks[1], 4)
        cwq, cbq = _dense(cks[0], d_model, d_model)
        cwk, cbk = _dense(cks[1], d_model, d_model)
        cwv, cbv = _dense(cks[2], d_model, d_model)
        cwo, cbo = _dense(cks[3], d_model, d_model)
        cwkv = jnp.concatenate([cwk, cwv], axis=1)   # fused (D, 2D) KV projection
        cbkv = jnp.concatenate([cbk, cbv], axis=0)
        w1, b1 = _dense(ks[2], d_model, hidden)
        w2, b2 = _dense(ks[3], hidden, d_model)
        g1, be1 = ln(); g2, be2 = ln(); g3, be3 = ln()
        dec_layers.append(dict(wqkv=wqkv, bqkv=bqkv, wo=wo, bo=bo,
                               ln1_g=g1, ln1_b=be1,
                               cwq=cwq, cbq=cbq, cwkv=cwkv, cbkv=cbkv,
                               cwo=cwo, cbo=cbo, ln2_g=g2, ln2_b=be2,
                               w1=w1, b1=b1, w2=w2, b2=b2,
                               ln3_g=g3, ln3_b=be3))

    def pack(layers, fields):
        packed = {}
        for f in fields:
            a = jnp.stack([lp[f] for lp in layers], axis=0)  # stack over layers
            if a.ndim == 3:
                a = a.astype(jnp.bfloat16)   # matmul weights: bf16, streamed
            packed[f] = a                    # biases / LN stay 2-D (L, X) f32
        return packed

    return dict(encoder=pack(enc_layers, ENC_FIELDS),
                decoder=pack(dec_layers, DEC_FIELDS))


# ---------------------------------- Main ------------------------------------ #

if __name__ == "__main__":
    B, S, D, HEADS, HIDDEN = 2, 8, 32, 4, 64
    NUM_ENC, NUM_DEC = 2, 2

    key = jax.random.PRNGKey(0)
    k_param, k_src, k_tgt = jax.random.split(key, 3)

    params = init_params(k_param, NUM_ENC, NUM_DEC, D, HIDDEN)
    src = jax.random.normal(k_src, (B, S, D), jnp.float32)
    target = jax.random.normal(k_tgt, (B, S, D), jnp.float32)

    fwd = jax.jit(partial(transformer_forward, num_heads=HEADS, mask=True))
    out = fwd(src, target, params)
    jax.block_until_ready(out)
    assert out.shape == src.shape and out.dtype == jnp.float32
    assert bool(jnp.all(jnp.isfinite(out)))
    print("KERNEL_OK")
</pallas_src>

<mosaic_0001>
module attributes {stable_mosaic.version = 11 : i64} {
  func.func @_encoder_kernel(%arg0: i32, %arg1: i32, %arg2: memref<2x8x32xf32, #tpu.memory_space<vmem>>, %arg3: memref<1x32x96xbf16, #tpu.memory_space<vmem>>, %arg4: memref<2x96xf32, #tpu.memory_space<vmem>>, %arg5: memref<1x32x32xbf16, #tpu.memory_space<vmem>>, %arg6: memref<2x32xf32, #tpu.memory_space<vmem>>, %arg7: memref<2x32xf32, #tpu.memory_space<vmem>>, %arg8: memref<2x32xf32, #tpu.memory_space<vmem>>, %arg9: memref<1x32x64xbf16, #tpu.memory_space<vmem>>, %arg10: memref<2x64xf32, #tpu.memory_space<vmem>>, %arg11: memref<1x64x32xbf16, #tpu.memory_space<vmem>>, %arg12: memref<2x32xf32, #tpu.memory_space<vmem>>, %arg13: memref<2x32xf32, #tpu.memory_space<vmem>>, %arg14: memref<2x32xf32, #tpu.memory_space<vmem>>, %arg15: memref<2x8x32xf32, #tpu.memory_space<vmem>>) attributes {dimension_semantics = [#tpu.dimension_semantics<parallel>, #tpu.dimension_semantics<arbitrary>], iteration_bounds = array<i64: 1, 2>, scalar_prefetch = 0 : i64, scratch_operands = 0 : i64, tpu.core_type = #tpu.core_type<tc>, window_params = [{transform_indices = @transform_0, window_bounds = array<i64: 2, 8, 32>}, {transform_indices = @transform_1, window_bounds = array<i64: 1, 32, 96>}, {pipeline_mode = #tpu.pipeline_mode<synchronous>, transform_indices = @transform_2, window_bounds = array<i64: 2, 96>}, {transform_indices = @transform_3, window_bounds = array<i64: 1, 32, 32>}, {pipeline_mode = #tpu.pipeline_mode<synchronous>, transform_indices = @transform_4, window_bounds = array<i64: 2, 32>}, {pipeline_mode = #tpu.pipeline_mode<synchronous>, transform_indices = @transform_5, window_bounds = array<i64: 2, 32>}, {pipeline_mode = #tpu.pipeline_mode<synchronous>, transform_indices = @transform_6, window_bounds = array<i64: 2, 32>}, {transform_indices = @transform_7, window_bounds = array<i64: 1, 32, 64>}, {pipeline_mode = #tpu.pipeline_mode<synchronous>, transform_indices = @transform_8, window_bounds = array<i64: 2, 64>}, {transform_indices = @transform_9, window_bounds = array<i64: 1, 64, 32>}, {pipeline_mode = #tpu.pipeline_mode<synchronous>, transform_indices = @transform_10, window_bounds = array<i64: 2, 32>}, {pipeline_mode = #tpu.pipeline_mode<synchronous>, transform_indices = @transform_11, window_bounds = array<i64: 2, 32>}, {pipeline_mode = #tpu.pipeline_mode<synchronous>, transform_indices = @transform_12, window_bounds = array<i64: 2, 32>}, {transform_indices = @transform_13, window_bounds = array<i64: 2, 8, 32>}]} {
    %c0_i32 = arith.constant 0 : i32
    %0 = arith.cmpi eq, %arg1, %c0_i32 : i32
    %1 = arith.extui %0 : i1 to i32
    %c0_i32_0 = arith.constant 0 : i32
    %2 = arith.cmpi ne, %1, %c0_i32_0 : i32
    scf.if %2 {
      %c0_47 = arith.constant 0 : index
      %c0_48 = arith.constant 0 : index
      %c0_49 = arith.constant 0 : index
      %145 = vector.load %arg2[%c0_47, %c0_48, %c0_49] : memref<2x8x32xf32, #tpu.memory_space<vmem>>, vector<2x8x32xf32>
      %c0_50 = arith.constant 0 : index
      %c0_51 = arith.constant 0 : index
      %c0_52 = arith.constant 0 : index
      %146 = vector.load %arg15[%c0_50, %c0_51, %c0_52] : memref<2x8x32xf32, #tpu.memory_space<vmem>>, vector<2x8x32xf32>
      tpu.vector_store %arg15[%c0_50, %c0_51, %c0_52], %145 {strides = array<i32>} : memref<2x8x32xf32, #tpu.memory_space<vmem>>, vector<2x8x32xf32>,
    } else {
    }
    %c0 = arith.constant 0 : index
    %c0_1 = arith.constant 0 : index
    %c0_2 = arith.constant 0 : index
    %3 = vector.load %arg15[%c0, %c0_1, %c0_2] : memref<2x8x32xf32, #tpu.memory_space<vmem>>, vector<2x8x32xf32>
    %4 = vector.shape_cast %3 : vector<2x8x32xf32> to vector<16x32xf32>
    %5 = tpu.iota {dimensions = array<i32: 0>} : vector<8x8xi32>
    %6 = tpu.iota {dimensions = array<i32: 1>} : vector<8x8xi32>
    %7 = arith.cmpi sgt, %6, %5 : vector<8x8xi32>
    %cst = arith.constant -1.000000e+30 : f32
    %cst_3 = arith.constant 0.000000e+00 : f32
    %8 = vector.broadcast %cst : f32 to vector<8x8xf32>
    %9 = vector.broadcast %cst_3 : f32 to vector<8x8xf32>
    %10 = arith.select %7, %8, %9 : vector<8x8xi1>, vector<8x8xf32>
    %c0_4 = arith.constant 0 : index
    %c0_5 = arith.constant 0 : index
    %c0_6 = arith.constant 0 : index
    %11 = vector.load %arg3[%c0_4, %c0_5, %c0_6] : memref<1x32x96xbf16, #tpu.memory_space<vmem>>, vector<1x32x96xbf16>
    %12 = vector.shape_cast %11 : vector<1x32x96xbf16> to vector<32x96xbf16>
    %13 = arith.index_cast %arg1 : i32 to index
    %c0_7 = arith.constant 0 : index
    %14 = vector.load %arg4[%13, %c0_7] : memref<2x96xf32, #tpu.memory_space<vmem>>, vector<1x96xf32>
    %15 = arith.truncf %4 : vector<16x32xf32> to vector<16x32xbf16>
    %cst_8 = arith.constant dense<0.000000e+00> : vector<16x96xf32>
    %16 = tpu.matmul %15, %12, %cst_8 {dimension_numbers = #tpu.dot_dimension_numbers<[1], [0], [0], [1], [0, 0, 1, 1], [], []>} : vector<16x32xbf16>, vector<32x96xbf16>, vector<16x96xf32> -> vector<16x96xf32>
    %17 = vector.broadcast %14 : vector<1x96xf32> to vector<16x96xf32>
    %18 = arith.addf %16, %17 : vector<16x96xf32>
    %19 = vector.extract_strided_slice %18 {offsets = [0, 0], sizes = [16, 32], strides = [1, 1]} : vector<16x96xf32> to vector<16x32xf32>
    %20 = vector.shape_cast %19 : vector<16x32xf32> to vector<2x8x32xf32>
    %21 = vector.extract_strided_slice %18 {offsets = [0, 32], sizes = [16, 32], strides = [1, 1]} : vector<16x96xf32> to vector<16x32xf32>
    %22 = vector.shape_cast %21 : vector<16x32xf32> to vector<2x8x32xf32>
    %23 = vector.extract_strided_slice %18 {offsets = [0, 64], sizes = [16, 32], strides = [1, 1]} : vector<16x96xf32> to vector<16x32xf32>
    %24 = vector.shape_cast %23 : vector<16x32xf32> to vector<2x8x32xf32>
    %cst_9 = arith.constant 0.353553385 : f32
    %25 = vector.broadcast %cst_9 : f32 to vector<2x8x32xf32>
    %26 = arith.mulf %20, %25 : vector<2x8x32xf32>
    %27 = arith.truncf %26 : vector<2x8x32xf32> to vector<2x8x32xbf16>
    %28 = arith.truncf %22 : vector<2x8x32xf32> to vector<2x8x32xbf16>
    %29 = arith.truncf %24 : vector<2x8x32xf32> to vector<2x8x32xbf16>
    %30 = vector.extract_strided_slice %27 {offsets = [0, 0, 0], sizes = [2, 8, 8], strides = [1, 1, 1]} : vector<2x8x32xbf16> to vector<2x8x8xbf16>
    %31 = vector.extract_strided_slice %27 {offsets = [0, 0, 8], sizes = [2, 8, 8], strides = [1, 1, 1]} : vector<2x8x32xbf16> to vector<2x8x8xbf16>
    %32 = vector.extract_strided_slice %27 {offsets = [0, 0, 16], sizes = [2, 8, 8], strides = [1, 1, 1]} : vector<2x8x32xbf16> to vector<2x8x8xbf16>
    %33 = vector.extract_strided_slice %27 {offsets = [0, 0, 24], sizes = [2, 8, 8], strides = [1, 1, 1]} : vector<2x8x32xbf16> to vector<2x8x8xbf16>
    %34 = tpu.concatenate %30, %31, %32, %33 in 0 : vector<2x8x8xbf16>, vector<2x8x8xbf16>, vector<2x8x8xbf16>, vector<2x8x8xbf16> -> vector<8x8x8xbf16>
    %35 = vector.extract_strided_slice %28 {offsets = [0, 0, 0], sizes = [2, 8, 8], strides = [1, 1, 1]} : vector<2x8x32xbf16> to vector<2x8x8xbf16>
    %36 = vector.extract_strided_slice %28 {offsets = [0, 0, 8], sizes = [2, 8, 8], strides = [1, 1, 1]} : vector<2x8x32xbf16> to vector<2x8x8xbf16>
    %37 = vector.extract_strided_slice %28 {offsets = [0, 0, 16], sizes = [2, 8, 8], strides = [1, 1, 1]} : vector<2x8x32xbf16> to vector<2x8x8xbf16>
    %38 = vector.extract_strided_slice %28 {offsets = [0, 0, 24], sizes = [2, 8, 8], strides = [1, 1, 1]} : vector<2x8x32xbf16> to vector<2x8x8xbf16>
    %39 = tpu.concatenate %35, %36, %37, %38 in 0 : vector<2x8x8xbf16>, vector<2x8x8xbf16>, vector<2x8x8xbf16>, vector<2x8x8xbf16> -> vector<8x8x8xbf16>
    %40 = vector.extract_strided_slice %29 {offsets = [0, 0, 0], sizes = [2, 8, 8], strides = [1, 1, 1]} : vector<2x8x32xbf16> to vector<2x8x8xbf16>
    %41 = vector.extract_strided_slice %29 {offsets = [0, 0, 8], sizes = [2, 8, 8], strides = [1, 1, 1]} : vector<2x8x32xbf16> to vector<2x8x8xbf16>
    %42 = vector.extract_strided_slice %29 {offsets = [0, 0, 16], sizes = [2, 8, 8], strides = [1, 1, 1]} : vector<2x8x32xbf16> to vector<2x8x8xbf16>
    %43 = vector.extract_strided_slice %29 {offsets = [0, 0, 24], sizes = [2, 8, 8], strides = [1, 1, 1]} : vector<2x8x32xbf16> to vector<2x8x8xbf16>
    %44 = tpu.concatenate %40, %41, %42, %43 in 0 : vector<2x8x8xbf16>, vector<2x8x8xbf16>, vector<2x8x8xbf16>, vector<2x8x8xbf16> -> vector<8x8x8xbf16>
    "tpu.trace_start"() <{level = 10 : i32, message = "bqd,bkd->bqk"}> : () -> ()
    %cst_10 = arith.constant dense<0.000000e+00> : vector<8x8x8xf32>
    %45 = tpu.matmul %34, %39, %cst_10 {dimension_numbers = #tpu.dot_dimension_numbers<[2], [2], [1], [1], [0, 0, 0, 1, 1, 1], [0], [0]>} : vector<8x8x8xbf16>, vector<8x8x8xbf16>, vector<8x8x8xf32> -> vector<8x8x8xf32>
    "tpu.trace_stop"() : () -> ()
    %46 = vector.shape_cast %10 : vector<8x8xf32> to vector<1x8x8xf32>
    %47 = vector.broadcast %46 : vector<1x8x8xf32> to vector<8x8x8xf32>
    %48 = arith.addf %45, %47 : vector<8x8x8xf32>
    %cst_11 = arith.constant dense<0xFF800000> : vector<8x8xf32>
    %49 = vector.multi_reduction <maximumf>, %48, %cst_11 [2] : vector<8x8x8xf32> to vector<8x8xf32>
    %50 = vector.shape_cast %49 : vector<8x8xf32> to vector<8x8x1xf32>
    %51 = vector.broadcast %50 : vector<8x8x1xf32> to vector<8x8x8xf32>
    %52 = arith.subf %48, %51 : vector<8x8x8xf32>
    %53 = math.exp %52 : vector<8x8x8xf32>
    %cst_12 = arith.constant dense<0.000000e+00> : vector<8x8xf32>
    %54 = vector.multi_reduction <add>, %53, %cst_12 [2] : vector<8x8x8xf32> to vector<8x8xf32>
    %55 = vector.shape_cast %54 : vector<8x8xf32> to vector<8x8x1xf32>
    %56 = tpu.reciprocal %55 {approx = true} : vector<8x8x1xf32> -> vector<8x8x1xf32>
    %57 = vector.broadcast %56 : vector<8x8x1xf32> to vector<8x8x8xf32>
    %58 = arith.mulf %53, %57 : vector<8x8x8xf32>
    %59 = arith.truncf %58 : vector<8x8x8xf32> to vector<8x8x8xbf16>
    "tpu.trace_start"() <{level = 10 : i32, message = "bqk,bkd->bqd"}> : () -> ()
    %cst_13 = arith.constant dense<0.000000e+00> : vector<8x8x8xf32>
    %60 = tpu.matmul %59, %44, %cst_13 {dimension_numbers = #tpu.dot_dimension_numbers<[2], [1], [1], [2], [0, 0, 0, 1, 1, 2], [0], [0]>} : vector<8x8x8xbf16>, vector<8x8x8xbf16>, vector<8x8x8xf32> -> vector<8x8x8xf32>
    "tpu.trace_stop"() : () -> ()
    %61 = vector.extract_strided_slice %60 {offsets = [0, 0, 0], sizes = [2, 8, 8], strides = [1, 1, 1]} : vector<8x8x8xf32> to vector<2x8x8xf32>
    %62 = vector.extract_strided_slice %60 {offsets = [2, 0, 0], sizes = [2, 8, 8], strides = [1, 1, 1]} : vector<8x8x8xf32> to vector<2x8x8xf32>
    %63 = vector.extract_strided_slice %60 {offsets = [4, 0, 0], sizes = [2, 8, 8], strides = [1, 1, 1]} : vector<8x8x8xf32> to vector<2x8x8xf32>
    %64 = vector.extract_strided_slice %60 {offsets = [6, 0, 0], sizes = [2, 8, 8], strides = [1, 1, 1]} : vector<8x8x8xf32> to vector<2x8x8xf32>
    %65 = tpu.concatenate %61, %62, %63, %64 in 2 : vector<2x8x8xf32>, vector<2x8x8xf32>, vector<2x8x8xf32>, vector<2x8x8xf32> -> vector<2x8x32xf32>
    %66 = vector.shape_cast %65 : vector<2x8x32xf32> to vector<16x32xf32>
    %c0_14 = arith.constant 0 : index
    %c0_15 = arith.constant 0 : index
    %c0_16 = arith.constant 0 : index
    %67 = vector.load %arg5[%c0_14, %c0_15, %c0_16] : memref<1x32x32xbf16, #tpu.memory_space<vmem>>, vector<1x32x32xbf16>
    %68 = vector.shape_cast %67 : vector<1x32x32xbf16> to vector<32x32xbf16>
    %69 = arith.index_cast %arg1 : i32 to index
    %c0_17 = arith.constant 0 : index
    %70 = vector.load %arg6[%69, %c0_17] : memref<2x32xf32, #tpu.memory_space<vmem>>, vector<1x32xf32>
    %71 = arith.truncf %66 : vector<16x32xf32> to vector<16x32xbf16>
    %cst_18 = arith.constant dense<0.000000e+00> : vector<16x32xf32>
    %72 = tpu.matmul %71, %68, %cst_18 {dimension_numbers = #tpu.dot_dimension_numbers<[1], [0], [0], [1], [0, 0, 1, 1], [], []>} : vector<16x32xbf16>, vector<32x32xbf16>, vector<16x32xf32> -> vector<16x32xf32>
    %73 = vector.broadcast %70 : vector<1x32xf32> to vector<16x32xf32>
    %74 = arith.addf %72, %73 : vector<16x32xf32>
    %75 = arith.index_cast %arg1 : i32 to index
    %c0_19 = arith.constant 0 : index
    %76 = vector.load %arg7[%75, %c0_19] : memref<2x32xf32, #tpu.memory_space<vmem>>, vector<1x32xf32>
    %77 = arith.index_cast %arg1 : i32 to index
    %c0_20 = arith.constant 0 : index
    %78 = vector.load %arg8[%77, %c0_20] : memref<2x32xf32, #tpu.memory_space<vmem>>, vector<1x32xf32>
    %79 = arith.addf %74, %4 : vector<16x32xf32>
    %cst_21 = arith.constant dense<0.000000e+00> : vector<16xf32>
    %80 = vector.multi_reduction <add>, %79, %cst_21 [1] : vector<16x32xf32> to vector<16xf32>
    %81 = vector.shape_cast %80 : vector<16xf32> to vector<16x1xf32>
    %cst_22 = arith.constant 3.200000e+01 : f32
    %82 = vector.broadcast %cst_22 : f32 to vector<16x1xf32>
    %83 = arith.divf %81, %82 : vector<16x1xf32>
    %84 = vector.broadcast %83 : vector<16x1xf32> to vector<16x32xf32>
    %85 = arith.subf %79, %84 : vector<16x32xf32>
    %86 = arith.mulf %85, %85 : vector<16x32xf32>
    %cst_23 = arith.constant dense<0.000000e+00> : vector<16xf32>
    %87 = vector.multi_reduction <add>, %86, %cst_23 [1] : vector<16x32xf32> to vector<16xf32>
    %88 = vector.shape_cast %87 : vector<16xf32> to vector<16x1xf32>
    %cst_24 = arith.constant 3.200000e+01 : f32
    %89 = vector.broadcast %cst_24 : f32 to vector<16x1xf32>
    %90 = arith.divf %88, %89 : vector<16x1xf32>
    %cst_25 = arith.constant 9.99999974E-6 : f32
    %91 = vector.broadcast %cst_25 : f32 to vector<16x1xf32>
    %92 = arith.addf %90, %91 : vector<16x1xf32>
    %93 = math.rsqrt %92 : vector<16x1xf32>
    %94 = vector.broadcast %93 : vector<16x1xf32> to vector<16x32xf32>
    %95 = arith.mulf %85, %94 : vector<16x32xf32>
    %96 = vector.broadcast %76 : vector<1x32xf32> to vector<16x32xf32>
    %97 = arith.mulf %95, %96 : vector<16x32xf32>
    %98 = vector.broadcast %78 : vector<1x32xf32> to vector<16x32xf32>
    %99 = arith.addf %97, %98 : vector<16x32xf32>
    %c0_26 = arith.constant 0 : index
    %c0_27 = arith.constant 0 : index
    %c0_28 = arith.constant 0 : index
    %100 = vector.load %arg9[%c0_26, %c0_27, %c0_28] : memref<1x32x64xbf16, #tpu.memory_space<vmem>>, vector<1x32x64xbf16>
    %101 = vector.shape_cast %100 : vector<1x32x64xbf16> to vector<32x64xbf16>
    %102 = arith.index_cast %arg1 : i32 to index
    %c0_29 = arith.constant 0 : index
    %103 = vector.load %arg10[%102, %c0_29] : memref<2x64xf32, #tpu.memory_space<vmem>>, vector<1x64xf32>
    %c0_30 = arith.constant 0 : index
    %c0_31 = arith.constant 0 : index
    %c0_32 = arith.constant 0 : index
    %104 = vector.load %arg11[%c0_30, %c0_31, %c0_32] : memref<1x64x32xbf16, #tpu.memory_space<vmem>>, vector<1x64x32xbf16>
    %105 = vector.shape_cast %104 : vector<1x64x32xbf16> to vector<64x32xbf16>
    %106 = arith.index_cast %arg1 : i32 to index
    %c0_33 = arith.constant 0 : index
    %107 = vector.load %arg12[%106, %c0_33] : memref<2x32xf32, #tpu.memory_space<vmem>>, vector<1x32xf32>
    %108 = arith.truncf %99 : vector<16x32xf32> to vector<16x32xbf16>
    %cst_34 = arith.constant dense<0.000000e+00> : vector<16x64xf32>
    %109 = tpu.matmul %108, %101, %cst_34 {dimension_numbers = #tpu.dot_dimension_numbers<[1], [0], [0], [1], [0, 0, 1, 1], [], []>} : vector<16x32xbf16>, vector<32x64xbf16>, vector<16x64xf32> -> vector<16x64xf32>
    %110 = vector.broadcast %103 : vector<1x64xf32> to vector<16x64xf32>
    %111 = arith.addf %109, %110 : vector<16x64xf32>
    %cst_35 = arith.constant 0.000000e+00 : f32
    %112 = vector.broadcast %cst_35 : f32 to vector<16x64xf32>
    %113 = arith.maximumf %111, %112 : vector<16x64xf32>
    %114 = arith.truncf %113 : vector<16x64xf32> to vector<16x64xbf16>
    %cst_36 = arith.constant dense<0.000000e+00> : vector<16x32xf32>
    %115 = tpu.matmul %114, %105, %cst_36 {dimension_numbers = #tpu.dot_dimension_numbers<[1], [0], [0], [1], [0, 0, 1, 1], [], []>} : vector<16x64xbf16>, vector<64x32xbf16>, vector<16x32xf32> -> vector<16x32xf32>
    %116 = vector.broadcast %107 : vector<1x32xf32> to vector<16x32xf32>
    %117 = arith.addf %115, %116 : vector<16x32xf32>
    %118 = arith.index_cast %arg1 : i32 to index
    %c0_37 = arith.constant 0 : index
    %119 = vector.load %arg13[%118, %c0_37] : memref<2x32xf32, #tpu.memory_space<vmem>>, vector<1x32xf32>
    %120 = arith.index_cast %arg1 : i32 to index
    %c0_38 = arith.constant 0 : index
    %121 = vector.load %arg14[%120, %c0_38] : memref<2x32xf32, #tpu.memory_space<vmem>>, vector<1x32xf32>
    %122 = arith.addf %117, %99 : vector<16x32xf32>
    %cst_39 = arith.constant dense<0.000000e+00> : vector<16xf32>
    %123 = vector.multi_reduction <add>, %122, %cst_39 [1] : vector<16x32xf32> to vector<16xf32>
    %124 = vector.shape_cast %123 : vector<16xf32> to vector<16x1xf32>
    %cst_40 = arith.constant 3.200000e+01 : f32
    %125 = vector.broadcast %cst_40 : f32 to vector<16x1xf32>
    %126 = arith.divf %124, %125 : vector<16x1xf32>
    %127 = vector.broadcast %126 : vector<16x1xf32> to vector<16x32xf32>
    %128 = arith.subf %122, %127 : vector<16x32xf32>
    %129 = arith.mulf %128, %128 : vector<16x32xf32>
    %cst_41 = arith.constant dense<0.000000e+00> : vector<16xf32>
    %130 = vector.multi_reduction <add>, %129, %cst_41 [1] : vector<16x32xf32> to vector<16xf32>
    %131 = vector.shape_cast %130 : vector<16xf32> to vector<16x1xf32>
    %cst_42 = arith.constant 3.200000e+01 : f32
    %132 = vector.broadcast %cst_42 : f32 to vector<16x1xf32>
    %133 = arith.divf %131, %132 : vector<16x1xf32>
    %cst_43 = arith.constant 9.99999974E-6 : f32
    %134 = vector.broadcast %cst_43 : f32 to vector<16x1xf32>
    %135 = arith.addf %133, %134 : vector<16x1xf32>
    %136 = math.rsqrt %135 : vector<16x1xf32>
    %137 = vector.broadcast %136 : vector<16x1xf32> to vector<16x32xf32>
    %138 = arith.mulf %128, %137 : vector<16x32xf32>
    %139 = vector.broadcast %119 : vector<1x32xf32> to vector<16x32xf32>
    %140 = arith.mulf %138, %139 : vector<16x32xf32>
    %141 = vector.broadcast %121 : vector<1x32xf32> to vector<16x32xf32>
    %142 = arith.addf %140, %141 : vector<16x32xf32>
    %143 = vector.shape_cast %142 : vector<16x32xf32> to vector<2x8x32xf32>
    %c0_44 = arith.constant 0 : index
    %c0_45 = arith.constant 0 : index
    %c0_46 = arith.constant 0 : index
    %144 = vector.load %arg15[%c0_44, %c0_45, %c0_46] : memref<2x8x32xf32, #tpu.memory_space<vmem>>, vector<2x8x32xf32>
    tpu.vector_store %arg15[%c0_44, %c0_45, %c0_46], %143 {strides = array<i32>} : memref<2x8x32xf32, #tpu.memory_space<vmem>>, vector<2x8x32xf32>,
    return
  }
  func.func @transform_0(%arg0: i32, %arg1: i32) -> (i32, i32, i32) {
    %c0_i32 = arith.constant 0 : i32
    %c0_i32_0 = arith.constant 0 : i32
    %c0_i32_1 = arith.constant 0 : i32
    return %arg0, %c0_i32, %c0_i32_0 : i32, i32, i32
  }
  func.func @transform_1(%arg0: i32, %arg1: i32) -> (i32, i32, i32) {
    %c0_i32 = arith.constant 0 : i32
    %c0_i32_0 = arith.constant 0 : i32
    %c0_i32_1 = arith.constant 0 : i32
    return %arg1, %c0_i32, %c0_i32_0 : i32, i32, i32
  }
  func.func @transform_2(%arg0: i32, %arg1: i32) -> (i32, i32) {
    %c0_i32 = arith.constant 0 : i32
    %c0_i32_0 = arith.constant 0 : i32
    %c0_i32_1 = arith.constant 0 : i32
    return %c0_i32, %c0_i32_0 : i32, i32
  }
  func.func @transform_3(%arg0: i32, %arg1: i32) -> (i32, i32, i32) {
    %c0_i32 = arith.constant 0 : i32
    %c0_i32_0 = arith.constant 0 : i32
    %c0_i32_1 = arith.constant 0 : i32
    return %arg1, %c0_i32, %c0_i32_0 : i32, i32, i32
  }
  func.func @transform_4(%arg0: i32, %arg1: i32) -> (i32, i32) {
    %c0_i32 = arith.constant 0 : i32
    %c0_i32_0 = arith.constant 0 : i32
    %c0_i32_1 = arith.constant 0 : i32
    return %c0_i32, %c0_i32_0 : i32, i32
  }
  func.func @transform_5(%arg0: i32, %arg1: i32) -> (i32, i32) {
    %c0_i32 = arith.constant 0 : i32
    %c0_i32_0 = arith.constant 0 : i32
    %c0_i32_1 = arith.constant 0 : i32
    return %c0_i32, %c0_i32_0 : i32, i32
  }
  func.func @transform_6(%arg0: i32, %arg1: i32) -> (i32, i32) {
    %c0_i32 = arith.constant 0 : i32
    %c0_i32_0 = arith.constant 0 : i32
    %c0_i32_1 = arith.constant 0 : i32
    return %c0_i32, %c0_i32_0 : i32, i32
  }
  func.func @transform_7(%arg0: i32, %arg1: i32) -> (i32, i32, i32) {
    %c0_i32 = arith.constant 0 : i32
    %c0_i32_0 = arith.constant 0 : i32
    %c0_i32_1 = arith.constant 0 : i32
    return %arg1, %c0_i32, %c0_i32_0 : i32, i32, i32
  }
  func.func @transform_8(%arg0: i32, %arg1: i32) -> (i32, i32) {
    %c0_i32 = arith.constant 0 : i32
    %c0_i32_0 = arith.constant 0 : i32
    %c0_i32_1 = arith.constant 0 : i32
    return %c0_i32, %c0_i32_0 : i32, i32
  }
  func.func @transform_9(%arg0: i32, %arg1: i32) -> (i32, i32, i32) {
    %c0_i32 = arith.constant 0 : i32
    %c0_i32_0 = arith.constant 0 : i32
    %c0_i32_1 = arith.constant 0 : i32
    return %arg1, %c0_i32, %c0_i32_0 : i32, i32, i32
  }
  func.func @transform_10(%arg0: i32, %arg1: i32) -> (i32, i32) {
    %c0_i32 = arith.constant 0 : i32
    %c0_i32_0 = arith.constant 0 : i32
    %c0_i32_1 = arith.constant 0 : i32
    return %c0_i32, %c0_i32_0 : i32, i32
  }
  func.func @transform_11(%arg0: i32, %arg1: i32) -> (i32, i32) {
    %c0_i32 = arith.constant 0 : i32
    %c0_i32_0 = arith.constant 0 : i32
    %c0_i32_1 = arith.constant 0 : i32
    return %c0_i32, %c0_i32_0 : i32, i32
  }
  func.func @transform_12(%arg0: i32, %arg1: i32) -> (i32, i32) {
    %c0_i32 = arith.constant 0 : i32
    %c0_i32_0 = arith.constant 0 : i32
    %c0_i32_1 = arith.constant 0 : i32
    return %c0_i32, %c0_i32_0 : i32, i32
  }
  func.func @transform_13(%arg0: i32, %arg1: i32) -> (i32, i32, i32) {
    %c0_i32 = arith.constant 0 : i32
    %c0_i32_0 = arith.constant 0 : i32
    %c0_i32_1 = arith.constant 0 : i32
    return %arg0, %c0_i32, %c0_i32_0 : i32, i32, i32
  }
}

module attributes {stable_mosaic.version = 11 : i64} {
  func.func @_decoder_kernel(%arg0: i32, %arg1: i32, %arg2: memref<2x8x32xf32, #tpu.memory_space<vmem>>, %arg3: memref<2x8x32xf32, #tpu.memory_space<vmem>>, %arg4: memref<1x32x96xbf16, #tpu.memory_space<vmem>>, %arg5: memref<2x96xf32, #tpu.memory_space<vmem>>, %arg6: memref<1x32x32xbf16, #tpu.memory_space<vmem>>, %arg7: memref<2x32xf32, #tpu.memory_space<vmem>>, %arg8: memref<2x32xf32, #tpu.memory_space<vmem>>, %arg9: memref<2x32xf32, #tpu.memory_space<vmem>>, %arg10: memref<1x32x32xbf16, #tpu.memory_space<vmem>>, %arg11: memref<2x32xf32, #tpu.memory_space<vmem>>, %arg12: memref<1x32x64xbf16, #tpu.memory_space<vmem>>, %arg13: memref<2x64xf32, #tpu.memory_space<vmem>>, %arg14: memref<1x32x32xbf16, #tpu.memory_space<vmem>>, %arg15: memref<2x32xf32, #tpu.memory_space<vmem>>, %arg16: memref<2x32xf32, #tpu.memory_space<vmem>>, %arg17: memref<2x32xf32, #tpu.memory_space<vmem>>, %arg18: memref<1x32x64xbf16, #tpu.memory_space<vmem>>, %arg19: memref<2x64xf32, #tpu.memory_space<vmem>>, %arg20: memref<1x64x32xbf16, #tpu.memory_space<vmem>>, %arg21: memref<2x32xf32, #tpu.memory_space<vmem>>, %arg22: memref<2x32xf32, #tpu.memory_space<vmem>>, %arg23: memref<2x32xf32, #tpu.memory_space<vmem>>, %arg24: memref<2x8x32xf32, #tpu.memory_space<vmem>>) attributes {dimension_semantics = [#tpu.dimension_semantics<parallel>, #tpu.dimension_semantics<arbitrary>], iteration_bounds = array<i64: 1, 2>, scalar_prefetch = 0 : i64, scratch_operands = 0 : i64, tpu.core_type = #tpu.core_type<tc>, window_params = [{transform_indices = @transform_0, window_bounds = array<i64: 2, 8, 32>}, {transform_indices = @transform_1, window_bounds = array<i64: 2, 8, 32>}, {transform_indices = @transform_2, window_bounds = array<i64: 1, 32, 96>}, {pipeline_mode = #tpu.pipeline_mode<synchronous>, transform_indices = @transform_3, window_bounds = array<i64: 2, 96>}, {transform_indices = @transform_4, window_bounds = array<i64: 1, 32, 32>}, {pipeline_mode = #tpu.pipeline_mode<synchronous>, transform_indices = @transform_5, window_bounds = array<i64: 2, 32>}, {pipeline_mode = #tpu.pipeline_mode<synchronous>, transform_indices = @transform_6, window_bounds = array<i64: 2, 32>}, {pipeline_mode = #tpu.pipeline_mode<synchronous>, transform_indices = @transform_7, window_bounds = array<i64: 2, 32>}, {transform_indices = @transform_8, window_bounds = array<i64: 1, 32, 32>}, {pipeline_mode = #tpu.pipeline_mode<synchronous>, transform_indices = @transform_9, window_bounds = array<i64: 2, 32>}, {transform_indices = @transform_10, window_bounds = array<i64: 1, 32, 64>}, {pipeline_mode = #tpu.pipeline_mode<synchronous>, transform_indices = @transform_11, window_bounds = array<i64: 2, 64>}, {transform_indices = @transform_12, window_bounds = array<i64: 1, 32, 32>}, {pipeline_mode = #tpu.pipeline_mode<synchronous>, transform_indices = @transform_13, window_bounds = array<i64: 2, 32>}, {pipeline_mode = #tpu.pipeline_mode<synchronous>, transform_indices = @transform_14, window_bounds = array<i64: 2, 32>}, {pipeline_mode = #tpu.pipeline_mode<synchronous>, transform_indices = @transform_15, window_bounds = array<i64: 2, 32>}, {transform_indices = @transform_16, window_bounds = array<i64: 1, 32, 64>}, {pipeline_mode = #tpu.pipeline_mode<synchronous>, transform_indices = @transform_17, window_bounds = array<i64: 2, 64>}, {transform_indices = @transform_18, window_bounds = array<i64: 1, 64, 32>}, {pipeline_mode = #tpu.pipeline_mode<synchronous>, transform_indices = @transform_19, window_bounds = array<i64: 2, 32>}, {pipeline_mode = #tpu.pipeline_mode<synchronous>, transform_indices = @transform_20, window_bounds = array<i64: 2, 32>}, {pipeline_mode = #tpu.pipeline_mode<synchronous>, transform_indices = @transform_21, window_bounds = array<i64: 2, 32>}, {transform_indices = @transform_22, window_bounds = array<i64: 2, 8, 32>}]} {
    %c0_i32 = arith.constant 0 : i32
    %0 = arith.cmpi eq, %arg1, %c0_i32 : i32
    %1 = arith.extui %0 : i1 to i32
    %c0_i32_0 = arith.constant 0 : i32
    %2 = arith.cmpi ne, %1, %c0_i32_0 : i32
    scf.if %2 {
      %c0_77 = arith.constant 0 : index
      %c0_78 = arith.constant 0 : index
      %c0_79 = arith.constant 0 : index
      %240 = vector.load %arg2[%c0_77, %c0_78, %c0_79] : memref<2x8x32xf32, #tpu.memory_space<vmem>>, vector<2x8x32xf32>
      %c0_80 = arith.constant 0 : index
      %c0_81 = arith.constant 0 : index
      %c0_82 = arith.constant 0 : index
      %241 = vector.load %arg24[%c0_80, %c0_81, %c0_82] : memref<2x8x32xf32, #tpu.memory_space<vmem>>, vector<2x8x32xf32>
      tpu.vector_store %arg24[%c0_80, %c0_81, %c0_82], %240 {strides = array<i32>} : memref<2x8x32xf32, #tpu.memory_space<vmem>>, vector<2x8x32xf32>,
    } else {
    }
    %c0 = arith.constant 0 : index
    %c0_1 = arith.constant 0 : index
    %c0_2 = arith.constant 0 : index
    %3 = vector.load %arg24[%c0, %c0_1, %c0_2] : memref<2x8x32xf32, #tpu.memory_space<vmem>>, vector<2x8x32xf32>
    %4 = vector.shape_cast %3 : vector<2x8x32xf32> to vector<16x32xf32>
    %c0_3 = arith.constant 0 : index
    %c0_4 = arith.constant 0 : index
    %c0_5 = arith.constant 0 : index
    %5 = vector.load %arg3[%c0_3, %c0_4, %c0_5] : memref<2x8x32xf32, #tpu.memory_space<vmem>>, vector<2x8x32xf32>
    %6 = vector.shape_cast %5 : vector<2x8x32xf32> to vector<16x32xf32>
    %7 = tpu.iota {dimensions = array<i32: 0>} : vector<8x8xi32>
    %8 = tpu.iota {dimensions = array<i32: 1>} : vector<8x8xi32>
    %9 = arith.cmpi sgt, %8, %7 : vector<8x8xi32>
    %cst = arith.constant -1.000000e+30 : f32
    %cst_6 = arith.constant 0.000000e+00 : f32
    %10 = vector.broadcast %cst : f32 to vector<8x8xf32>
    %11 = vector.broadcast %cst_6 : f32 to vector<8x8xf32>
    %12 = arith.select %9, %10, %11 : vector<8x8xi1>, vector<8x8xf32>
    %c0_7 = arith.constant 0 : index
    %c0_8 = arith.constant 0 : index
    %c0_9 = arith.constant 0 : index
    %13 = vector.load %arg4[%c0_7, %c0_8, %c0_9] : memref<1x32x96xbf16, #tpu.memory_space<vmem>>, vector<1x32x96xbf16>
    %14 = vector.shape_cast %13 : vector<1x32x96xbf16> to vector<32x96xbf16>
    %15 = arith.index_cast %arg1 : i32 to index
    %c0_10 = arith.constant 0 : index
    %16 = vector.load %arg5[%15, %c0_10] : memref<2x96xf32, #tpu.memory_space<vmem>>, vector<1x96xf32>
    %17 = arith.truncf %4 : vector<16x32xf32> to vector<16x32xbf16>
    %cst_11 = arith.constant dense<0.000000e+00> : vector<16x96xf32>
    %18 = tpu.matmul %17, %14, %cst_11 {dimension_numbers = #tpu.dot_dimension_numbers<[1], [0], [0], [1], [0, 0, 1, 1], [], []>} : vector<16x32xbf16>, vector<32x96xbf16>, vector<16x96xf32> -> vector<16x96xf32>
    %19 = vector.broadcast %16 : vector<1x96xf32> to vector<16x96xf32>
    %20 = arith.addf %18, %19 : vector<16x96xf32>
    %21 = vector.extract_strided_slice %20 {offsets = [0, 0], sizes = [16, 32], strides = [1, 1]} : vector<16x96xf32> to vector<16x32xf32>
    %22 = vector.shape_cast %21 : vector<16x32xf32> to vector<2x8x32xf32>
    %23 = vector.extract_strided_slice %20 {offsets = [0, 32], sizes = [16, 32], strides = [1, 1]} : vector<16x96xf32> to vector<16x32xf32>
    %24 = vector.shape_cast %23 : vector<16x32xf32> to vector<2x8x32xf32>
    %25 = vector.extract_strided_slice %20 {offsets = [0, 64], sizes = [16, 32], strides = [1, 1]} : vector<16x96xf32> to vector<16x32xf32>
    %26 = vector.shape_cast %25 : vector<16x32xf32> to vector<2x8x32xf32>
    %cst_12 = arith.constant 0.353553385 : f32
    %27 = vector.broadcast %cst_12 : f32 to vector<2x8x32xf32>
    %28 = arith.mulf %22, %27 : vector<2x8x32xf32>
    %29 = arith.truncf %28 : vector<2x8x32xf32> to vector<2x8x32xbf16>
    %30 = arith.truncf %24 : vector<2x8x32xf32> to vector<2x8x32xbf16>
    %31 = arith.truncf %26 : vector<2x8x32xf32> to vector<2x8x32xbf16>
    %32 = vector.extract_strided_slice %29 {offsets = [0, 0, 0], sizes = [2, 8, 8], strides = [1, 1, 1]} : vector<2x8x32xbf16> to vector<2x8x8xbf16>
    %33 = vector.extract_strided_slice %29 {offsets = [0, 0, 8], sizes = [2, 8, 8], strides = [1, 1, 1]} : vector<2x8x32xbf16> to vector<2x8x8xbf16>
    %34 = vector.extract_strided_slice %29 {offsets = [0, 0, 16], sizes = [2, 8, 8], strides = [1, 1, 1]} : vector<2x8x32xbf16> to vector<2x8x8xbf16>
    %35 = vector.extract_strided_slice %29 {offsets = [0, 0, 24], sizes = [2, 8, 8], strides = [1, 1, 1]} : vector<2x8x32xbf16> to vector<2x8x8xbf16>
    %36 = tpu.concatenate %32, %33, %34, %35 in 0 : vector<2x8x8xbf16>, vector<2x8x8xbf16>, vector<2x8x8xbf16>, vector<2x8x8xbf16> -> vector<8x8x8xbf16>
    %37 = vector.extract_strided_slice %30 {offsets = [0, 0, 0], sizes = [2, 8, 8], strides = [1, 1, 1]} : vector<2x8x32xbf16> to vector<2x8x8xbf16>
    %38 = vector.extract_strided_slice %30 {offsets = [0, 0, 8], sizes = [2, 8, 8], strides = [1, 1, 1]} : vector<2x8x32xbf16> to vector<2x8x8xbf16>
    %39 = vector.extract_strided_slice %30 {offsets = [0, 0, 16], sizes = [2, 8, 8], strides = [1, 1, 1]} : vector<2x8x32xbf16> to vector<2x8x8xbf16>
    %40 = vector.extract_strided_slice %30 {offsets = [0, 0, 24], sizes = [2, 8, 8], strides = [1, 1, 1]} : vector<2x8x32xbf16> to vector<2x8x8xbf16>
    %41 = tpu.concatenate %37, %38, %39, %40 in 0 : vector<2x8x8xbf16>, vector<2x8x8xbf16>, vector<2x8x8xbf16>, vector<2x8x8xbf16> -> vector<8x8x8xbf16>
    %42 = vector.extract_strided_slice %31 {offsets = [0, 0, 0], sizes = [2, 8, 8], strides = [1, 1, 1]} : vector<2x8x32xbf16> to vector<2x8x8xbf16>
    %43 = vector.extract_strided_slice %31 {offsets = [0, 0, 8], sizes = [2, 8, 8], strides = [1, 1, 1]} : vector<2x8x32xbf16> to vector<2x8x8xbf16>
    %44 = vector.extract_strided_slice %31 {offsets = [0, 0, 16], sizes = [2, 8, 8], strides = [1, 1, 1]} : vector<2x8x32xbf16> to vector<2x8x8xbf16>
    %45 = vector.extract_strided_slice %31 {offsets = [0, 0, 24], sizes = [2, 8, 8], strides = [1, 1, 1]} : vector<2x8x32xbf16> to vector<2x8x8xbf16>
    %46 = tpu.concatenate %42, %43, %44, %45 in 0 : vector<2x8x8xbf16>, vector<2x8x8xbf16>, vector<2x8x8xbf16>, vector<2x8x8xbf16> -> vector<8x8x8xbf16>
    "tpu.trace_start"() <{level = 10 : i32, message = "bqd,bkd->bqk"}> : () -> ()
    %cst_13 = arith.constant dense<0.000000e+00> : vector<8x8x8xf32>
    %47 = tpu.matmul %36, %41, %cst_13 {dimension_numbers = #tpu.dot_dimension_numbers<[2], [2], [1], [1], [0, 0, 0, 1, 1, 1], [0], [0]>} : vector<8x8x8xbf16>, vector<8x8x8xbf16>, vector<8x8x8xf32> -> vector<8x8x8xf32>
    "tpu.trace_stop"() : () -> ()
    %48 = vector.shape_cast %12 : vector<8x8xf32> to vector<1x8x8xf32>
    %49 = vector.broadcast %48 : vector<1x8x8xf32> to vector<8x8x8xf32>
    %50 = arith.addf %47, %49 : vector<8x8x8xf32>
    %cst_14 = arith.constant dense<0xFF800000> : vector<8x8xf32>
    %51 = vector.multi_reduction <maximumf>, %50, %cst_14 [2] : vector<8x8x8xf32> to vector<8x8xf32>
    %52 = vector.shape_cast %51 : vector<8x8xf32> to vector<8x8x1xf32>
    %53 = vector.broadcast %52 : vector<8x8x1xf32> to vector<8x8x8xf32>
    %54 = arith.subf %50, %53 : vector<8x8x8xf32>
    %55 = math.exp %54 : vector<8x8x8xf32>
    %cst_15 = arith.constant dense<0.000000e+00> : vector<8x8xf32>
    %56 = vector.multi_reduction <add>, %55, %cst_15 [2] : vector<8x8x8xf32> to vector<8x8xf32>
    %57 = vector.shape_cast %56 : vector<8x8xf32> to vector<8x8x1xf32>
    %58 = tpu.reciprocal %57 {approx = true} : vector<8x8x1xf32> -> vector<8x8x1xf32>
    %59 = vector.broadcast %58 : vector<8x8x1xf32> to vector<8x8x8xf32>
    %60 = arith.mulf %55, %59 : vector<8x8x8xf32>
    %61 = arith.truncf %60 : vector<8x8x8xf32> to vector<8x8x8xbf16>
    "tpu.trace_start"() <{level = 10 : i32, message = "bqk,bkd->bqd"}> : () -> ()
    %cst_16 = arith.constant dense<0.000000e+00> : vector<8x8x8xf32>
    %62 = tpu.matmul %61, %46, %cst_16 {dimension_numbers = #tpu.dot_dimension_numbers<[2], [1], [1], [2], [0, 0, 0, 1, 1, 2], [0], [0]>} : vector<8x8x8xbf16>, vector<8x8x8xbf16>, vector<8x8x8xf32> -> vector<8x8x8xf32>
    "tpu.trace_stop"() : () -> ()
    %63 = vector.extract_strided_slice %62 {offsets = [0, 0, 0], sizes = [2, 8, 8], strides = [1, 1, 1]} : vector<8x8x8xf32> to vector<2x8x8xf32>
    %64 = vector.extract_strided_slice %62 {offsets = [2, 0, 0], sizes = [2, 8, 8], strides = [1, 1, 1]} : vector<8x8x8xf32> to vector<2x8x8xf32>
    %65 = vector.extract_strided_slice %62 {offsets = [4, 0, 0], sizes = [2, 8, 8], strides = [1, 1, 1]} : vector<8x8x8xf32> to vector<2x8x8xf32>
    %66 = vector.extract_strided_slice %62 {offsets = [6, 0, 0], sizes = [2, 8, 8], strides = [1, 1, 1]} : vector<8x8x8xf32> to vector<2x8x8xf32>
    %67 = tpu.concatenate %63, %64, %65, %66 in 2 : vector<2x8x8xf32>, vector<2x8x8xf32>, vector<2x8x8xf32>, vector<2x8x8xf32> -> vector<2x8x32xf32>
    %68 = vector.shape_cast %67 : vector<2x8x32xf32> to vector<16x32xf32>
    %c0_17 = arith.constant 0 : index
    %c0_18 = arith.constant 0 : index
    %c0_19 = arith.constant 0 : index
    %69 = vector.load %arg6[%c0_17, %c0_18, %c0_19] : memref<1x32x32xbf16, #tpu.memory_space<vmem>>, vector<1x32x32xbf16>
    %70 = vector.shape_cast %69 : vector<1x32x32xbf16> to vector<32x32xbf16>
    %71 = arith.index_cast %arg1 : i32 to index
    %c0_20 = arith.constant 0 : index
    %72 = vector.load %arg7[%71, %c0_20] : memref<2x32xf32, #tpu.memory_space<vmem>>, vector<1x32xf32>
    %73 = arith.truncf %68 : vector<16x32xf32> to vector<16x32xbf16>
    %cst_21 = arith.constant dense<0.000000e+00> : vector<16x32xf32>
    %74 = tpu.matmul %73, %70, %cst_21 {dimension_numbers = #tpu.dot_dimension_numbers<[1], [0], [0], [1], [0, 0, 1, 1], [], []>} : vector<16x32xbf16>, vector<32x32xbf16>, vector<16x32xf32> -> vector<16x32xf32>
    %75 = vector.broadcast %72 : vector<1x32xf32> to vector<16x32xf32>
    %76 = arith.addf %74, %75 : vector<16x32xf32>
    %77 = arith.index_cast %arg1 : i32 to index
    %c0_22 = arith.constant 0 : index
    %78 = vector.load %arg8[%77, %c0_22] : memref<2x32xf32, #tpu.memory_space<vmem>>, vector<1x32xf32>
    %79 = arith.index_cast %arg1 : i32 to index
    %c0_23 = arith.constant 0 : index
    %80 = vector.load %arg9[%79, %c0_23] : memref<2x32xf32, #tpu.memory_space<vmem>>, vector<1x32xf32>
    %81 = arith.addf %76, %4 : vector<16x32xf32>
    %cst_24 = arith.constant dense<0.000000e+00> : vector<16xf32>
    %82 = vector.multi_reduction <add>, %81, %cst_24 [1] : vector<16x32xf32> to vector<16xf32>
    %83 = vector.shape_cast %82 : vector<16xf32> to vector<16x1xf32>
    %cst_25 = arith.constant 3.200000e+01 : f32
    %84 = vector.broadcast %cst_25 : f32 to vector<16x1xf32>
    %85 = arith.divf %83, %84 : vector<16x1xf32>
    %86 = vector.broadcast %85 : vector<16x1xf32> to vector<16x32xf32>
    %87 = arith.subf %81, %86 : vector<16x32xf32>
    %88 = arith.mulf %87, %87 : vector<16x32xf32>
    %cst_26 = arith.constant dense<0.000000e+00> : vector<16xf32>
    %89 = vector.multi_reduction <add>, %88, %cst_26 [1] : vector<16x32xf32> to vector<16xf32>
    %90 = vector.shape_cast %89 : vector<16xf32> to vector<16x1xf32>
    %cst_27 = arith.constant 3.200000e+01 : f32
    %91 = vector.broadcast %cst_27 : f32 to vector<16x1xf32>
    %92 = arith.divf %90, %91 : vector<16x1xf32>
    %cst_28 = arith.constant 9.99999974E-6 : f32
    %93 = vector.broadcast %cst_28 : f32 to vector<16x1xf32>
    %94 = arith.addf %92, %93 : vector<16x1xf32>
    %95 = math.rsqrt %94 : vector<16x1xf32>
    %96 = vector.broadcast %95 : vector<16x1xf32> to vector<16x32xf32>
    %97 = arith.mulf %87, %96 : vector<16x32xf32>
    %98 = vector.broadcast %78 : vector<1x32xf32> to vector<16x32xf32>
    %99 = arith.mulf %97, %98 : vector<16x32xf32>
    %100 = vector.broadcast %80 : vector<1x32xf32> to vector<16x32xf32>
    %101 = arith.addf %99, %100 : vector<16x32xf32>
    %c0_29 = arith.constant 0 : index
    %c0_30 = arith.constant 0 : index
    %c0_31 = arith.constant 0 : index
    %102 = vector.load %arg10[%c0_29, %c0_30, %c0_31] : memref<1x32x32xbf16, #tpu.memory_space<vmem>>, vector<1x32x32xbf16>
    %103 = vector.shape_cast %102 : vector<1x32x32xbf16> to vector<32x32xbf16>
    %104 = arith.index_cast %arg1 : i32 to index
    %c0_32 = arith.constant 0 : index
    %105 = vector.load %arg11[%104, %c0_32] : memref<2x32xf32, #tpu.memory_space<vmem>>, vector<1x32xf32>
    %106 = arith.truncf %101 : vector<16x32xf32> to vector<16x32xbf16>
    %cst_33 = arith.constant dense<0.000000e+00> : vector<16x32xf32>
    %107 = tpu.matmul %106, %103, %cst_33 {dimension_numbers = #tpu.dot_dimension_numbers<[1], [0], [0], [1], [0, 0, 1, 1], [], []>} : vector<16x32xbf16>, vector<32x32xbf16>, vector<16x32xf32> -> vector<16x32xf32>
    %108 = vector.broadcast %105 : vector<1x32xf32> to vector<16x32xf32>
    %109 = arith.addf %107, %108 : vector<16x32xf32>
    %110 = vector.shape_cast %109 : vector<16x32xf32> to vector<2x8x32xf32>
    %c0_34 = arith.constant 0 : index
    %c0_35 = arith.constant 0 : index
    %c0_36 = arith.constant 0 : index
    %111 = vector.load %arg12[%c0_34, %c0_35, %c0_36] : memref<1x32x64xbf16, #tpu.memory_space<vmem>>, vector<1x32x64xbf16>
    %112 = vector.shape_cast %111 : vector<1x32x64xbf16> to vector<32x64xbf16>
    %113 = arith.index_cast %arg1 : i32 to index
    %c0_37 = arith.constant 0 : index
    %114 = vector.load %arg13[%113, %c0_37] : memref<2x64xf32, #tpu.memory_space<vmem>>, vector<1x64xf32>
    %115 = arith.truncf %6 : vector<16x32xf32> to vector<16x32xbf16>
    %cst_38 = arith.constant dense<0.000000e+00> : vector<16x64xf32>
    %116 = tpu.matmul %115, %112, %cst_38 {dimension_numbers = #tpu.dot_dimension_numbers<[1], [0], [0], [1], [0, 0, 1, 1], [], []>} : vector<16x32xbf16>, vector<32x64xbf16>, vector<16x64xf32> -> vector<16x64xf32>
    %117 = vector.broadcast %114 : vector<1x64xf32> to vector<16x64xf32>
    %118 = arith.addf %116, %117 : vector<16x64xf32>
    %119 = vector.extract_strided_slice %118 {offsets = [0, 0], sizes = [16, 32], strides = [1, 1]} : vector<16x64xf32> to vector<16x32xf32>
    %120 = vector.shape_cast %119 : vector<16x32xf32> to vector<2x8x32xf32>
    %121 = vector.extract_strided_slice %118 {offsets = [0, 32], sizes = [16, 32], strides = [1, 1]} : vector<16x64xf32> to vector<16x32xf32>
    %122 = vector.shape_cast %121 : vector<16x32xf32> to vector<2x8x32xf32>
    %cst_39 = arith.constant 0.353553385 : f32
    %123 = vector.broadcast %cst_39 : f32 to vector<2x8x32xf32>
    %124 = arith.mulf %110, %123 : vector<2x8x32xf32>
    %125 = arith.truncf %124 : vector<2x8x32xf32> to vector<2x8x32xbf16>
    %126 = arith.truncf %120 : vector<2x8x32xf32> to vector<2x8x32xbf16>
    %127 = arith.truncf %122 : vector<2x8x32xf32> to vector<2x8x32xbf16>
    %128 = vector.extract_strided_slice %125 {offsets = [0, 0, 0], sizes = [2, 8, 8], strides = [1, 1, 1]} : vector<2x8x32xbf16> to vector<2x8x8xbf16>
    %129 = vector.extract_strided_slice %125 {offsets = [0, 0, 8], sizes = [2, 8, 8], strides = [1, 1, 1]} : vector<2x8x32xbf16> to vector<2x8x8xbf16>
    %130 = vector.extract_strided_slice %125 {offsets = [0, 0, 16], sizes = [2, 8, 8], strides = [1, 1, 1]} : vector<2x8x32xbf16> to vector<2x8x8xbf16>
    %131 = vector.extract_strided_slice %125 {offsets = [0, 0, 24], sizes = [2, 8, 8], strides = [1, 1, 1]} : vector<2x8x32xbf16> to vector<2x8x8xbf16>
    %132 = tpu.concatenate %128, %129, %130, %131 in 0 : vector<2x8x8xbf16>, vector<2x8x8xbf16>, vector<2x8x8xbf16>, vector<2x8x8xbf16> -> vector<8x8x8xbf16>
    %133 = vector.extract_strided_slice %126 {offsets = [0, 0, 0], sizes = [2, 8, 8], strides = [1, 1, 1]} : vector<2x8x32xbf16> to vector<2x8x8xbf16>
    %134 = vector.extract_strided_slice %126 {offsets = [0, 0, 8], sizes = [2, 8, 8], strides = [1, 1, 1]} : vector<2x8x32xbf16> to vector<2x8x8xbf16>
    %135 = vector.extract_strided_slice %126 {offsets = [0, 0, 16], sizes = [2, 8, 8], strides = [1, 1, 1]} : vector<2x8x32xbf16> to vector<2x8x8xbf16>
    %136 = vector.extract_strided_slice %126 {offsets = [0, 0, 24], sizes = [2, 8, 8], strides = [1, 1, 1]} : vector<2x8x32xbf16> to vector<2x8x8xbf16>
    %137 = tpu.concatenate %133, %134, %135, %136 in 0 : vector<2x8x8xbf16>, vector<2x8x8xbf16>, vector<2x8x8xbf16>, vector<2x8x8xbf16> -> vector<8x8x8xbf16>
    %138 = vector.extract_strided_slice %127 {offsets = [0, 0, 0], sizes = [2, 8, 8], strides = [1, 1, 1]} : vector<2x8x32xbf16> to vector<2x8x8xbf16>
    %139 = vector.extract_strided_slice %127 {offsets = [0, 0, 8], sizes = [2, 8, 8], strides = [1, 1, 1]} : vector<2x8x32xbf16> to vector<2x8x8xbf16>
    %140 = vector.extract_strided_slice %127 {offsets = [0, 0, 16], sizes = [2, 8, 8], strides = [1, 1, 1]} : vector<2x8x32xbf16> to vector<2x8x8xbf16>
    %141 = vector.extract_strided_slice %127 {offsets = [0, 0, 24], sizes = [2, 8, 8], strides = [1, 1, 1]} : vector<2x8x32xbf16> to vector<2x8x8xbf16>
    %142 = tpu.concatenate %138, %139, %140, %141 in 0 : vector<2x8x8xbf16>, vector<2x8x8xbf16>, vector<2x8x8xbf16>, vector<2x8x8xbf16> -> vector<8x8x8xbf16>
    "tpu.trace_start"() <{level = 10 : i32, message = "bqd,bkd->bqk"}> : () -> ()
    %cst_40 = arith.constant dense<0.000000e+00> : vector<8x8x8xf32>
    %143 = tpu.matmul %132, %137, %cst_40 {dimension_numbers = #tpu.dot_dimension_numbers<[2], [2], [1], [1], [0, 0, 0, 1, 1, 1], [0], [0]>} : vector<8x8x8xbf16>, vector<8x8x8xbf16>, vector<8x8x8xf32> -> vector<8x8x8xf32>
    "tpu.trace_stop"() : () -> ()
    %cst_41 = arith.constant dense<0xFF800000> : vector<8x8xf32>
    %144 = vector.multi_reduction <maximumf>, %143, %cst_41 [2] : vector<8x8x8xf32> to vector<8x8xf32>
    %145 = vector.shape_cast %144 : vector<8x8xf32> to vector<8x8x1xf32>
    %146 = vector.broadcast %145 : vector<8x8x1xf32> to vector<8x8x8xf32>
    %147 = arith.subf %143, %146 : vector<8x8x8xf32>
    %148 = math.exp %147 : vector<8x8x8xf32>
    %cst_42 = arith.constant dense<0.000000e+00> : vector<8x8xf32>
    %149 = vector.multi_reduction <add>, %148, %cst_42 [2] : vector<8x8x8xf32> to vector<8x8xf32>
    %150 = vector.shape_cast %149 : vector<8x8xf32> to vector<8x8x1xf32>
    %151 = tpu.reciprocal %150 {approx = true} : vector<8x8x1xf32> -> vector<8x8x1xf32>
    %152 = vector.broadcast %151 : vector<8x8x1xf32> to vector<8x8x8xf32>
    %153 = arith.mulf %148, %152 : vector<8x8x8xf32>
    %154 = arith.truncf %153 : vector<8x8x8xf32> to vector<8x8x8xbf16>
    "tpu.trace_start"() <{level = 10 : i32, message = "bqk,bkd->bqd"}> : () -> ()
    %cst_43 = arith.constant dense<0.000000e+00> : vector<8x8x8xf32>
    %155 = tpu.matmul %154, %142, %cst_43 {dimension_numbers = #tpu.dot_dimension_numbers<[2], [1], [1], [2], [0, 0, 0, 1, 1, 2], [0], [0]>} : vector<8x8x8xbf16>, vector<8x8x8xbf16>, vector<8x8x8xf32> -> vector<8x8x8xf32>
    "tpu.trace_stop"() : () -> ()
    %156 = vector.extract_strided_slice %155 {offsets = [0, 0, 0], sizes = [2, 8, 8], strides = [1, 1, 1]} : vector<8x8x8xf32> to vector<2x8x8xf32>
    %157 = vector.extract_strided_slice %155 {offsets = [2, 0, 0], sizes = [2, 8, 8], strides = [1, 1, 1]} : vector<8x8x8xf32> to vector<2x8x8xf32>
    %158 = vector.extract_strided_slice %155 {offsets = [4, 0, 0], sizes = [2, 8, 8], strides = [1, 1, 1]} : vector<8x8x8xf32> to vector<2x8x8xf32>
    %159 = vector.extract_strided_slice %155 {offsets = [6, 0, 0], sizes = [2, 8, 8], strides = [1, 1, 1]} : vector<8x8x8xf32> to vector<2x8x8xf32>
    %160 = tpu.concatenate %156, %157, %158, %159 in 2 : vector<2x8x8xf32>, vector<2x8x8xf32>, vector<2x8x8xf32>, vector<2x8x8xf32> -> vector<2x8x32xf32>
    %161 = vector.shape_cast %160 : vector<2x8x32xf32> to vector<16x32xf32>
    %c0_44 = arith.constant 0 : index
    %c0_45 = arith.constant 0 : index
    %c0_46 = arith.constant 0 : index
    %162 = vector.load %arg14[%c0_44, %c0_45, %c0_46] : memref<1x32x32xbf16, #tpu.memory_space<vmem>>, vector<1x32x32xbf16>
    %163 = vector.shape_cast %162 : vector<1x32x32xbf16> to vector<32x32xbf16>
    %164 = arith.index_cast %arg1 : i32 to index
    %c0_47 = arith.constant 0 : index
    %165 = vector.load %arg15[%164, %c0_47] : memref<2x32xf32, #tpu.memory_space<vmem>>, vector<1x32xf32>
    %166 = arith.truncf %161 : vector<16x32xf32> to vector<16x32xbf16>
    %cst_48 = arith.constant dense<0.000000e+00> : vector<16x32xf32>
    %167 = tpu.matmul %166, %163, %cst_48 {dimension_numbers = #tpu.dot_dimension_numbers<[1], [0], [0], [1], [0, 0, 1, 1], [], []>} : vector<16x32xbf16>, vector<32x32xbf16>, vector<16x32xf32> -> vector<16x32xf32>
    %168 = vector.broadcast %165 : vector<1x32xf32> to vector<16x32xf32>
    %169 = arith.addf %167, %168 : vector<16x32xf32>
    %170 = arith.index_cast %arg1 : i32 to index
    %c0_49 = arith.constant 0 : index
    %171 = vector.load %arg16[%170, %c0_49] : memref<2x32xf32, #tpu.memory_space<vmem>>, vector<1x32xf32>
    %172 = arith.index_cast %arg1 : i32 to index
    %c0_50 = arith.constant 0 : index
    %173 = vector.load %arg17[%172, %c0_50] : memref<2x32xf32, #tpu.memory_space<vmem>>, vector<1x32xf32>
    %174 = arith.addf %169, %101 : vector<16x32xf32>
    %cst_51 = arith.constant dense<0.000000e+00> : vector<16xf32>
    %175 = vector.multi_reduction <add>, %174, %cst_51 [1] : vector<16x32xf32> to vector<16xf32>
    %176 = vector.shape_cast %175 : vector<16xf32> to vector<16x1xf32>
    %cst_52 = arith.constant 3.200000e+01 : f32
    %177 = vector.broadcast %cst_52 : f32 to vector<16x1xf32>
    %178 = arith.divf %176, %177 : vector<16x1xf32>
    %179 = vector.broadcast %178 : vector<16x1xf32> to vector<16x32xf32>
    %180 = arith.subf %174, %179 : vector<16x32xf32>
    %181 = arith.mulf %180, %180 : vector<16x32xf32>
    %cst_53 = arith.constant dense<0.000000e+00> : vector<16xf32>
    %182 = vector.multi_reduction <add>, %181, %cst_53 [1] : vector<16x32xf32> to vector<16xf32>
    %183 = vector.shape_cast %182 : vector<16xf32> to vector<16x1xf32>
    %cst_54 = arith.constant 3.200000e+01 : f32
    %184 = vector.broadcast %cst_54 : f32 to vector<16x1xf32>
    %185 = arith.divf %183, %184 : vector<16x1xf32>
    %cst_55 = arith.constant 9.99999974E-6 : f32
    %186 = vector.broadcast %cst_55 : f32 to vector<16x1xf32>
    %187 = arith.addf %185, %186 : vector<16x1xf32>
    %188 = math.rsqrt %187 : vector<16x1xf32>
    %189 = vector.broadcast %188 : vector<16x1xf32> to vector<16x32xf32>
    %190 = arith.mulf %180, %189 : vector<16x32xf32>
    %191 = vector.broadcast %171 : vector<1x32xf32> to vector<16x32xf32>
    %192 = arith.mulf %190, %191 : vector<16x32xf32>
    %193 = vector.broadcast %173 : vector<1x32xf32> to vector<16x32xf32>
    %194 = arith.addf %192, %193 : vector<16x32xf32>
    %c0_56 = arith.constant 0 : index
    %c0_57 = arith.constant 0 : index
    %c0_58 = arith.constant 0 : index
    %195 = vector.load %arg18[%c0_56, %c0_57, %c0_58] : memref<1x32x64xbf16, #tpu.memory_space<vmem>>, vector<1x32x64xbf16>
    %196 = vector.shape_cast %195 : vector<1x32x64xbf16> to vector<32x64xbf16>
    %197 = arith.index_cast %arg1 : i32 to index
    %c0_59 = arith.constant 0 : index
    %198 = vector.load %arg19[%197, %c0_59] : memref<2x64xf32, #tpu.memory_space<vmem>>, vector<1x64xf32>
    %c0_60 = arith.constant 0 : index
    %c0_61 = arith.constant 0 : index
    %c0_62 = arith.constant 0 : index
    %199 = vector.load %arg20[%c0_60, %c0_61, %c0_62] : memref<1x64x32xbf16, #tpu.memory_space<vmem>>, vector<1x64x32xbf16>
    %200 = vector.shape_cast %199 : vector<1x64x32xbf16> to vector<64x32xbf16>
    %201 = arith.index_cast %arg1 : i32 to index
    %c0_63 = arith.constant 0 : index
    %202 = vector.load %arg21[%201, %c0_63] : memref<2x32xf32, #tpu.memory_space<vmem>>, vector<1x32xf32>
    %203 = arith.truncf %194 : vector<16x32xf32> to vector<16x32xbf16>
    %cst_64 = arith.constant dense<0.000000e+00> : vector<16x64xf32>
    %204 = tpu.matmul %203, %196, %cst_64 {dimension_numbers = #tpu.dot_dimension_numbers<[1], [0], [0], [1], [0, 0, 1, 1], [], []>} : vector<16x32xbf16>, vector<32x64xbf16>, vector<16x64xf32> -> vector<16x64xf32>
    %205 = vector.broadcast %198 : vector<1x64xf32> to vector<16x64xf32>
    %206 = arith.addf %204, %205 : vector<16x64xf32>
    %cst_65 = arith.constant 0.000000e+00 : f32
    %207 = vector.broadcast %cst_65 : f32 to vector<16x64xf32>
    %208 = arith.maximumf %206, %207 : vector<16x64xf32>
    %209 = arith.truncf %208 : vector<16x64xf32> to vector<16x64xbf16>
    %cst_66 = arith.constant dense<0.000000e+00> : vector<16x32xf32>
    %210 = tpu.matmul %209, %200, %cst_66 {dimension_numbers = #tpu.dot_dimension_numbers<[1], [0], [0], [1], [0, 0, 1, 1], [], []>} : vector<16x64xbf16>, vector<64x32xbf16>, vector<16x32xf32> -> vector<16x32xf32>
    %211 = vector.broadcast %202 : vector<1x32xf32> to vector<16x32xf32>
    %212 = arith.addf %210, %211 : vector<16x32xf32>
    %213 = arith.index_cast %arg1 : i32 to index
    %c0_67 = arith.constant 0 : index
    %214 = vector.load %arg22[%213, %c0_67] : memref<2x32xf32, #tpu.memory_space<vmem>>, vector<1x32xf32>
    %215 = arith.index_cast %arg1 : i32 to index
    %c0_68 = arith.constant 0 : index
    %216 = vector.load %arg23[%215, %c0_68] : memref<2x32xf32, #tpu.memory_space<vmem>>, vector<1x32xf32>
    %217 = arith.addf %212, %194 : vector<16x32xf32>
    %cst_69 = arith.constant dense<0.000000e+00> : vector<16xf32>
    %218 = vector.multi_reduction <add>, %217, %cst_69 [1] : vector<16x32xf32> to vector<16xf32>
    %219 = vector.shape_cast %218 : vector<16xf32> to vector<16x1xf32>
    %cst_70 = arith.constant 3.200000e+01 : f32
    %220 = vector.broadcast %cst_70 : f32 to vector<16x1xf32>
    %221 = arith.divf %219, %220 : vector<16x1xf32>
    %222 = vector.broadcast %221 : vector<16x1xf32> to vector<16x32xf32>
    %223 = arith.subf %217, %222 : vector<16x32xf32>
    %224 = arith.mulf %223, %223 : vector<16x32xf32>
    %cst_71 = arith.constant dense<0.000000e+00> : vector<16xf32>
    %225 = vector.multi_reduction <add>, %224, %cst_71 [1] : vector<16x32xf32> to vector<16xf32>
    %226 = vector.shape_cast %225 : vector<16xf32> to vector<16x1xf32>
    %cst_72 = arith.constant 3.200000e+01 : f32
    %227 = vector.broadcast %cst_72 : f32 to vector<16x1xf32>
    %228 = arith.divf %226, %227 : vector<16x1xf32>
    %cst_73 = arith.constant 9.99999974E-6 : f32
    %229 = vector.broadcast %cst_73 : f32 to vector<16x1xf32>
    %230 = arith.addf %228, %229 : vector<16x1xf32>
    %231 = math.rsqrt %230 : vector<16x1xf32>
    %232 = vector.broadcast %231 : vector<16x1xf32> to vector<16x32xf32>
    %233 = arith.mulf %223, %232 : vector<16x32xf32>
    %234 = vector.broadcast %214 : vector<1x32xf32> to vector<16x32xf32>
    %235 = arith.mulf %233, %234 : vector<16x32xf32>
    %236 = vector.broadcast %216 : vector<1x32xf32> to vector<16x32xf32>
    %237 = arith.addf %235, %236 : vector<16x32xf32>
    %238 = vector.shape_cast %237 : vector<16x32xf32> to vector<2x8x32xf32>
    %c0_74 = arith.constant 0 : index
    %c0_75 = arith.constant 0 : index
    %c0_76 = arith.constant 0 : index
    %239 = vector.load %arg24[%c0_74, %c0_75, %c0_76] : memref<2x8x32xf32, #tpu.memory_space<vmem>>, vector<2x8x32xf32>
    tpu.vector_store %arg24[%c0_74, %c0_75, %c0_76], %238 {strides = array<i32>} : memref<2x8x32xf32, #tpu.memory_space<vmem>>, vector<2x8x32xf32>,
    return
  }
  func.func @transform_0(%arg0: i32, %arg1: i32) -> (i32, i32, i32) {
    %c0_i32 = arith.constant 0 : i32
    %c0_i32_0 = arith.constant 0 : i32
    %c0_i32_1 = arith.constant 0 : i32
    return %arg0, %c0_i32, %c0_i32_0 : i32, i32, i32
  }
  func.func @transform_1(%arg0: i32, %arg1: i32) -> (i32, i32, i32) {
    %c0_i32 = arith.constant 0 : i32
    %c0_i32_0 = arith.constant 0 : i32
    %c0_i32_1 = arith.constant 0 : i32
    return %arg0, %c0_i32, %c0_i32_0 : i32, i32, i32
  }
  func.func @transform_2(%arg0: i32, %arg1: i32) -> (i32, i32, i32) {
    %c0_i32 = arith.constant 0 : i32
    %c0_i32_0 = arith.constant 0 : i32
    %c0_i32_1 = arith.constant 0 : i32
    return %arg1, %c0_i32, %c0_i32_0 : i32, i32, i32
  }
  func.func @transform_3(%arg0: i32, %arg1: i32) -> (i32, i32) {
    %c0_i32 = arith.constant 0 : i32
    %c0_i32_0 = arith.constant 0 : i32
    %c0_i32_1 = arith.constant 0 : i32
    return %c0_i32, %c0_i32_0 : i32, i32
  }
  func.func @transform_4(%arg0: i32, %arg1: i32) -> (i32, i32, i32) {
    %c0_i32 = arith.constant 0 : i32
    %c0_i32_0 = arith.constant 0 : i32
    %c0_i32_1 = arith.constant 0 : i32
    return %arg1, %c0_i32, %c0_i32_0 : i32, i32, i32
  }
  func.func @transform_5(%arg0: i32, %arg1: i32) -> (i32, i32) {
    %c0_i32 = arith.constant 0 : i32
    %c0_i32_0 = arith.constant 0 : i32
    %c0_i32_1 = arith.constant 0 : i32
    return %c0_i32, %c0_i32_0 : i32, i32
  }
  func.func @transform_6(%arg0: i32, %arg1: i32) -> (i32, i32) {
    %c0_i32 = arith.constant 0 : i32
    %c0_i32_0 = arith.constant 0 : i32
    %c0_i32_1 = arith.constant 0 : i32
    return %c0_i32, %c0_i32_0 : i32, i32
  }
  func.func @transform_7(%arg0: i32, %arg1: i32) -> (i32, i32) {
    %c0_i32 = arith.constant 0 : i32
    %c0_i32_0 = arith.constant 0 : i32
    %c0_i32_1 = arith.constant 0 : i32
    return %c0_i32, %c0_i32_0 : i32, i32
  }
  func.func @transform_8(%arg0: i32, %arg1: i32) -> (i32, i32, i32) {
    %c0_i32 = arith.constant 0 : i32
    %c0_i32_0 = arith.constant 0 : i32
    %c0_i32_1 = arith.constant 0 : i32
    return %arg1, %c0_i32, %c0_i32_0 : i32, i32, i32
  }
  func.func @transform_9(%arg0: i32, %arg1: i32) -> (i32, i32) {
    %c0_i32 = arith.constant 0 : i32
    %c0_i32_0 = arith.constant 0 : i32
    %c0_i32_1 = arith.constant 0 : i32
    return %c0_i32, %c0_i32_0 : i32, i32
  }
  func.func @transform_10(%arg0: i32, %arg1: i32) -> (i32, i32, i32) {
    %c0_i32 = arith.constant 0 : i32
    %c0_i32_0 = arith.constant 0 : i32
    %c0_i32_1 = arith.constant 0 : i32
    return %arg1, %c0_i32, %c0_i32_0 : i32, i32, i32
  }
  func.func @transform_11(%arg0: i32, %arg1: i32) -> (i32, i32) {
    %c0_i32 = arith.constant 0 : i32
    %c0_i32_0 = arith.constant 0 : i32
    %c0_i32_1 = arith.constant 0 : i32
    return %c0_i32, %c0_i32_0 : i32, i32
  }
  func.func @transform_12(%arg0: i32, %arg1: i32) -> (i32, i32, i32) {
    %c0_i32 = arith.constant 0 : i32
    %c0_i32_0 = arith.constant 0 : i32
    %c0_i32_1 = arith.constant 0 : i32
    return %arg1, %c0_i32, %c0_i32_0 : i32, i32, i32
  }
  func.func @transform_13(%arg0: i32, %arg1: i32) -> (i32, i32) {
    %c0_i32 = arith.constant 0 : i32
    %c0_i32_0 = arith.constant 0 : i32
    %c0_i32_1 = arith.constant 0 : i32
    return %c0_i32, %c0_i32_0 : i32, i32
  }
  func.func @transform_14(%arg0: i32, %arg1: i32) -> (i32, i32) {
    %c0_i32 = arith.constant 0 : i32
    %c0_i32_0 = arith.constant 0 : i32
    %c0_i32_1 = arith.constant 0 : i32
    return %c0_i32, %c0_i32_0 : i32, i32
  }
  func.func @transform_15(%arg0: i32, %arg1: i32) -> (i32, i32) {
    %c0_i32 = arith.constant 0 : i32
    %c0_i32_0 = arith.constant 0 : i32
    %c0_i32_1 = arith.constant 0 : i32
    return %c0_i32, %c0_i32_0 : i32, i32
  }
  func.func @transform_16(%arg0: i32, %arg1: i32) -> (i32, i32, i32) {
    %c0_i32 = arith.constant 0 : i32
    %c0_i32_0 = arith.constant 0 : i32
    %c0_i32_1 = arith.constant 0 : i32
    return %arg1, %c0_i32, %c0_i32_0 : i32, i32, i32
  }
  func.func @transform_17(%arg0: i32, %arg1: i32) -> (i32, i32) {
    %c0_i32 = arith.constant 0 : i32
    %c0_i32_0 = arith.constant 0 : i32
    %c0_i32_1 = arith.constant 0 : i32
    return %c0_i32, %c0_i32_0 : i32, i32
  }
  func.func @transform_18(%arg0: i32, %arg1: i32) -> (i32, i32, i32) {
    %c0_i32 = arith.constant 0 : i32
    %c0_i32_0 = arith.constant 0 : i32
    %c0_i32_1 = arith.constant 0 : i32
    return %arg1, %c0_i32, %c0_i32_0 : i32, i32, i32
  }
  func.func @transform_19(%arg0: i32, %arg1: i32) -> (i32, i32) {
    %c0_i32 = arith.constant 0 : i32
    %c0_i32_0 = arith.constant 0 : i32
    %c0_i32_1 = arith.constant 0 : i32
    return %c0_i32, %c0_i32_0 : i32, i32
  }
  func.func @transform_20(%arg0: i32, %arg1: i32) -> (i32, i32) {
    %c0_i32 = arith.constant 0 : i32
    %c0_i32_0 = arith.constant 0 : i32
    %c0_i32_1 = arith.constant 0 : i32
    return %c0_i32, %c0_i32_0 : i32, i32
  }
  func.func @transform_21(%arg0: i32, %arg1: i32) -> (i32, i32) {
    %c0_i32 = arith.constant 0 : i32
    %c0_i32_0 = arith.constant 0 : i32
    %c0_i32_1 = arith.constant 0 : i32
    return %c0_i32, %c0_i32_0 : i32, i32
  }
  func.func @transform_22(%arg0: i32, %arg1: i32) -> (i32, i32, i32) {
    %c0_i32 = arith.constant 0 : i32
    %c0_i32_0 = arith.constant 0 : i32
    %c0_i32_1 = arith.constant 0 : i32
    return %arg0, %c0_i32, %c0_i32_0 : i32, i32, i32
  }
}

</mosaic_0001>

<llo_original>
// kernel: transformer_forward.3
$region0: #{transformer_forward.3}
  #allocation0 [shape = 'u32[]', space=smem, size = 0x4, offset = 0x4, fixed_abs, tag = 'smem constant byte address 0x4 - core index']
  #allocation1 [shape = 'u32[72,128]{1,0:T(1,128)}', space=vmem, size = 0x9000, scoped, tag = 'internal scratch']
  %s0 = inlined_call_operand.hbm [shape: f32[2,8,32], index: 0, kind: input, shape index: {}]
  %s1 = inlined_call_operand.vmem [shape: f32[2,8,32], index: 1, kind: input, shape index: {}]
  %s2 = inlined_call_operand.vmem [shape: bf16[2,32,96], index: 2, kind: input, shape index: {}]
  %s3 = inlined_call_operand.vmem [shape: f32[2,96], index: 3, kind: input, shape index: {}]
  %s4 = inlined_call_operand.vmem [shape: bf16[2,32,32], index: 4, kind: input, shape index: {}]
  %s5 = inlined_call_operand.vmem [shape: f32[2,32], index: 5, kind: input, shape index: {}]
  %s6 = inlined_call_operand.vmem [shape: f32[2,32], index: 6, kind: input, shape index: {}]
  %s7 = inlined_call_operand.vmem [shape: f32[2,32], index: 7, kind: input, shape index: {}]
  %s8 = inlined_call_operand.vmem [shape: bf16[2,32,32], index: 8, kind: input, shape index: {}]
  %s9 = inlined_call_operand.vmem [shape: f32[2,32], index: 9, kind: input, shape index: {}]
  %s10 = inlined_call_operand.vmem [shape: bf16[2,32,64], index: 10, kind: input, shape index: {}]
  %s11 = inlined_call_operand.vmem [shape: f32[2,64], index: 11, kind: input, shape index: {}]
  %s12 = inlined_call_operand.vmem [shape: bf16[2,32,32], index: 12, kind: input, shape index: {}]
  %s13 = inlined_call_operand.hbm [shape: f32[2,32], index: 13, kind: input, shape index: {}]
  %s14 = inlined_call_operand.hbm [shape: f32[2,32], index: 14, kind: input, shape index: {}]
  %s15 = inlined_call_operand.hbm [shape: f32[2,32], index: 15, kind: input, shape index: {}]
  %s16 = inlined_call_operand.vmem [shape: bf16[2,32,64], index: 16, kind: input, shape index: {}]
  %s17 = inlined_call_operand.hbm [shape: f32[2,64], index: 17, kind: input, shape index: {}]
  %s18 = inlined_call_operand.vmem [shape: bf16[2,64,32], index: 18, kind: input, shape index: {}]
  %s19 = inlined_call_operand.hbm [shape: f32[2,32], index: 19, kind: input, shape index: {}]
  %s20 = inlined_call_operand.hbm [shape: f32[2,32], index: 20, kind: input, shape index: {}]
  %s21 = inlined_call_operand.hbm [shape: f32[2,32], index: 21, kind: input, shape index: {}]
  %s22 = inlined_call_operand.hbm [shape: f32[2,8,32], index: 22, kind: output, shape index: {}]
  %s23 = sld [smem:[#allocation0]]
  $region157: #{transformer_forward.3} parent=0
    _
  %s25 = ssub.s32 1, %s23
  %s26 = scalar_select 0, %s25, %s23
  $region1: #{transformer_forward.3} parent=0
    #allocation2 [shape = 'u8[8192]{0}', space=vmem, size = 0x2000, scoped, tag = 'input window, operand 0, single buffered']
    #allocation3 [shape = 's32[2]{0}', space=sflag, size = 0x8, scoped, tag = 'scoped memory for transformer_forward.3']
    #allocation4 [shape = 's32[2]{0}', space=sflag, size = 0x8, scoped, tag = 'scoped memory for transformer_forward.3']
    #allocation5 [shape = 'u8[1024]{0}', space=vmem, size = 0x400, scoped, tag = 'input window, operand 13, single buffered']
    #allocation6 [shape = 's32[1]{0}', space=sflag, size = 0x4, scoped, tag = 'scoped memory for transformer_forward.3']
    #allocation7 [shape = 'u8[1024]{0}', space=vmem, size = 0x400, scoped, tag = 'input window, operand 14, single buffered']
    #allocation8 [shape = 'u8[1024]{0}', space=vmem, size = 0x400, scoped, tag = 'input window, operand 15, single buffered']
    #allocation9 [shape = 's32[1]{0}', space=sflag, size = 0x4, scoped, tag = 'scoped memory for transformer_forward.3']
    #allocation10 [shape = 'u8[1024]{0}', space=vmem, size = 0x400, scoped, tag = 'input window, operand 17, single buffered']
    #allocation11 [shape = 'u8[1024]{0}', space=vmem, size = 0x400, scoped, tag = 'input window, operand 19, single buffered']
    #allocation12 [shape = 's32[1]{0}', space=sflag, size = 0x4, scoped, tag = 'scoped memory for transformer_forward.3']
    #allocation13 [shape = 'u8[1024]{0}', space=vmem, size = 0x400, scoped, tag = 'input window, operand 20, single buffered']
    #allocation14 [shape = 'u8[1024]{0}', space=vmem, size = 0x400, scoped, tag = 'input window, operand 21, single buffered']
    #allocation15 [shape = 's32[1]{0}', space=sflag, size = 0x4, scoped, tag = 'scoped memory for transformer_forward.3']
    #allocation16 [shape = 'u8[8192]{0}', space=vmem, size = 0x2000, scoped, tag = 'output window, operand 0, single buffered']
    %27 = vsyncpa [#allocation3], 0
    %28 = vsyncpa [#allocation6], 0
    %29 = vsyncpa [#allocation9], 0
    %30 = vsyncpa [#allocation12], 0
    %31 = vsyncpa [#allocation15], 0
    %32 = vsyncpa [#allocation4], 0
    loop: start=0, step=1, limit=4
    $region2: #{transformer_forward.3} parent=1 // loop_pre_header
      _
    $region3: #{transformer_forward.3} parent=1 // loop_header
      %s34 = sphi 0, %s38
      %p35 = scmp.ge.s32.totalorder %s34, 4
      %s41 = sphi 0, %s53
      %s42 = sphi 0, %s49
      %s43 = sphi 0, %s41
      %s44 = sphi 0, %s42
      %s45 = sphi 0, %s43
      %s46 = sphi 0, %s44
      %s56 = sphi 0, %s58
      %s59 = sphi 0, %s56
      %s60 = sphi 0, %s59
      %s76 = sphi 0, %s60
      %s82 = sphi 0, %s84
      %s85 = sphi 0, %s82
      %s86 = sphi 0, %s85
      %s102 = sphi 0, %s86
      %s108 = sphi 0, %s110
      %s111 = sphi 0, %s108
      %s112 = sphi 0, %s111
      %s128 = sphi 0, %s112
      %s132 = sphi 0, %s132
      %s134 = sphi 0, %s132
      %s135 = sphi 0, %s134
      %s149 = sphi 0, %s135
      %s155 = sphi 0, %s157
      %s158 = sphi 0, %s155
      %s159 = sphi 0, %s158
      %s175 = sphi 0, %s159
      %s179 = sphi 0, %s179
      %s181 = sphi 0, %s179
      %s182 = sphi 0, %s181
      %s196 = sphi 0, %s182
      %s200 = sphi 0, %s200
      %s202 = sphi 0, %s200
      %s203 = sphi 0, %s202
      %s217 = sphi 0, %s203
      %s221 = sphi 0, %s221
      %s223 = sphi 0, %s221
      %s224 = sphi 0, %s223
      %s238 = sphi 0, %s224
      %s244 = sphi 0, %s246
      %s247 = sphi 0, %s244
      %s248 = sphi 0, %s247
      %s264 = sphi 0, %s248
      %s268 = sphi 0, %s268
      %s270 = sphi 0, %s268
      %s271 = sphi 0, %s270
      %s285 = sphi 0, %s271
      %s291 = sphi 0, %s293
      %s294 = sphi 0, %s291
      %s295 = sphi 0, %s294
      %s311 = sphi 0, %s295
      %s315 = sphi 0, %s315
      %s317 = sphi 0, %s315
      %s318 = sphi 0, %s317
      %s332 = sphi 0, %s318
      %s338 = sphi 0, %s340
      %s341 = sphi 0, %s338
      %s342 = sphi 0, %s341
      %s358 = sphi 0, %s342
      %s362 = sphi 0, %s362
      %s364 = sphi 0, %s362
      %s365 = sphi 0, %s364
      %s379 = sphi 0, %s365
      %s383 = sphi 0, %s383
      %s385 = sphi 0, %s383
      %s386 = sphi 0, %s385
      %s400 = sphi 0, %s386
      %s404 = sphi 0, %s404
      %s406 = sphi 0, %s404
      %s407 = sphi 0, %s406
      %s421 = sphi 0, %s407
      %s427 = sphi 0, %s429
      %s430 = sphi 0, %s427
      %s431 = sphi 0, %s430
      %s447 = sphi 0, %s431
      %s451 = sphi 0, %s451
      %s453 = sphi 0, %s451
      %s454 = sphi 0, %s453
      %s468 = sphi 0, %s454
      %s474 = sphi 0, %s476
      %s477 = sphi 0, %s474
      %s478 = sphi 0, %s477
      %s494 = sphi 0, %s478
      %s498 = sphi 0, %s498
      %s500 = sphi 0, %s498
      %s501 = sphi 0, %s500
      %s515 = sphi 0, %s501
      %s519 = sphi 0, %s519
      %s521 = sphi 0, %s519
      %s522 = sphi 0, %s521
      %s536 = sphi 0, %s522
      %s540 = sphi 0, %s540
      %s542 = sphi 0, %s540
      %s543 = sphi 0, %s542
      %s557 = sphi 0, %s543
      %s563 = sphi 0, %s565
      %s566 = sphi 0, %s563
      %s567 = sphi 0, %s566
      %s583 = sphi 0, %s567
    $region4: #{transformer_forward.3} parent=1 // loop_header_branch
      %37 = sbr.rel (%p35) target = $region8
    $region5: #{transformer_forward.3} parent=1 // loop_body
      %s39 = ssub.s32 %s34, 1
      %s40 = ssub.s32 %s34, 2
      %s47 = sadd.s32 1, %s42
      %p48 = scmp.ge.s32.totalorder %s47, 2
      %s49 = scalar_select %p48, 0, %s47
      %s50 = sadd.s32 1, %s41
      %s51 = scalar_select %p48, %s50, %s41
      %p52 = scmp.ge.s32.totalorder %s51, 1
      %s53 = scalar_select %p52, 0, %s51
      %s54 = ssub.s32 %s41, %s53
      %p55 = scmp.eq.s32.totalorder %s54, 0
      %s57 = sadd.s32 %s56, 1
      %s58 = scalar_select %p55, %s56, %s57
      %p61 = pneg %p55
      %p62 = scmp.eq.s32.totalorder %s34, 1
      %p63 = por %p61, %p62
      %p64 = scmp.ne.s32.totalorder %s56, %s59
      %p65 = scmp.eq.s32.totalorder %s34, 0
      %p66 = por %p64, %p65
      %p67 = scmp.ne.s32.totalorder %s56, %s59
      %p68 = scmp.eq.s32.totalorder %s39, 1
      %p69 = por %p67, %p68
      %p70 = scmp.ne.s32.totalorder %s59, %s60
      %p71 = scmp.eq.s32.totalorder %s39, 0
      %p72 = por %p70, %p71
      %p73 = scmp.ne.s32.totalorder %s59, %s60
      %p74 = scmp.eq.s32.totalorder %s40, 1
      %p75 = por %p73, %p74
      %p77 = scmp.ne.s32.totalorder %s60, %s76
      %p78 = scmp.eq.s32.totalorder %s40, 0
      %p79 = por %p77, %p78
      %s80 = ssub.s32 %s41, %s53
      %p81 = scmp.eq.s32.totalorder %s80, 0
      %s83 = sadd.s32 %s82, 1
      %s84 = scalar_select %p81, %s82, %s83
      %p87 = pneg %p81
      %p88 = scmp.eq.s32.totalorder %s34, 1
      %p89 = por %p87, %p88
      %p90 = scmp.ne.s32.totalorder %s82, %s85
      %p91 = scmp.eq.s32.totalorder %s34, 0
      %p92 = por %p90, %p91
      %p93 = scmp.ne.s32.totalorder %s82, %s85
      %p94 = scmp.eq.s32.totalorder %s39, 1
      %p95 = por %p93, %p94
      %p96 = scmp.ne.s32.totalorder %s85, %s86
      %p97 = scmp.eq.s32.totalorder %s39, 0
      %p98 = por %p96, %p97
      %p99 = scmp.ne.s32.totalorder %s85, %s86
      %p100 = scmp.eq.s32.totalorder %s40, 1
      %p101 = por %p99, %p100
      %p103 = scmp.ne.s32.totalorder %s86, %s102
      %p104 = scmp.eq.s32.totalorder %s40, 0
      %p105 = por %p103, %p104
      %s106 = ssub.s32 %s42, %s49
      %p107 = scmp.eq.s32.totalorder %s106, 0
      %s109 = sadd.s32 %s108, 1
      %s110 = scalar_select %p107, %s108, %s109
      %p113 = pneg %p107
      %p114 = scmp.eq.s32.totalorder %s34, 1
      %p115 = por %p113, %p114
      %p116 = scmp.ne.s32.totalorder %s108, %s111
      %p117 = scmp.eq.s32.totalorder %s34, 0
      %p118 = por %p116, %p117
      %p119 = scmp.ne.s32.totalorder %s108, %s111
      %p120 = scmp.eq.s32.totalorder %s39, 1
      %p121 = por %p119, %p120
      %p122 = scmp.ne.s32.totalorder %s111, %s112
      %p123 = scmp.eq.s32.totalorder %s39, 0
      %p124 = por %p122, %p123
      %p125 = scmp.ne.s32.totalorder %s111, %s112
      %p126 = scmp.eq.s32.totalorder %s40, 1
      %p127 = por %p125, %p126
      %p129 = scmp.ne.s32.totalorder %s112, %s128
      %p130 = scmp.eq.s32.totalorder %s40, 0
      %p131 = por %p129, %p130
      %s133 = sadd.s32 %s132, 1
      %p136 = scmp.eq.s32.totalorder %s34, 1
      %p137 = scmp.ne.s32.totalorder %s132, %s134
      %p138 = scmp.eq.s32.totalorder %s34, 0
      %p139 = por %p137, %p138
      %p140 = scmp.ne.s32.totalorder %s132, %s134
      %p141 = scmp.eq.s32.totalorder %s39, 1
      %p142 = por %p140, %p141
      %p143 = scmp.ne.s32.totalorder %s134, %s135
      %p144 = scmp.eq.s32.totalorder %s39, 0
      %p145 = por %p143, %p144
      %p146 = scmp.ne.s32.totalorder %s134, %s135
      %p147 = scmp.eq.s32.totalorder %s40, 1
      %p148 = por %p146, %p147
      %p150 = scmp.ne.s32.totalorder %s135, %s149
      %p151 = scmp.eq.s32.totalorder %s40, 0
      %p152 = por %p150, %p151
      %s153 = ssub.s32 %s42, %s49
      %p154 = scmp.eq.s32.totalorder %s153, 0
      %s156 = sadd.s32 %s155, 1
      %s157 = scalar_select %p154, %s155, %s156
      %p160 = pneg %p154
      %p161 = scmp.eq.s32.totalorder %s34, 1
      %p162 = por %p160, %p161
      %p163 = scmp.ne.s32.totalorder %s155, %s158
      %p164 = scmp.eq.s32.totalorder %s34, 0
      %p165 = por %p163, %p164
      %p166 = scmp.ne.s32.totalorder %s155, %s158
      %p167 = scmp.eq.s32.totalorder %s39, 1
      %p168 = por %p166, %p167
      %p169 = scmp.ne.s32.totalorder %s158, %s159
      %p170 = scmp.eq.s32.totalorder %s39, 0
      %p171 = por %p169, %p170
      %p172 = scmp.ne.s32.totalorder %s158, %s159
      %p173 = scmp.eq.s32.totalorder %s40, 1
      %p174 = por %p172, %p173
      %p176 = scmp.ne.s32.totalorder %s159, %s175
      %p177 = scmp.eq.s32.totalorder %s40, 0
      %p178 = por %p176, %p177
      %s180 = sadd.s32 %s179, 1
      %p183 = scmp.eq.s32.totalorder %s34, 1
      %p184 = scmp.ne.s32.totalorder %s179, %s181
      %p185 = scmp.eq.s32.totalorder %s34, 0
      %p186 = por %p184, %p185
      %p187 = scmp.ne.s32.totalorder %s179, %s181
      %p188 = scmp.eq.s32.totalorder %s39, 1
      %p189 = por %p187, %p188
      %p190 = scmp.ne.s32.totalorder %s181, %s182
      %p191 = scmp.eq.s32.totalorder %s39, 0
      %p192 = por %p190, %p191
      %p193 = scmp.ne.s32.totalorder %s181, %s182
      %p194 = scmp.eq.s32.totalorder %s40, 1
      %p195 = por %p193, %p194
      %p197 = scmp.ne.s32.totalorder %s182, %s196
      %p198 = scmp.eq.s32.totalorder %s40, 0
      %p199 = por %p197, %p198
      %s201 = sadd.s32 %s200, 1
      %p204 = scmp.eq.s32.totalorder %s34, 1
      %p205 = scmp.ne.s32.totalorder %s200, %s202
      %p206 = scmp.eq.s32.totalorder %s34, 0
      %p207 = por %p205, %p206
      %p208 = scmp.ne.s32.totalorder %s200, %s202
      %p209 = scmp.eq.s32.totalorder %s39, 1
      %p210 = por %p208, %p209
      %p211 = scmp.ne.s32.totalorder %s202, %s203
      %p212 = scmp.eq.s32.totalorder %s39, 0
      %p213 = por %p211, %p212
      %p214 = scmp.ne.s32.totalorder %s202, %s203
      %p215 = scmp.eq.s32.totalorder %s40, 1
      %p216 = por %p214, %p215
      %p218 = scmp.ne.s32.totalorder %s203, %s217
      %p219 = scmp.eq.s32.totalorder %s40, 0
      %p220 = por %p218, %p219
      %s222 = sadd.s32 %s221, 1
      %p225 = scmp.eq.s32.totalorder %s34, 1
      %p226 = scmp.ne.s32.totalorder %s221, %s223
      %p227 = scmp.eq.s32.totalorder %s34, 0
      %p228 = por %p226, %p227
      %p229 = scmp.ne.s32.totalorder %s221, %s223
      %p230 = scmp.eq.s32.totalorder %s39, 1
      %p231 = por %p229, %p230
      %p232 = scmp.ne.s32.totalorder %s223, %s224
      %p233 = scmp.eq.s32.totalorder %s39, 0
      %p234 = por %p232, %p233
      %p235 = scmp.ne.s32.totalorder %s223, %s224
      %p236 = scmp.eq.s32.totalorder %s40, 1
      %p237 = por %p235, %p236
      %p239 = scmp.ne.s32.totalorder %s224, %s238
      %p240 = scmp.eq.s32.totalorder %s40, 0
      %p241 = por %p239, %p240
      %s242 = ssub.s32 %s42, %s49
      %p243 = scmp.eq.s32.totalorder %s242, 0
      %s245 = sadd.s32 %s244, 1
      %s246 = scalar_select %p243, %s244, %s245
      %p249 = pneg %p243
      %p250 = scmp.eq.s32.totalorder %s34, 1
      %p251 = por %p249, %p250
      %p252 = scmp.ne.s32.totalorder %s244, %s247
      %p253 = scmp.eq.s32.totalorder %s34, 0
      %p254 = por %p252, %p253
      %p255 = scmp.ne.s32.totalorder %s244, %s247
      %p256 = scmp.eq.s32.totalorder %s39, 1
      %p257 = por %p255, %p256
      %p258 = scmp.ne.s32.totalorder %s247, %s248
      %p259 = scmp.eq.s32.totalorder %s39, 0
      %p260 = por %p258, %p259
      %p261 = scmp.ne.s32.totalorder %s247, %s248
      %p262 = scmp.eq.s32.totalorder %s40, 1
      %p263 = por %p261, %p262
      %p265 = scmp.ne.s32.totalorder %s248, %s264
      %p266 = scmp.eq.s32.totalorder %s40, 0
      %p267 = por %p265, %p266
      %s269 = sadd.s32 %s268, 1
      %p272 = scmp.eq.s32.totalorder %s34, 1
      %p273 = scmp.ne.s32.totalorder %s268, %s270
      %p274 = scmp.eq.s32.totalorder %s34, 0
      %p275 = por %p273, %p274
      %p276 = scmp.ne.s32.totalorder %s268, %s270
      %p277 = scmp.eq.s32.totalorder %s39, 1
      %p278 = por %p276, %p277
      %p279 = scmp.ne.s32.totalorder %s270, %s271
      %p280 = scmp.eq.s32.totalorder %s39, 0
      %p281 = por %p279, %p280
      %p282 = scmp.ne.s32.totalorder %s270, %s271
      %p283 = scmp.eq.s32.totalorder %s40, 1
      %p284 = por %p282, %p283
      %p286 = scmp.ne.s32.totalorder %s271, %s285
      %p287 = scmp.eq.s32.totalorder %s40, 0
      %p288 = por %p286, %p287
      %s289 = ssub.s32 %s42, %s49
      %p290 = scmp.eq.s32.totalorder %s289, 0
      %s292 = sadd.s32 %s291, 1
      %s293 = scalar_select %p290, %s291, %s292
      %p296 = pneg %p290
      %p297 = scmp.eq.s32.totalorder %s34, 1
      %p298 = por %p296, %p297
      %p299 = scmp.ne.s32.totalorder %s291, %s294
      %p300 = scmp.eq.s32.totalorder %s34, 0
      %p301 = por %p299, %p300
      %p302 = scmp.ne.s32.totalorder %s291, %s294
      %p303 = scmp.eq.s32.totalorder %s39, 1
      %p304 = por %p302, %p303
      %p305 = scmp.ne.s32.totalorder %s294, %s295
      %p306 = scmp.eq.s32.totalorder %s39, 0
      %p307 = por %p305, %p306
      %p308 = scmp.ne.s32.totalorder %s294, %s295
      %p309 = scmp.eq.s32.totalorder %s40, 1
      %p310 = por %p308, %p309
      %p312 = scmp.ne.s32.totalorder %s295, %s311
      %p313 = scmp.eq.s32.totalorder %s40, 0
      %p314 = por %p312, %p313
      %s316 = sadd.s32 %s315, 1
      %p319 = scmp.eq.s32.totalorder %s34, 1
      %p320 = scmp.ne.s32.totalorder %s315, %s317
      %p321 = scmp.eq.s32.totalorder %s34, 0
      %p322 = por %p320, %p321
      %p323 = scmp.ne.s32.totalorder %s315, %s317
      %p324 = scmp.eq.s32.totalorder %s39, 1
      %p325 = por %p323, %p324
      %p326 = scmp.ne.s32.totalorder %s317, %s318
      %p327 = scmp.eq.s32.totalorder %s39, 0
      %p328 = por %p326, %p327
      %p329 = scmp.ne.s32.totalorder %s317, %s318
      %p330 = scmp.eq.s32.totalorder %s40, 1
      %p331 = por %p329, %p330
      %p333 = scmp.ne.s32.totalorder %s318, %s332
      %p334 = scmp.eq.s32.totalorder %s40, 0
      %p335 = por %p333, %p334
      %s336 = ssub.s32 %s42, %s49
      %p337 = scmp.eq.s32.totalorder %s336, 0
      %s339 = sadd.s32 %s338, 1
      %s340 = scalar_select %p337, %s338, %s339
      %p343 = pneg %p337
      %p344 = scmp.eq.s32.totalorder %s34, 1
      %p345 = por %p343, %p344
      %p346 = scmp.ne.s32.totalorder %s338, %s341
      %p347 = scmp.eq.s32.totalorder %s34, 0
      %p348 = por %p346, %p347
      %p349 = scmp.ne.s32.totalorder %s338, %s341
      %p350 = scmp.eq.s32.totalorder %s39, 1
      %p351 = por %p349, %p350
      %p352 = scmp.ne.s32.totalorder %s341, %s342
      %p353 = scmp.eq.s32.totalorder %s39, 0
      %p354 = por %p352, %p353
      %p355 = scmp.ne.s32.totalorder %s341, %s342
      %p356 = scmp.eq.s32.totalorder %s40, 1
      %p357 = por %p355, %p356
      %p359 = scmp.ne.s32.totalorder %s342, %s358
      %p360 = scmp.eq.s32.totalorder %s40, 0
      %p361 = por %p359, %p360
      %s363 = sadd.s32 %s362, 1
      %p366 = scmp.eq.s32.totalorder %s34, 1
      %p367 = scmp.ne.s32.totalorder %s362, %s364
      %p368 = scmp.eq.s32.totalorder %s34, 0
      %p369 = por %p367, %p368
      %p370 = scmp.ne.s32.totalorder %s362, %s364
      %p371 = scmp.eq.s32.totalorder %s39, 1
      %p372 = por %p370, %p371
      %p373 = scmp.ne.s32.totalorder %s364, %s365
      %p374 = scmp.eq.s32.totalorder %s39, 0
      %p375 = por %p373, %p374
      %p376 = scmp.ne.s32.totalorder %s364, %s365
      %p377 = scmp.eq.s32.totalorder %s40, 1
      %p378 = por %p376, %p377
      %p380 = scmp.ne.s32.totalorder %s365, %s379
      %p381 = scmp.eq.s32.totalorder %s40, 0
      %p382 = por %p380, %p381
      %s384 = sadd.s32 %s383, 1
      %p387 = scmp.eq.s32.totalorder %s34, 1
      %p388 = scmp.ne.s32.totalorder %s383, %s385
      %p389 = scmp.eq.s32.totalorder %s34, 0
      %p390 = por %p388, %p389
      %p391 = scmp.ne.s32.totalorder %s383, %s385
      %p392 = scmp.eq.s32.totalorder %s39, 1
      %p393 = por %p391, %p392
      %p394 = scmp.ne.s32.totalorder %s385, %s386
      %p395 = scmp.eq.s32.totalorder %s39, 0
      %p396 = por %p394, %p395
      %p397 = scmp.ne.s32.totalorder %s385, %s386
      %p398 = scmp.eq.s32.totalorder %s40, 1
      %p399 = por %p397, %p398
      %p401 = scmp.ne.s32.totalorder %s386, %s400
      %p402 = scmp.eq.s32.totalorder %s40, 0
      %p403 = por %p401, %p402
      %s405 = sadd.s32 %s404, 1
      %p408 = scmp.eq.s32.totalorder %s34, 1
      %p409 = scmp.ne.s32.totalorder %s404, %s406
      %p410 = scmp.eq.s32.totalorder %s34, 0
      %p411 = por %p409, %p410
      %p412 = scmp.ne.s32.totalorder %s404, %s406
      %p413 = scmp.eq.s32.totalorder %s39, 1
      %p414 = por %p412, %p413
      %p415 = scmp.ne.s32.totalorder %s406, %s407
      %p416 = scmp.eq.s32.totalorder %s39, 0
      %p417 = por %p415, %p416
      %p418 = scmp.ne.s32.totalorder %s406, %s407
      %p419 = scmp.eq.s32.totalorder %s40, 1
      %p420 = por %p418, %p419
      %p422 = scmp.ne.s32.totalorder %s407, %s421
      %p423 = scmp.eq.s32.totalorder %s40, 0
      %p424 = por %p422, %p423
      %s425 = ssub.s32 %s42, %s49
      %p426 = scmp.eq.s32.totalorder %s425, 0
      %s428 = sadd.s32 %s427, 1
      %s429 = scalar_select %p426, %s427, %s428
      %p432 = pneg %p426
      %p433 = scmp.eq.s32.totalorder %s34, 1
      %p434 = por %p432, %p433
      %p435 = scmp.ne.s32.totalorder %s427, %s430
      %p436 = scmp.eq.s32.totalorder %s34, 0
      %p437 = por %p435, %p436
      %p438 = scmp.ne.s32.totalorder %s427, %s430
      %p439 = scmp.eq.s32.totalorder %s39, 1
      %p440 = por %p438, %p439
      %p441 = scmp.ne.s32.totalorder %s430, %s431
      %p442 = scmp.eq.s32.totalorder %s39, 0
      %p443 = por %p441, %p442
      %p444 = scmp.ne.s32.totalorder %s430, %s431
      %p445 = scmp.eq.s32.totalorder %s40, 1
      %p446 = por %p444, %p445
      %p448 = scmp.ne.s32.totalorder %s431, %s447
      %p449 = scmp.eq.s32.totalorder %s40, 0
      %p450 = por %p448, %p449
      %s452 = sadd.s32 %s451, 1
      %p455 = scmp.eq.s32.totalorder %s34, 1
      %p456 = scmp.ne.s32.totalorder %s451, %s453
      %p457 = scmp.eq.s32.totalorder %s34, 0
      %p458 = por %p456, %p457
      %p459 = scmp.ne.s32.totalorder %s451, %s453
      %p460 = scmp.eq.s32.totalorder %s39, 1
      %p461 = por %p459, %p460
      %p462 = scmp.ne.s32.totalorder %s453, %s454
      %p463 = scmp.eq.s32.totalorder %s39, 0
      %p464 = por %p462, %p463
      %p465 = scmp.ne.s32.totalorder %s453, %s454
      %p466 = scmp.eq.s32.totalorder %s40, 1
      %p467 = por %p465, %p466
      %p469 = scmp.ne.s32.totalorder %s454, %s468
      %p470 = scmp.eq.s32.totalorder %s40, 0
      %p471 = por %p469, %p470
      %s472 = ssub.s32 %s42, %s49
      %p473 = scmp.eq.s32.totalorder %s472, 0
      %s475 = sadd.s32 %s474, 1
      %s476 = scalar_select %p473, %s474, %s475
      %p479 = pneg %p473
      %p480 = scmp.eq.s32.totalorder %s34, 1
      %p481 = por %p479, %p480
      %p482 = scmp.ne.s32.totalorder %s474, %s477
      %p483 = scmp.eq.s32.totalorder %s34, 0
      %p484 = por %p482, %p483
      %p485 = scmp.ne.s32.totalorder %s474, %s477
      %p486 = scmp.eq.s32.totalorder %s39, 1
      %p487 = por %p485, %p486
      %p488 = scmp.ne.s32.totalorder %s477, %s478
      %p489 = scmp.eq.s32.totalorder %s39, 0
      %p490 = por %p488, %p489
      %p491 = scmp.ne.s32.totalorder %s477, %s478
      %p492 = scmp.eq.s32.totalorder %s40, 1
      %p493 = por %p491, %p492
      %p495 = scmp.ne.s32.totalorder %s478, %s494
      %p496 = scmp.eq.s32.totalorder %s40, 0
      %p497 = por %p495, %p496
      %s499 = sadd.s32 %s498, 1
      %p502 = scmp.eq.s32.totalorder %s34, 1
      %p503 = scmp.ne.s32.totalorder %s498, %s500
      %p504 = scmp.eq.s32.totalorder %s34, 0
      %p505 = por %p503, %p504
      %p506 = scmp.ne.s32.totalorder %s498, %s500
      %p507 = scmp.eq.s32.totalorder %s39, 1
      %p508 = por %p506, %p507
      %p509 = scmp.ne.s32.totalorder %s500, %s501
      %p510 = scmp.eq.s32.totalorder %s39, 0
      %p511 = por %p509, %p510
      %p512 = scmp.ne.s32.totalorder %s500, %s501
      %p513 = scmp.eq.s32.totalorder %s40, 1
      %p514 = por %p512, %p513
      %p516 = scmp.ne.s32.totalorder %s501, %s515
      %p517 = scmp.eq.s32.totalorder %s40, 0
      %p518 = por %p516, %p517
      %s520 = sadd.s32 %s519, 1
      %p523 = scmp.eq.s32.totalorder %s34, 1
      %p524 = scmp.ne.s32.totalorder %s519, %s521
      %p525 = scmp.eq.s32.totalorder %s34, 0
      %p526 = por %p524, %p525
      %p527 = scmp.ne.s32.totalorder %s519, %s521
      %p528 = scmp.eq.s32.totalorder %s39, 1
      %p529 = por %p527, %p528
      %p530 = scmp.ne.s32.totalorder %s521, %s522
      %p531 = scmp.eq.s32.totalorder %s39, 0
      %p532 = por %p530, %p531
      %p533 = scmp.ne.s32.totalorder %s521, %s522
      %p534 = scmp.eq.s32.totalorder %s40, 1
      %p535 = por %p533, %p534
      %p537 = scmp.ne.s32.totalorder %s522, %s536
      %p538 = scmp.eq.s32.totalorder %s40, 0
      %p539 = por %p537, %p538
      %s541 = sadd.s32 %s540, 1
      %p544 = scmp.eq.s32.totalorder %s34, 1
      %p545 = scmp.ne.s32.totalorder %s540, %s542
      %p546 = scmp.eq.s32.totalorder %s34, 0
      %p547 = por %p545, %p546
      %p548 = scmp.ne.s32.totalorder %s540, %s542
      %p549 = scmp.eq.s32.totalorder %s39, 1
      %p550 = por %p548, %p549
      %p551 = scmp.ne.s32.totalorder %s542, %s543
      %p552 = scmp.eq.s32.totalorder %s39, 0
      %p553 = por %p551, %p552
      %p554 = scmp.ne.s32.totalorder %s542, %s543
      %p555 = scmp.eq.s32.totalorder %s40, 1
      %p556 = por %p554, %p555
      %p558 = scmp.ne.s32.totalorder %s543, %s557
      %p559 = scmp.eq.s32.totalorder %s40, 0
      %p560 = por %p558, %p559
      %s561 = ssub.s32 %s41, %s53
      %p562 = scmp.eq.s32.totalorder %s561, 0
      %s564 = sadd.s32 %s563, 1
      %s565 = scalar_select %p562, %s563, %s564
      %p568 = pneg %p562
      %p569 = scmp.eq.s32.totalorder %s34, 1
      %p570 = por %p568, %p569
      %p571 = scmp.ne.s32.totalorder %s563, %s566
      %p572 = scmp.eq.s32.totalorder %s34, 0
      %p573 = por %p571, %p572
      %p574 = scmp.ne.s32.totalorder %s563, %s566
      %p575 = scmp.eq.s32.totalorder %s39, 1
      %p576 = por %p574, %p575
      %p577 = scmp.ne.s32.totalorder %s566, %s567
      %p578 = scmp.eq.s32.totalorder %s39, 0
      %p579 = por %p577, %p578
      %p580 = scmp.ne.s32.totalorder %s566, %s567
      %p581 = scmp.eq.s32.totalorder %s40, 1
      %p582 = por %p580, %p581
      %p584 = scmp.ne.s32.totalorder %s567, %s583
      %p585 = scmp.eq.s32.totalorder %s40, 0
      %p586 = por %p584, %p585
      %p587 = scmp.le.s32.totalorder 1, %s34
      %p588 = scmp.lt.s32.totalorder %s34, 3
      %p589 = pnand %p587, %p588
      %p590 = pneg %p589
      // Predicated region
      $region9: #{transformer_forward.3} parent=5 // pred_check
        _
      $region10: #{transformer_forward.3} parent=5 // pred_check_branch
        %592 = sbr.rel (%p589) target = $region12
      $region11: #{transformer_forward.3} parent=5 // pred_region
        %s593 = ssub.s32 %s34, 1
        // Predicated region
        $region13: #{transformer_forward.3} parent=11 // pred_check
          %p594 = pneg %p72
        $region14: #{transformer_forward.3} parent=11 // pred_check_branch
          %596 = sbr.rel (%p594) target = $region16
        $region15: #{transformer_forward.3} parent=11 // pred_region
          %s597 = smul.u32 2, %s43
          %599 = vsyncadd [#allocation3], 0
          %s600 = smul.addr %s597, 8
          %s601 = scalar_lea.hbm %s0, %s600
          %s602 = sshll.u32 %s601, 4
          %s603 = int_to_ptr.hbm [resolvable:$true] %s602
          %s604 = sshll.u32 [#allocation2], 4
          %s605 = int_to_ptr.vmem [resolvable:$true] %s604
          %610 = dma.hbm_to_vmem [thread:$0]  %s603, 256, %s605, [#allocation3], 128, 128, 8
        $region16: #{transformer_forward.3} parent=11 // pred_fallthru
          _
        // Predicated region
        $region17: #{transformer_forward.3} parent=11 // pred_check
          %p611 = pneg %p98
        $region18: #{transformer_forward.3} parent=11 // pred_check_branch
          %613 = sbr.rel (%p611) target = $region20
        $region19: #{transformer_forward.3} parent=11 // pred_region
          %s614 = smul.u32 2, %s43
          %p615 = scmp.lt.s32.totalorder %s614, 1
          %s616 = scalar_select %p615, %s614, 1
          %s617 = smul.addr %s616, 8
          %s618 = scalar_lea.vmem %s1, %s617
          %s619 = smul.u32 2, %s43
        $region20: #{transformer_forward.3} parent=11 // pred_fallthru
          _
        // Predicated region
        $region21: #{transformer_forward.3} parent=11 // pred_check
          %p620 = pneg %p145
        $region22: #{transformer_forward.3} parent=11 // pred_check_branch
          %622 = sbr.rel (%p620) target = $region24
        $region23: #{transformer_forward.3} parent=11 // pred_region
          _
        $region24: #{transformer_forward.3} parent=11 // pred_fallthru
          _
        // Predicated region
        $region25: #{transformer_forward.3} parent=11 // pred_check
          %p623 = pneg %p192
        $region26: #{transformer_forward.3} parent=11 // pred_check_branch
          %625 = sbr.rel (%p623) target = $region28
        $region27: #{transformer_forward.3} parent=11 // pred_region
          _
        $region28: #{transformer_forward.3} parent=11 // pred_fallthru
          _
        // Predicated region
        $region29: #{transformer_forward.3} parent=11 // pred_check
          %p626 = pneg %p213
        $region30: #{transformer_forward.3} parent=11 // pred_check_branch
          %628 = sbr.rel (%p626) target = $region32
        $region31: #{transformer_forward.3} parent=11 // pred_region
          _
        $region32: #{transformer_forward.3} parent=11 // pred_fallthru
          _
        // Predicated region
        $region33: #{transformer_forward.3} parent=11 // pred_check
          %p629 = pneg %p234
        $region34: #{transformer_forward.3} parent=11 // pred_check_branch
          %631 = sbr.rel (%p629) target = $region36
        $region35: #{transformer_forward.3} parent=11 // pred_region
          _
        $region36: #{transformer_forward.3} parent=11 // pred_fallthru
          _
        // Predicated region
        $region37: #{transformer_forward.3} parent=11 // pred_check
          %p632 = pneg %p281
        $region38: #{transformer_forward.3} parent=11 // pred_check_branch
          %634 = sbr.rel (%p632) target = $region40
        $region39: #{transformer_forward.3} parent=11 // pred_region
          _
        $region40: #{transformer_forward.3} parent=11 // pred_fallthru
          _
        // Predicated region
        $region41: #{transformer_forward.3} parent=11 // pred_check
          %p635 = pneg %p328
        $region42: #{transformer_forward.3} parent=11 // pred_check_branch
          %637 = sbr.rel (%p635) target = $region44
        $region43: #{transformer_forward.3} parent=11 // pred_region
          _
        $region44: #{transformer_forward.3} parent=11 // pred_fallthru
          _
        // Predicated region
        $region45: #{transformer_forward.3} parent=11 // pred_check
          %p638 = pneg %p375
        $region46: #{transformer_forward.3} parent=11 // pred_check_branch
          %640 = sbr.rel (%p638) target = $region48
        $region47: #{transformer_forward.3} parent=11 // pred_region
          %642 = vsyncadd [#allocation6], 0
          %s644 = sshll.u32 %s13, 4
          %s645 = int_to_ptr.hbm [resolvable:$true] %s644
          %s646 = sshll.u32 [#allocation5], 4
          %s647 = int_to_ptr.vmem [resolvable:$true] %s646
          %649 = dma.hbm_to_vmem [thread:$0]  %s645, 32, %s647, [#allocation6]
        $region48: #{transformer_forward.3} parent=11 // pred_fallthru
          _
        // Predicated region
        $region49: #{transformer_forward.3} parent=11 // pred_check
          %p650 = pneg %p396
        $region50: #{transformer_forward.3} parent=11 // pred_check_branch
          %652 = sbr.rel (%p650) target = $region52
        $region51: #{transformer_forward.3} parent=11 // pred_region
          %654 = vsyncadd [#allocation6], 0
          %s656 = sshll.u32 %s14, 4
          %s657 = int_to_ptr.hbm [resolvable:$true] %s656
          %s658 = sshll.u32 [#allocation7], 4
          %s659 = int_to_ptr.vmem [resolvable:$true] %s658
          %661 = dma.hbm_to_vmem [thread:$0]  %s657, 32, %s659, [#allocation6]
        $region52: #{transformer_forward.3} parent=11 // pred_fallthru
          _
        // Predicated region
        $region53: #{transformer_forward.3} parent=11 // pred_check
          %p662 = pneg %p417
        $region54: #{transformer_forward.3} parent=11 // pred_check_branch
          %664 = sbr.rel (%p662) target = $region56
        $region55: #{transformer_forward.3} parent=11 // pred_region
          %666 = vsyncadd [#allocation9], 0
          %s668 = sshll.u32 %s15, 4
          %s669 = int_to_ptr.hbm [resolvable:$true] %s668
          %s670 = sshll.u32 [#allocation8], 4
          %s671 = int_to_ptr.vmem [resolvable:$true] %s670
          %673 = dma.hbm_to_vmem [thread:$0]  %s669, 32, %s671, [#allocation9]
        $region56: #{transformer_forward.3} parent=11 // pred_fallthru
          _
        // Predicated region
        $region57: #{transformer_forward.3} parent=11 // pred_check
          %p674 = pneg %p464
        $region58: #{transformer_forward.3} parent=11 // pred_check_branch
          %676 = sbr.rel (%p674) target = $region60
        $region59: #{transformer_forward.3} parent=11 // pred_region
          %678 = vsyncadd [#allocation9], 0
          %s680 = sshll.u32 %s17, 4
          %s681 = int_to_ptr.hbm [resolvable:$true] %s680
          %s682 = sshll.u32 [#allocation10], 4
          %s683 = int_to_ptr.vmem [resolvable:$true] %s682
          %685 = dma.hbm_to_vmem [thread:$0]  %s681, 32, %s683, [#allocation9]
        $region60: #{transformer_forward.3} parent=11 // pred_fallthru
          _
        // Predicated region
        $region61: #{transformer_forward.3} parent=11 // pred_check
          %p686 = pneg %p511
        $region62: #{transformer_forward.3} parent=11 // pred_check_branch
          %688 = sbr.rel (%p686) target = $region64
        $region63: #{transformer_forward.3} parent=11 // pred_region
          %690 = vsyncadd [#allocation12], 0
          %s692 = sshll.u32 %s19, 4
          %s693 = int_to_ptr.hbm [resolvable:$true] %s692
          %s694 = sshll.u32 [#allocation11], 4
          %s695 = int_to_ptr.vmem [resolvable:$true] %s694
          %697 = dma.hbm_to_vmem [thread:$0]  %s693, 32, %s695, [#allocation12]
        $region64: #{transformer_forward.3} parent=11 // pred_fallthru
          _
        // Predicated region
        $region65: #{transformer_forward.3} parent=11 // pred_check
          %p698 = pneg %p532
        $region66: #{transformer_forward.3} parent=11 // pred_check_branch
          %700 = sbr.rel (%p698) target = $region68
        $region67: #{transformer_forward.3} parent=11 // pred_region
          %702 = vsyncadd [#allocation12], 0
          %s704 = sshll.u32 %s20, 4
          %s705 = int_to_ptr.hbm [resolvable:$true] %s704
          %s706 = sshll.u32 [#allocation13], 4
          %s707 = int_to_ptr.vmem [resolvable:$true] %s706
          %709 = dma.hbm_to_vmem [thread:$0]  %s705, 32, %s707, [#allocation12]
        $region68: #{transformer_forward.3} parent=11 // pred_fallthru
          _
        // Predicated region
        $region69: #{transformer_forward.3} parent=11 // pred_check
          %p710 = pneg %p553
        $region70: #{transformer_forward.3} parent=11 // pred_check_branch
          %712 = sbr.rel (%p710) target = $region72
        $region71: #{transformer_forward.3} parent=11 // pred_region
          %714 = vsyncadd [#allocation15], 0
          %s716 = sshll.u32 %s21, 4
          %s717 = int_to_ptr.hbm [resolvable:$true] %s716
          %s718 = sshll.u32 [#allocation14], 4
          %s719 = int_to_ptr.vmem [resolvable:$true] %s718
          %721 = dma.hbm_to_vmem [thread:$0]  %s717, 32, %s719, [#allocation15]
        $region72: #{transformer_forward.3} parent=11 // pred_fallthru
          _
      $region12: #{transformer_forward.3} parent=5 // pred_fallthru
        _
      %p722 = scmp.lt.s32.totalorder %s34, 2
      // Predicated region
      $region73: #{transformer_forward.3} parent=5 // pred_check
        %p723 = pneg %p722
      $region74: #{transformer_forward.3} parent=5 // pred_check_branch
        %725 = sbr.rel (%p723) target = $region76
      $region75: #{transformer_forward.3} parent=5 // pred_region
        // Predicated region
        $region77: #{transformer_forward.3} parent=75 // pred_check
          %p726 = pneg %p118
        $region78: #{transformer_forward.3} parent=75 // pred_check_branch
          %728 = sbr.rel (%p726) target = $region80
        $region79: #{transformer_forward.3} parent=75 // pred_region
          %p729 = scmp.lt.s32.totalorder %s42, 1
          %s730 = scalar_select %p729, %s42, 1
          %s731 = smul.addr %s730, 4
          %s732 = smul.addr %s731, 4
          %s733 = scalar_lea.vmem %s2, %s732
        $region80: #{transformer_forward.3} parent=75 // pred_fallthru
          _
        // Predicated region
        $region81: #{transformer_forward.3} parent=75 // pred_check
          %p734 = pneg %p165
        $region82: #{transformer_forward.3} parent=75 // pred_check_branch
          %736 = sbr.rel (%p734) target = $region84
        $region83: #{transformer_forward.3} parent=75 // pred_region
          %p737 = scmp.lt.s32.totalorder %s42, 1
          %s738 = scalar_select %p737, %s42, 1
          %s739 = smul.addr %s738, 4
          %s740 = smul.addr %s739, 4
          %s741 = scalar_lea.vmem %s4, %s740
        $region84: #{transformer_forward.3} parent=75 // pred_fallthru
          _
        // Predicated region
        $region85: #{transformer_forward.3} parent=75 // pred_check
          %p742 = pneg %p254
        $region86: #{transformer_forward.3} parent=75 // pred_check_branch
          %744 = sbr.rel (%p742) target = $region88
        $region87: #{transformer_forward.3} parent=75 // pred_region
          %p745 = scmp.lt.s32.totalorder %s42, 1
          %s746 = scalar_select %p745, %s42, 1
          %s747 = smul.addr %s746, 4
          %s748 = smul.addr %s747, 4
          %s749 = scalar_lea.vmem %s8, %s748
        $region88: #{transformer_forward.3} parent=75 // pred_fallthru
          _
        // Predicated region
        $region89: #{transformer_forward.3} parent=75 // pred_check
          %p750 = pneg %p301
        $region90: #{transformer_forward.3} parent=75 // pred_check_branch
          %752 = sbr.rel (%p750) target = $region92
        $region91: #{transformer_forward.3} parent=75 // pred_region
          %p753 = scmp.lt.s32.totalorder %s42, 1
          %s754 = scalar_select %p753, %s42, 1
          %s755 = smul.addr %s754, 4
          %s756 = smul.addr %s755, 4
          %s757 = scalar_lea.vmem %s10, %s756
        $region92: #{transformer_forward.3} parent=75 // pred_fallthru
          _
        // Predicated region
        $region93: #{transformer_forward.3} parent=75 // pred_check
          %p758 = pneg %p348
        $region94: #{transformer_forward.3} parent=75 // pred_check_branch
          %760 = sbr.rel (%p758) target = $region96
        $region95: #{transformer_forward.3} parent=75 // pred_region
          %p761 = scmp.lt.s32.totalorder %s42, 1
          %s762 = scalar_select %p761, %s42, 1
          %s763 = smul.addr %s762, 4
          %s764 = smul.addr %s763, 4
          %s765 = scalar_lea.vmem %s12, %s764
        $region96: #{transformer_forward.3} parent=75 // pred_fallthru
          _
        // Predicated region
        $region97: #{transformer_forward.3} parent=75 // pred_check
          %p766 = pneg %p437
        $region98: #{transformer_forward.3} parent=75 // pred_check_branch
          %768 = sbr.rel (%p766) target = $region100
        $region99: #{transformer_forward.3} parent=75 // pred_region
          %p769 = scmp.lt.s32.totalorder %s42, 1
          %s770 = scalar_select %p769, %s42, 1
          %s771 = smul.addr %s770, 4
          %s772 = smul.addr %s771, 4
          %s773 = scalar_lea.vmem %s16, %s772
        $region100: #{transformer_forward.3} parent=75 // pred_fallthru
          _
        // Predicated region
        $region101: #{transformer_forward.3} parent=75 // pred_check
          %p774 = pneg %p484
        $region102: #{transformer_forward.3} parent=75 // pred_check_branch
          %776 = sbr.rel (%p774) target = $region104
        $region103: #{transformer_forward.3} parent=75 // pred_region
          %p777 = scmp.lt.s32.totalorder %s42, 1
          %s778 = scalar_select %p777, %s42, 1
          %s779 = smul.addr %s778, 8
          %s780 = smul.addr %s779, 4
          %s781 = scalar_lea.vmem %s18, %s780
        $region104: #{transformer_forward.3} parent=75 // pred_fallthru
          _
      $region76: #{transformer_forward.3} parent=5 // pred_fallthru
        _
      %p782 = scmp.le.s32.totalorder 1, %s34
      %p783 = scmp.lt.s32.totalorder %s34, 3
      %p784 = pnand %p782, %p783
      %p785 = pneg %p784
      // Predicated region
      $region105: #{transformer_forward.3} parent=5 // pred_check
        _
      $region106: #{transformer_forward.3} parent=5 // pred_check_branch
        %787 = sbr.rel (%p784) target = $region108
      $region107: #{transformer_forward.3} parent=5 // pred_region
        %s788 = ssub.s32 %s34, 1
        // Predicated region
        $region109: #{transformer_forward.3} parent=107 // pred_check
          %p789 = pneg %p72
        $region110: #{transformer_forward.3} parent=107 // pred_check_branch
          %791 = sbr.rel (%p789) target = $region112
        $region111: #{transformer_forward.3} parent=107 // pred_region
          %793 = dma.done [#allocation3], 256
        $region112: #{transformer_forward.3} parent=107 // pred_fallthru
          _
        // Predicated region
        $region113: #{transformer_forward.3} parent=107 // pred_check
          %p794 = pneg %p375
        $region114: #{transformer_forward.3} parent=107 // pred_check_branch
          %796 = sbr.rel (%p794) target = $region116
        $region115: #{transformer_forward.3} parent=107 // pred_region
          %798 = dma.done [#allocation6], 32
        $region116: #{transformer_forward.3} parent=107 // pred_fallthru
          _
        // Predicated region
        $region117: #{transformer_forward.3} parent=107 // pred_check
          %p799 = pneg %p396
        $region118: #{transformer_forward.3} parent=107 // pred_check_branch
          %801 = sbr.rel (%p799) target = $region120
        $region119: #{transformer_forward.3} parent=107 // pred_region
          %803 = dma.done [#allocation6], 32
        $region120: #{transformer_forward.3} parent=107 // pred_fallthru
          _
        // Predicated region
        $region121: #{transformer_forward.3} parent=107 // pred_check
          %p804 = pneg %p417
        $region122: #{transformer_forward.3} parent=107 // pred_check_branch
          %806 = sbr.rel (%p804) target = $region124
        $region123: #{transformer_forward.3} parent=107 // pred_region
          %808 = dma.done [#allocation9], 32
        $region124: #{transformer_forward.3} parent=107 // pred_fallthru
          _
        // Predicated region
        $region125: #{transformer_forward.3} parent=107 // pred_check
          %p809 = pneg %p464
        $region126: #{transformer_forward.3} parent=107 // pred_check_branch
          %811 = sbr.rel (%p809) target = $region128
        $region127: #{transformer_forward.3} parent=107 // pred_region
          %813 = dma.done [#allocation9], 32
        $region128: #{transformer_forward.3} parent=107 // pred_fallthru
          _
        // Predicated region
        $region129: #{transformer_forward.3} parent=107 // pred_check
          %p814 = pneg %p511
        $region130: #{transformer_forward.3} parent=107 // pred_check_branch
          %816 = sbr.rel (%p814) target = $region132
        $region131: #{transformer_forward.3} parent=107 // pred_region
          %818 = dma.done [#allocation12], 32
        $region132: #{transformer_forward.3} parent=107 // pred_fallthru
          _
        // Predicated region
        $region133: #{transformer_forward.3} parent=107 // pred_check
          %p819 = pneg %p532
        $region134: #{transformer_forward.3} parent=107 // pred_check_branch
          %821 = sbr.rel (%p819) target = $region136
        $region135: #{transformer_forward.3} parent=107 // pred_region
          %823 = dma.done [#allocation12], 32
        $region136: #{transformer_forward.3} parent=107 // pred_fallthru
          _
        // Predicated region
        $region137: #{transformer_forward.3} parent=107 // pred_check
          %p824 = pneg %p553
        $region138: #{transformer_forward.3} parent=107 // pred_check_branch
          %826 = sbr.rel (%p824) target = $region140
        $region139: #{transformer_forward.3} parent=107 // pred_region
          %828 = dma.done [#allocation15], 32
        $region140: #{transformer_forward.3} parent=107 // pred_fallthru
          _
        %p829 = pneg %p72
        %p830 = pneg %p69
        %s831 = smul.u32 2, %s43
        %p832 = scmp.lt.s32.totalorder %s831, 1
        %s833 = scalar_select %p832, %s831, 1
        %s834 = smul.addr %s833, 8
        %s835 = scalar_lea.vmem %s1, %s834
        %p836 = pneg %p98
        %p837 = pneg %p95
        %p838 = scmp.lt.s32.totalorder %s44, 1
        %s839 = scalar_select %p838, %s44, 1
        %s840 = smul.addr %s839, 4
        %s841 = smul.addr %s840, 4
        %s842 = scalar_lea.vmem %s2, %s841
        %p843 = pneg %p124
        %p844 = pneg %p121
        %p845 = pneg %p145
        %p846 = pneg %p142
        %p847 = scmp.lt.s32.totalorder %s44, 1
        %s848 = scalar_select %p847, %s44, 1
        %s849 = smul.addr %s848, 4
        %s850 = smul.addr %s849, 4
        %s851 = scalar_lea.vmem %s4, %s850
        %p852 = pneg %p171
        %p853 = pneg %p168
        %p854 = pneg %p192
        %p855 = pneg %p189
        %p856 = pneg %p213
        %p857 = pneg %p210
        %p858 = pneg %p234
        %p859 = pneg %p231
        %p860 = scmp.lt.s32.totalorder %s44, 1
        %s861 = scalar_select %p860, %s44, 1
        %s862 = smul.addr %s861, 4
        %s863 = smul.addr %s862, 4
        %s864 = scalar_lea.vmem %s8, %s863
        %p865 = pneg %p260
        %p866 = pneg %p257
        %p867 = pneg %p281
        %p868 = pneg %p278
        %p869 = scmp.lt.s32.totalorder %s44, 1
        %s870 = scalar_select %p869, %s44, 1
        %s871 = smul.addr %s870, 4
        %s872 = smul.addr %s871, 4
        %s873 = scalar_lea.vmem %s10, %s872
        %p874 = pneg %p307
        %p875 = pneg %p304
        %p876 = pneg %p328
        %p877 = pneg %p325
        %p878 = scmp.lt.s32.totalorder %s44, 1
        %s879 = scalar_select %p878, %s44, 1
        %s880 = smul.addr %s879, 4
        %s881 = smul.addr %s880, 4
        %s882 = scalar_lea.vmem %s12, %s881
        %p883 = pneg %p354
        %p884 = pneg %p351
        %p885 = pneg %p375
        %p886 = pneg %p372
        %p887 = pneg %p396
        %p888 = pneg %p393
        %p889 = pneg %p417
        %p890 = pneg %p414
        %p891 = scmp.lt.s32.totalorder %s44, 1
        %s892 = scalar_select %p891, %s44, 1
        %s893 = smul.addr %s892, 4
        %s894 = smul.addr %s893, 4
        %s895 = scalar_lea.vmem %s16, %s894
        %p896 = pneg %p443
        %p897 = pneg %p440
        %p898 = pneg %p464
        %p899 = pneg %p461
        %p900 = scmp.lt.s32.totalorder %s44, 1
        %s901 = scalar_select %p900, %s44, 1
        %s902 = smul.addr %s901, 8
        %s903 = smul.addr %s902, 4
        %s904 = scalar_lea.vmem %s18, %s903
        %p905 = pneg %p490
        %p906 = pneg %p487
        %p907 = pneg %p511
        %p908 = pneg %p508
        %p909 = pneg %p532
        %p910 = pneg %p529
        %p911 = pneg %p553
        %p912 = pneg %p550
        %p913 = pneg %p579
        %p914 = pneg %p576
        %s915 = smul.u32 2, %s43
        %s916 = smul.u32 2, %s43
        %p917 = scmp.lt.s32.totalorder %s916, 1
        %s918 = scalar_select %p917, %s916, 1
        %s919 = smul.addr %s918, 8
        %s920 = scalar_lea.vmem %s1, %s919
        %s921 = smul.u32 2, %s43
        %p922 = scmp.lt.s32.totalorder %s44, 1
        %s923 = scalar_select %p922, %s44, 1
        %s924 = smul.addr %s923, 4
        %s925 = smul.addr %s924, 4
        %s926 = scalar_lea.vmem %s2, %s925
        %p927 = scmp.lt.s32.totalorder %s44, 1
        %s928 = scalar_select %p927, %s44, 1
        %s929 = smul.addr %s928, 4
        %s930 = smul.addr %s929, 4
        %s931 = scalar_lea.vmem %s4, %s930
        %p932 = scmp.lt.s32.totalorder %s44, 1
        %s933 = scalar_select %p932, %s44, 1
        %s934 = smul.addr %s933, 4
        %s935 = smul.addr %s934, 4
        %s936 = scalar_lea.vmem %s8, %s935
        %p937 = scmp.lt.s32.totalorder %s44, 1
        %s938 = scalar_select %p937, %s44, 1
        %s939 = smul.addr %s938, 4
        %s940 = smul.addr %s939, 4
        %s941 = scalar_lea.vmem %s10, %s940
        %p942 = scmp.lt.s32.totalorder %s44, 1
        %s943 = scalar_select %p942, %s44, 1
        %s944 = smul.addr %s943, 4
        %s945 = smul.addr %s944, 4
        %s946 = scalar_lea.vmem %s12, %s945
        %p947 = scmp.lt.s32.totalorder %s44, 1
        %s948 = scalar_select %p947, %s44, 1
        %s949 = smul.addr %s948, 4
        %s950 = smul.addr %s949, 4
        %s951 = scalar_lea.vmem %s16, %s950
        %p952 = scmp.lt.s32.totalorder %s44, 1
        %s953 = scalar_select %p952, %s44, 1
        %s954 = smul.addr %s953, 8
        %s955 = smul.addr %s954, 4
        %s956 = scalar_lea.vmem %s18, %s955
        %s957 = smul.u32 2, %s43
        %p959 = scmp.eq.s32.totalorder %s44, 0
        // Predicated region
        $region141: #{transformer_forward.3} parent=107 // pred_check
          %p960 = pneg %p959
        $region142: #{transformer_forward.3} parent=107 // pred_check_branch
          %962 = sbr.rel (%p960) target = $region144
        $region143: #{transformer_forward.3} parent=107 // pred_region
          %v963 = vld [vmem:[#allocation2] sm:$0xff]
          %v964 = vld [vmem:[#allocation2 + $0x8] sm:$0xff]
          %vm965 = vcmask 261120
          %966 = vst.msk [vmem:[#allocation16] sm:$0xff] %vm965, %v963
          %967 = vst.msk [vmem:[#allocation16 + $0x8] sm:$0xff] %vm965, %v964
        $region144: #{transformer_forward.3} parent=107 // pred_fallthru
          _
        %v968 = vld [vmem:[#allocation16] sm:$0xff]
        %v969 = vld [vmem:[#allocation16 + $0x8] sm:$0xff]
        %v970 = vld [vmem:[%s920] sm:$0xff]
        %v971 = vld [vmem:[%s920 + $0x8] sm:$0xff]
        %v972 = vlaneseq
        %v973 = vshrl.u32 %v972, 7
        %v974 = vlaneseq
        %v975 = vand.u32 %v974, 127
        %vm976 = vcmp.gt.s32.totalorder %v975, %v973
        %v977 = vsel %vm976, -1e+30, 0.0
        %v978 = vld [vmem:[%s926] sm:$0xf]
        %v979 = vld [vmem:[%s926 + $0x4] sm:$0xf]
        %v980 = vld [vmem:[%s926 + $0x8] sm:$0xf]
        %v981 = vld [vmem:[%s926 + $0xc] sm:$0xf]
        %s982 = scalar_lea.vmem %s3, %s44
        %v983 = vld [vmem:[%s982] sm:$0x1]
        %v984 = vpack.c.bf16 %v969, %v968
        %v985 = vperm.slane %v983, 0
        %v990 = vunpack.c.l.b16 %v978
        %v991 = vunpack.c.l.b16 %v979
        %v992 = vunpack.c.l.b16 %v980
        %v993 = vunpack.c.l.b16 %v981
        %v994 = vpack.c.b16 %v991, %v990
        %v995 = vpack.c.b16 %v993, %v992
        %vm998 = vcmask 261120
        %v1000 = vsel %vm998, %v984, 0
        %1002 = vmatpush.bf16.msra.mxu0 0
        %1003 = vmatpush.bf16.msra.mxu0 0
        %1004 = vmatpush.bf16.msra.mxu0 0
        %1005 = vmatpush.bf16.msra.mxu0 0
        %1006 = vmatpush.bf16.msra.mxu0 0
        %1007 = vmatpush.bf16.msra.mxu0 0
        %1008 = vmatpush.bf16.msra.mxu0 %v995
        %1009 = vmatpush.bf16.msra.mxu0 %v994
        %1010 = vmatmul.bf16.gmra.mxu0 %v1000
        %v1011 = vpop.f32.mrf.mxu0
        %v1012 = vadd.f32 %v985, %v1011
        %v1013 = vpop.f32.mrf.mxu0
        %v1014 = vadd.f32 %v985, %v1013
        %1015 = vdwg.mxu0
        %v1016 = vmul.f32 %v1012, 0.35355338
        %v1017 = vmul.f32 %v1014, 0.35355338
        %v1018 = vpack.c.bf16 %v1016, %v1016
        %v1019 = vpack.c.bf16 %v1017, %v1017
        %v1020 = vpack.c.bf16 %v1012, %v1012
        %v1021 = vpack.c.bf16 %v1014, %v1014
        %1024 = vrot.lane.b32.xlu0 %v1018, 120
        %v1025 = vpop.permute.xlu0 %1024
        %1026 = vrot.lane.b32.xlu0 %v1019, 120
        %v1027 = vpop.permute.xlu0 %1026
        %1028 = vrot.lane.b32.xlu0 %v1018, 112
        %v1029 = vpop.permute.xlu0 %1028
        %1030 = vrot.lane.b32.xlu0 %v1019, 112
        %v1031 = vpop.permute.xlu0 %1030
        %1032 = vrot.lane.b32.xlu0 %v1018, 104
        %v1033 = vpop.permute.xlu0 %1032
        %1034 = vrot.lane.b32.xlu0 %v1019, 104
        %v1035 = vpop.permute.xlu0 %1034
        %1038 = vrot.lane.b32.xlu0 %v1020, 120
        %v1039 = vpop.permute.xlu0 %1038
        %1040 = vrot.lane.b32.xlu0 %v1021, 120
        %v1041 = vpop.permute.xlu0 %1040
        %1042 = vrot.lane.b32.xlu0 %v1020, 112
        %v1043 = vpop.permute.xlu0 %1042
        %1044 = vrot.lane.b32.xlu0 %v1021, 112
        %v1045 = vpop.permute.xlu0 %1044
        %1046 = vrot.lane.b32.xlu0 %v1020, 104
        %v1047 = vpop.permute.xlu0 %1046
        %1048 = vrot.lane.b32.xlu0 %v1021, 104
        %v1049 = vpop.permute.xlu0 %1048
        %v1050 = vunpack.c.l.b16 %v1020
        %v1051 = vpack.c.b16 %v1050, %v1050
        %1052 = vrot.lane.b32.xlu0 %v1051, 96
        %v1053 = vpop.permute.xlu0 %1052
        %vm1054 = vcmask 64512
        %v1056 = vsel %vm1054, %v1018, 0
        %v1059 = vsel %vm1054, %v1053, 0
        %1061 = vmatpush.bf16.xpose.msra.mxu0 0
        %1062 = vmatpush.bf16.xpose.msra.mxu0 0
        %1063 = vmatpush.bf16.xpose.msra.mxu0 0
        %1064 = vmatpush.bf16.xpose.msra.mxu0 0
        %1065 = vmatpush.bf16.xpose.msra.mxu0 0
        %1066 = vmatpush.bf16.xpose.msra.mxu0 0
        %1067 = vmatpush.bf16.xpose.msra.mxu0 0
        %1068 = vmatpush.bf16.xpose.msra.mxu0 %v1059
        %1069 = vmatmul.bf16.gmra.mxu0 %v1056
        %v1070 = vpop.f32.mrf.mxu0
        %v1071 = vadd.f32 %v977, %v1070
        %v1072 = vpop.f32.mrf.mxu0
        %1073 = vdwg.mxu0
        %v1074 = vunpack.c.l.b16 %v1021
        %v1075 = vpack.c.b16 %v1074, %v1074
        %1076 = vrot.lane.b32.xlu0 %v1075, 96
        %v1077 = vpop.permute.xlu0 %1076
        %v1079 = vsel %vm1054, %v1019, 0
        %v1082 = vsel %vm1054, %v1077, 0
        %1084 = vmatpush.bf16.xpose.msra.mxu0 0
        %1085 = vmatpush.bf16.xpose.msra.mxu0 0
        %1086 = vmatpush.bf16.xpose.msra.mxu0 0
        %1087 = vmatpush.bf16.xpose.msra.mxu0 0
        %1088 = vmatpush.bf16.xpose.msra.mxu0 0
        %1089 = vmatpush.bf16.xpose.msra.mxu0 0
        %1090 = vmatpush.bf16.xpose.msra.mxu0 0
        %1091 = vmatpush.bf16.xpose.msra.mxu0 %v1082
        %1092 = vmatmul.bf16.gmra.mxu0 %v1079
        %v1093 = vpop.f32.mrf.mxu0
        %v1094 = vadd.f32 %v977, %v1093
        %v1095 = vpop.f32.mrf.mxu0
        %1096 = vdwg.mxu0
        %v1097 = vunpack.c.l.b16 %v1039
        %v1098 = vpack.c.b16 %v1097, %v1097
        %1099 = vrot.lane.b32.xlu0 %v1098, 96
        %v1100 = vpop.permute.xlu0 %1099
        %v1102 = vsel %vm1054, %v1025, 0
        %v1105 = vsel %vm1054, %v1100, 0
        %1107 = vmatpush.bf16.xpose.msra.mxu0 0
        %1108 = vmatpush.bf16.xpose.msra.mxu0 0
        %1109 = vmatpush.bf16.xpose.msra.mxu0 0
        %1110 = vmatpush.bf16.xpose.msra.mxu0 0
        %1111 = vmatpush.bf16.xpose.msra.mxu0 0
        %1112 = vmatpush.bf16.xpose.msra.mxu0 0
        %1113 = vmatpush.bf16.xpose.msra.mxu0 0
        %1114 = vmatpush.bf16.xpose.msra.mxu0 %v1105
        %1115 = vmatmul.bf16.gmra.mxu0 %v1102
        %v1116 = vpop.f32.mrf.mxu0
        %v1117 = vadd.f32 %v977, %v1116
        %v1118 = vpop.f32.mrf.mxu0
        %1119 = vdwg.mxu0
        %v1120 = vunpack.c.l.b16 %v1041
        %v1121 = vpack.c.b16 %v1120, %v1120
        %1122 = vrot.lane.b32.xlu0 %v1121, 96
        %v1123 = vpop.permute.xlu0 %1122
        %v1125 = vsel %vm1054, %v1027, 0
        %v1128 = vsel %vm1054, %v1123, 0
        %1130 = vmatpush.bf16.xpose.msra.mxu0 0
        %1131 = vmatpush.bf16.xpose.msra.mxu0 0
        %1132 = vmatpush.bf16.xpose.msra.mxu0 0
        %1133 = vmatpush.bf16.xpose.msra.mxu0 0
        %1134 = vmatpush.bf16.xpose.msra.mxu0 0
        %1135 = vmatpush.bf16.xpose.msra.mxu0 0
        %1136 = vmatpush.bf16.xpose.msra.mxu0 0
        %1137 = vmatpush.bf16.xpose.msra.mxu0 %v1128
        %1138 = vmatmul.bf16.gmra.mxu0 %v1125
        %v1139 = vpop.f32.mrf.mxu0
        %v1140 = vadd.f32 %v977, %v1139
        %v1141 = vpop.f32.mrf.mxu0
        %1142 = vdwg.mxu0
        %v1143 = vunpack.c.l.b16 %v1043
        %v1144 = vpack.c.b16 %v1143, %v1143
        %1145 = vrot.lane.b32.xlu0 %v1144, 96
        %v1146 = vpop.permute.xlu0 %1145
        %v1148 = vsel %vm1054, %v1029, 0
        %v1151 = vsel %vm1054, %v1146, 0
        %1153 = vmatpush.bf16.xpose.msra.mxu0 0
        %1154 = vmatpush.bf16.xpose.msra.mxu0 0
        %1155 = vmatpush.bf16.xpose.msra.mxu0 0
        %1156 = vmatpush.bf16.xpose.msra.mxu0 0
        %1157 = vmatpush.bf16.xpose.msra.mxu0 0
        %1158 = vmatpush.bf16.xpose.msra.mxu0 0
        %1159 = vmatpush.bf16.xpose.msra.mxu0 0
        %1160 = vmatpush.bf16.xpose.msra.mxu0 %v1151
        %1161 = vmatmul.bf16.gmra.mxu0 %v1148
        %v1162 = vpop.f32.mrf.mxu0
        %v1163 = vadd.f32 %v977, %v1162
        %v1164 = vpop.f32.mrf.mxu0
        %1165 = vdwg.mxu0
        %v1166 = vunpack.c.l.b16 %v1045
        %v1167 = vpack.c.b16 %v1166, %v1166
        %1168 = vrot.lane.b32.xlu0 %v1167, 96
        %v1169 = vpop.permute.xlu0 %1168
        %v1171 = vsel %vm1054, %v1031, 0
        %v1174 = vsel %vm1054, %v1169, 0
        %1176 = vmatpush.bf16.xpose.msra.mxu0 0
        %1177 = vmatpush.bf16.xpose.msra.mxu0 0
        %1178 = vmatpush.bf16.xpose.msra.mxu0 0
        %1179 = vmatpush.bf16.xpose.msra.mxu0 0
        %1180 = vmatpush.bf16.xpose.msra.mxu0 0
        %1181 = vmatpush.bf16.xpose.msra.mxu0 0
        %1182 = vmatpush.bf16.xpose.msra.mxu0 0
        %1183 = vmatpush.bf16.xpose.msra.mxu0 %v1174
        %1184 = vmatmul.bf16.gmra.mxu0 %v1171
        %v1185 = vpop.f32.mrf.mxu0
        %v1186 = vadd.f32 %v977, %v1185
        %v1187 = vpop.f32.mrf.mxu0
        %1188 = vdwg.mxu0
        %v1189 = vunpack.c.l.b16 %v1047
        %v1190 = vpack.c.b16 %v1189, %v1189
        %1191 = vrot.lane.b32.xlu0 %v1190, 96
        %v1192 = vpop.permute.xlu0 %1191
        %v1194 = vsel %vm1054, %v1033, 0
        %v1197 = vsel %vm1054, %v1192, 0
        %1199 = vmatpush.bf16.xpose.msra.mxu0 0
        %1200 = vmatpush.bf16.xpose.msra.mxu0 0
        %1201 = vmatpush.bf16.xpose.msra.mxu0 0
        %1202 = vmatpush.bf16.xpose.msra.mxu0 0
        %1203 = vmatpush.bf16.xpose.msra.mxu0 0
        %1204 = vmatpush.bf16.xpose.msra.mxu0 0
        %1205 = vmatpush.bf16.xpose.msra.mxu0 0
        %1206 = vmatpush.bf16.xpose.msra.mxu0 %v1197
        %1207 = vmatmul.bf16.gmra.mxu0 %v1194
        %v1208 = vpop.f32.mrf.mxu0
        %v1209 = vadd.f32 %v977, %v1208
        %v1210 = vpop.f32.mrf.mxu0
        %1211 = vdwg.mxu0
        %v1212 = vunpack.c.l.b16 %v1049
        %v1213 = vpack.c.b16 %v1212, %v1212
        %1214 = vrot.lane.b32.xlu0 %v1213, 96
        %v1215 = vpop.permute.xlu0 %1214
        %v1217 = vsel %vm1054, %v1035, 0
        %v1220 = vsel %vm1054, %v1215, 0
        %1222 = vmatpush.bf16.xpose.msra.mxu0 0
        %1223 = vmatpush.bf16.xpose.msra.mxu0 0
        %1224 = vmatpush.bf16.xpose.msra.mxu0 0
        %1225 = vmatpush.bf16.xpose.msra.mxu0 0
        %1226 = vmatpush.bf16.xpose.msra.mxu0 0
        %1227 = vmatpush.bf16.xpose.msra.mxu0 0
        %1228 = vmatpush.bf16.xpose.msra.mxu0 0
        %1229 = vmatpush.bf16.xpose.msra.mxu0 %v1220
        %1230 = vmatmul.bf16.gmra.mxu0 %v1217
        %v1231 = vpop.f32.mrf.mxu0
        %v1232 = vadd.f32 %v977, %v1231
        %v1233 = vpop.f32.mrf.mxu0
        %1234 = vdwg.mxu0
        %v1235 = vsel %vm1054, %v1071, -inf
        %1236 = vmax.xlane.f32.xlu0 %v1235
        %v1237 = vpop.xlane.xlu0 %1236
        %v1238 = vsel %vm1054, %v1094, -inf
        %1239 = vmax.xlane.f32.xlu0 %v1238
        %v1240 = vpop.xlane.xlu0 %1239
        %v1241 = vsel %vm1054, %v1117, -inf
        %1242 = vmax.xlane.f32.xlu0 %v1241
        %v1243 = vpop.xlane.xlu0 %1242
        %v1244 = vsel %vm1054, %v1140, -inf
        %1245 = vmax.xlane.f32.xlu0 %v1244
        %v1246 = vpop.xlane.xlu0 %1245
        %v1247 = vsel %vm1054, %v1163, -inf
        %1248 = vmax.xlane.f32.xlu0 %v1247
        %v1249 = vpop.xlane.xlu0 %1248
        %v1250 = vsel %vm1054, %v1186, -inf
        %1251 = vmax.xlane.f32.xlu0 %v1250
        %v1252 = vpop.xlane.xlu0 %1251
        %v1253 = vsel %vm1054, %v1209, -inf
        %1254 = vmax.xlane.f32.xlu0 %v1253
        %v1255 = vpop.xlane.xlu0 %1254
        %v1256 = vsel %vm1054, %v1232, -inf
        %1257 = vmax.xlane.f32.xlu0 %v1256
        %v1258 = vpop.xlane.xlu0 %1257
        %v1259 = vsub.f32 %v1071, %v1237
        %v1260 = vsub.f32 %v1094, %v1240
        %v1261 = vsub.f32 %v1117, %v1243
        %v1262 = vsub.f32 %v1140, %v1246
        %v1263 = vsub.f32 %v1163, %v1249
        %v1264 = vsub.f32 %v1186, %v1252
        %v1265 = vsub.f32 %v1209, %v1255
        %v1266 = vsub.f32 %v1232, %v1258
        %v1267 = vmul.f32 %v1259, 1.442695
        %v1268 = vpow.pop %v1267
        %v1269 = vmul.f32 %v1260, 1.442695
        %v1270 = vpow.pop %v1269
        %v1271 = vmul.f32 %v1261, 1.442695
        %v1272 = vpow.pop %v1271
        %v1273 = vmul.f32 %v1262, 1.442695
        %v1274 = vpow.pop %v1273
        %v1275 = vmul.f32 %v1263, 1.442695
        %v1276 = vpow.pop %v1275
        %v1277 = vmul.f32 %v1264, 1.442695
        %v1278 = vpow.pop %v1277
        %v1279 = vmul.f32 %v1265, 1.442695
        %v1280 = vpow.pop %v1279
        %v1281 = vmul.f32 %v1266, 1.442695
        %v1282 = vpow.pop %v1281
        %v1283 = vsel %vm1054, %v1268, 0.0
        %1284 = vadd.xlane.f32.xlu0 %v1283
        %v1285 = vpop.xlane.xlu0 %1284
        %v1286 = vsel %vm1054, %v1270, 0.0
        %1287 = vadd.xlane.f32.xlu0 %v1286
        %v1288 = vpop.xlane.xlu0 %1287
        %v1289 = vsel %vm1054, %v1272, 0.0
        %1290 = vadd.xlane.f32.xlu0 %v1289
        %v1291 = vpop.xlane.xlu0 %1290
        %v1292 = vsel %vm1054, %v1274, 0.0
        %1293 = vadd.xlane.f32.xlu0 %v1292
        %v1294 = vpop.xlane.xlu0 %1293
        %v1295 = vsel %vm1054, %v1276, 0.0
        %1296 = vadd.xlane.f32.xlu0 %v1295
        %v1297 = vpop.xlane.xlu0 %1296
        %v1298 = vsel %vm1054, %v1278, 0.0
        %1299 = vadd.xlane.f32.xlu0 %v1298
        %v1300 = vpop.xlane.xlu0 %1299
        %v1301 = vsel %vm1054, %v1280, 0.0
        %1302 = vadd.xlane.f32.xlu0 %v1301
        %v1303 = vpop.xlane.xlu0 %1302
        %v1304 = vsel %vm1054, %v1282, 0.0
        %1305 = vadd.xlane.f32.xlu0 %v1304
        %v1306 = vpop.xlane.xlu0 %1305
        %v1307 = vrcp.pop %v1285
        %v1308 = vrcp.pop %v1288
        %v1309 = vrcp.pop %v1291
        %v1310 = vrcp.pop %v1294
        %v1311 = vrcp.pop %v1297
        %v1312 = vrcp.pop %v1300
        %v1313 = vrcp.pop %v1303
        %v1314 = vrcp.pop %v1306
        %v1315 = vmul.f32 %v1268, %v1307
        %v1316 = vmul.f32 %v1270, %v1308
        %v1317 = vmul.f32 %v1272, %v1309
        %v1318 = vmul.f32 %v1274, %v1310
        %v1319 = vmul.f32 %v1276, %v1311
        %v1320 = vmul.f32 %v1278, %v1312
        %v1321 = vmul.f32 %v1280, %v1313
        %v1322 = vmul.f32 %v1282, %v1314
        %v1323 = vpack.c.bf16 %v1315, %v1315
        %v1324 = vpack.c.bf16 %v1316, %v1316
        %v1325 = vpack.c.bf16 %v1317, %v1317
        %v1326 = vpack.c.bf16 %v1318, %v1318
        %v1327 = vpack.c.bf16 %v1319, %v1319
        %v1328 = vpack.c.bf16 %v1320, %v1320
        %v1329 = vpack.c.bf16 %v1321, %v1321
        %v1330 = vpack.c.bf16 %v1322, %v1322
        %1331 = vrot.lane.b32.xlu0 %v1051, 64
        %v1332 = vpop.permute.xlu0 %1331
        %v1334 = vsel %vm1054, %v1323, 0
        %vm1336 = vcmask 1043456
        %v1338 = vsel %vm1336, %v1332, 0
        %1340 = vmatpush.bf16.msra.mxu0 0
        %1341 = vmatpush.bf16.msra.mxu0 0
        %1342 = vmatpush.bf16.msra.mxu0 0
        %1343 = vmatpush.bf16.msra.mxu0 0
        %1344 = vmatpush.bf16.msra.mxu0 0
        %1345 = vmatpush.bf16.msra.mxu0 0
        %1346 = vmatpush.bf16.msra.mxu0 0
        %1347 = vmatpush.bf16.msra.mxu0 %v1338
        %1348 = vmatmul.bf16.gmra.mxu0 %v1334
        %v1349 = vpop.f32.mrf.mxu0
        %v1350 = vadd.f32 0.0, %v1349
        %v1351 = vpop.f32.mrf.mxu0
        %1352 = vdwg.mxu0
        %1353 = vrot.lane.b32.xlu0 %v1075, 64
        %v1354 = vpop.permute.xlu0 %1353
        %v1356 = vsel %vm1054, %v1324, 0
        %v1359 = vsel %vm1336, %v1354, 0
        %1361 = vmatpush.bf16.msra.mxu0 0
        %1362 = vmatpush.bf16.msra.mxu0 0
        %1363 = vmatpush.bf16.msra.mxu0 0
        %1364 = vmatpush.bf16.msra.mxu0 0
        %1365 = vmatpush.bf16.msra.mxu0 0
        %1366 = vmatpush.bf16.msra.mxu0 0
        %1367 = vmatpush.bf16.msra.mxu0 0
        %1368 = vmatpush.bf16.msra.mxu0 %v1359
        %1369 = vmatmul.bf16.gmra.mxu0 %v1356
        %v1370 = vpop.f32.mrf.mxu0
        %v1371 = vadd.f32 0.0, %v1370
        %v1372 = vpop.f32.mrf.mxu0
        %1373 = vdwg.mxu0
        %1374 = vrot.lane.b32.xlu0 %v1098, 64
        %v1375 = vpop.permute.xlu0 %1374
        %v1377 = vsel %vm1054, %v1325, 0
        %v1380 = vsel %vm1336, %v1375, 0
        %1382 = vmatpush.bf16.msra.mxu0 0
        %1383 = vmatpush.bf16.msra.mxu0 0
        %1384 = vmatpush.bf16.msra.mxu0 0
        %1385 = vmatpush.bf16.msra.mxu0 0
        %1386 = vmatpush.bf16.msra.mxu0 0
        %1387 = vmatpush.bf16.msra.mxu0 0
        %1388 = vmatpush.bf16.msra.mxu0 0
        %1389 = vmatpush.bf16.msra.mxu0 %v1380
        %1390 = vmatmul.bf16.gmra.mxu0 %v1377
        %v1391 = vpop.f32.mrf.mxu0
        %v1392 = vadd.f32 0.0, %v1391
        %v1393 = vpop.f32.mrf.mxu0
        %1394 = vdwg.mxu0
        %1395 = vrot.lane.b32.xlu0 %v1121, 64
        %v1396 = vpop.permute.xlu0 %1395
        %v1398 = vsel %vm1054, %v1326, 0
        %v1401 = vsel %vm1336, %v1396, 0
        %1403 = vmatpush.bf16.msra.mxu0 0
        %1404 = vmatpush.bf16.msra.mxu0 0
        %1405 = vmatpush.bf16.msra.mxu0 0
        %1406 = vmatpush.bf16.msra.mxu0 0
        %1407 = vmatpush.bf16.msra.mxu0 0
        %1408 = vmatpush.bf16.msra.mxu0 0
        %1409 = vmatpush.bf16.msra.mxu0 0
        %1410 = vmatpush.bf16.msra.mxu0 %v1401
        %1411 = vmatmul.bf16.gmra.mxu0 %v1398
        %v1412 = vpop.f32.mrf.mxu0
        %v1413 = vadd.f32 0.0, %v1412
        %v1414 = vpop.f32.mrf.mxu0
        %1415 = vdwg.mxu0
        %1416 = vrot.lane.b32.xlu0 %v1144, 64
        %v1417 = vpop.permute.xlu0 %1416
        %v1419 = vsel %vm1054, %v1327, 0
        %v1422 = vsel %vm1336, %v1417, 0
        %1424 = vmatpush.bf16.msra.mxu0 0
        %1425 = vmatpush.bf16.msra.mxu0 0
        %1426 = vmatpush.bf16.msra.mxu0 0
        %1427 = vmatpush.bf16.msra.mxu0 0
        %1428 = vmatpush.bf16.msra.mxu0 0
        %1429 = vmatpush.bf16.msra.mxu0 0
        %1430 = vmatpush.bf16.msra.mxu0 0
        %1431 = vmatpush.bf16.msra.mxu0 %v1422
        %1432 = vmatmul.bf16.gmra.mxu0 %v1419
        %v1433 = vpop.f32.mrf.mxu0
        %v1434 = vadd.f32 0.0, %v1433
        %v1435 = vpop.f32.mrf.mxu0
        %1436 = vdwg.mxu0
        %1437 = vrot.lane.b32.xlu0 %v1167, 64
        %v1438 = vpop.permute.xlu0 %1437
        %v1440 = vsel %vm1054, %v1328, 0
        %v1443 = vsel %vm1336, %v1438, 0
        %1445 = vmatpush.bf16.msra.mxu0 0
        %1446 = vmatpush.bf16.msra.mxu0 0
        %1447 = vmatpush.bf16.msra.mxu0 0
        %1448 = vmatpush.bf16.msra.mxu0 0
        %1449 = vmatpush.bf16.msra.mxu0 0
        %1450 = vmatpush.bf16.msra.mxu0 0
        %1451 = vmatpush.bf16.msra.mxu0 0
        %1452 = vmatpush.bf16.msra.mxu0 %v1443
        %1453 = vmatmul.bf16.gmra.mxu0 %v1440
        %v1454 = vpop.f32.mrf.mxu0
        %v1455 = vadd.f32 0.0, %v1454
        %v1456 = vpop.f32.mrf.mxu0
        %1457 = vdwg.mxu0
        %1458 = vrot.lane.b32.xlu0 %v1190, 64
        %v1459 = vpop.permute.xlu0 %1458
        %v1461 = vsel %vm1054, %v1329, 0
        %v1464 = vsel %vm1336, %v1459, 0
        %1466 = vmatpush.bf16.msra.mxu0 0
        %1467 = vmatpush.bf16.msra.mxu0 0
        %1468 = vmatpush.bf16.msra.mxu0 0
        %1469 = vmatpush.bf16.msra.mxu0 0
        %1470 = vmatpush.bf16.msra.mxu0 0
        %1471 = vmatpush.bf16.msra.mxu0 0
        %1472 = vmatpush.bf16.msra.mxu0 0
        %1473 = vmatpush.bf16.msra.mxu0 %v1464
        %1474 = vmatmul.bf16.gmra.mxu0 %v1461
        %v1475 = vpop.f32.mrf.mxu0
        %v1476 = vadd.f32 0.0, %v1475
        %v1477 = vpop.f32.mrf.mxu0
        %1478 = vdwg.mxu0
        %1479 = vrot.lane.b32.xlu0 %v1213, 64
        %v1480 = vpop.permute.xlu0 %1479
        %v1482 = vsel %vm1054, %v1330, 0
        %v1485 = vsel %vm1336, %v1480, 0
        %1487 = vmatpush.bf16.msra.mxu0 0
        %1488 = vmatpush.bf16.msra.mxu0 0
        %1489 = vmatpush.bf16.msra.mxu0 0
        %1490 = vmatpush.bf16.msra.mxu0 0
        %1491 = vmatpush.bf16.msra.mxu0 0
        %1492 = vmatpush.bf16.msra.mxu0 0
        %1493 = vmatpush.bf16.msra.mxu0 0
        %1494 = vmatpush.bf16.msra.mxu0 %v1485
        %1495 = vmatmul.bf16.gmra.mxu0 %v1482
        %v1496 = vpop.f32.mrf.mxu0
        %v1497 = vadd.f32 0.0, %v1496
        %v1498 = vpop.f32.mrf.mxu0
        %1499 = vdwg.mxu0
        %1502 = vrot.lane.b32.xlu0 %v1392, 8
        %v1503 = vpop.permute.xlu0 %1502
        %1504 = vrot.lane.b32.xlu0 %v1413, 8
        %v1505 = vpop.permute.xlu0 %1504
        %1510 = vrot.lane.b32.xlu0 %v1434, 16
        %v1511 = vpop.permute.xlu0 %1510
        %1512 = vrot.lane.b32.xlu0 %v1455, 16
        %v1513 = vpop.permute.xlu0 %1512
        %1518 = vrot.lane.b32.xlu0 %v1476, 24
        %v1519 = vpop.permute.xlu0 %1518
        %1520 = vrot.lane.b32.xlu0 %v1497, 24
        %v1521 = vpop.permute.xlu0 %1520
        %v1524 = vsel %vm1054, %v1350, %v1503
        %v1525 = vsel %vm1054, %v1371, %v1505
        %vm1526 = vcmask 130048
        %v1527 = vsel %vm1526, %v1524, %v1511
        %v1528 = vsel %vm1526, %v1525, %v1513
        %vm1529 = vcmask 195584
        %v1530 = vsel %vm1529, %v1527, %v1519
        %v1531 = vsel %vm1529, %v1528, %v1521
        %v1532 = vld [vmem:[%s931] sm:$0xf]
        %v1533 = vld [vmem:[%s931 + $0x4] sm:$0xf]
        %v1534 = vld [vmem:[%s931 + $0x8] sm:$0xf]
        %v1535 = vld [vmem:[%s931 + $0xc] sm:$0xf]
        %s1536 = scalar_lea.vmem %s5, %s44
        %v1537 = vld [vmem:[%s1536] sm:$0x1]
        %v1538 = vpack.c.bf16 %v1531, %v1530
        %v1539 = vperm.slane %v1537, 0
        %v1544 = vunpack.c.l.b16 %v1532
        %v1545 = vunpack.c.l.b16 %v1533
        %v1546 = vunpack.c.l.b16 %v1534
        %v1547 = vunpack.c.l.b16 %v1535
        %v1548 = vpack.c.b16 %v1545, %v1544
        %v1549 = vpack.c.b16 %v1547, %v1546
        %v1553 = vsel %vm998, %v1538, 0
        %1555 = vmatpush.bf16.msra.mxu0 0
        %1556 = vmatpush.bf16.msra.mxu0 0
        %1557 = vmatpush.bf16.msra.mxu0 0
        %1558 = vmatpush.bf16.msra.mxu0 0
        %1559 = vmatpush.bf16.msra.mxu0 0
        %1560 = vmatpush.bf16.msra.mxu0 0
        %1561 = vmatpush.bf16.msra.mxu0 %v1549
        %1562 = vmatpush.bf16.msra.mxu0 %v1548
        %1563 = vmatmul.bf16.gmra.mxu0 %v1553
        %v1564 = vpop.f32.mrf.mxu0
        %v1565 = vadd.f32 %v1539, %v1564
        %v1566 = vpop.f32.mrf.mxu0
        %v1567 = vadd.f32 %v1539, %v1566
        %1568 = vdwg.mxu0
        %s1569 = scalar_lea.vmem %s6, %s44
        %v1570 = vld [vmem:[%s1569] sm:$0x1]
        %s1571 = scalar_lea.vmem %s7, %s44
        %v1572 = vld [vmem:[%s1571] sm:$0x1]
        %v1573 = vadd.f32 %v1565, %v968
        %v1574 = vadd.f32 %v1567, %v969
        %v1575 = vsel %vm998, %v1573, 0.0
        %1576 = vadd.xlane.f32.xlu0 %v1575
        %v1577 = vpop.xlane.xlu0 %1576
        %v1578 = vsel %vm998, %v1574, 0.0
        %1579 = vadd.xlane.f32.xlu0 %v1578
        %v1580 = vpop.xlane.xlu0 %1579
        %v1581 = vrcp.pop 32.0
        %v1582 = vmul.f32 32.0, %v1581
        %v1583 = vsub.f32 1.0, %v1582
        %v1584 = vmul.f32 %v1581, %v1583
        %v1585 = vadd.f32 %v1581, %v1584
        %vm1586 = vweird.f32 %v1581
        %v1587 = vsel %vm1586, %v1581, %v1585
        %v1588 = vmul.f32 %v1577, %v1587
        %v1589 = vmul.f32 %v1580, %v1587
        %v1590 = vsub.f32 %v1573, %v1588
        %v1591 = vsub.f32 %v1574, %v1589
        %v1592 = vmul.f32 %v1590, %v1590
        %v1593 = vmul.f32 %v1591, %v1591
        %v1594 = vsel %vm998, %v1592, 0.0
        %1595 = vadd.xlane.f32.xlu0 %v1594
        %v1596 = vpop.xlane.xlu0 %1595
        %v1597 = vsel %vm998, %v1593, 0.0
        %1598 = vadd.xlane.f32.xlu0 %v1597
        %v1599 = vpop.xlane.xlu0 %1598
        %v1600 = vmul.f32 %v1596, %v1587
        %v1601 = vmul.f32 %v1599, %v1587
        %v1602 = vadd.f32 %v1600, 1e-05
        %v1603 = vadd.f32 %v1601, 1e-05
        %v1604 = vrsqrt.pop %v1602
        %v1605 = vmul.f32 %v1604, %v1602
        %v1606 = vmul.f32 %v1605, %v1604
        %v1607 = vmul.f32 0.5, %v1606
        %v1608 = vsub.f32 1.5, %v1607
        %v1609 = vmul.f32 %v1604, %v1608
        %vm1610 = vweird.f32 %v1602
        %vm1611 = vweird.f32 %v1604
        %vm1612 = vmor %vm1610, %vm1611
        %v1613 = vsel %vm1612, %v1604, %v1609
        %v1614 = vrsqrt.pop %v1603
        %v1615 = vmul.f32 %v1614, %v1603
        %v1616 = vmul.f32 %v1615, %v1614
        %v1617 = vmul.f32 0.5, %v1616
        %v1618 = vsub.f32 1.5, %v1617
        %v1619 = vmul.f32 %v1614, %v1618
        %vm1620 = vweird.f32 %v1603
        %vm1621 = vweird.f32 %v1614
        %vm1622 = vmor %vm1620, %vm1621
        %v1623 = vsel %vm1622, %v1614, %v1619
        %v1624 = vmul.f32 %v1590, %v1613
        %v1625 = vmul.f32 %v1591, %v1623
        %v1626 = vperm.slane %v1570, 0
        %v1627 = vmul.f32 %v1624, %v1626
        %v1628 = vmul.f32 %v1625, %v1626
        %v1629 = vperm.slane %v1572, 0
        %v1630 = vadd.f32 %v1627, %v1629
        %v1631 = vadd.f32 %v1628, %v1629
        %v1632 = vld [vmem:[%s936] sm:$0xf]
        %v1633 = vld [vmem:[%s936 + $0x4] sm:$0xf]
        %v1634 = vld [vmem:[%s936 + $0x8] sm:$0xf]
        %v1635 = vld [vmem:[%s936 + $0xc] sm:$0xf]
        %s1636 = scalar_lea.vmem %s9, %s44
        %v1637 = vld [vmem:[%s1636] sm:$0x1]
        %v1638 = vpack.c.bf16 %v1631, %v1630
        %v1639 = vperm.slane %v1637, 0
        %v1644 = vunpack.c.l.b16 %v1632
        %v1645 = vunpack.c.l.b16 %v1633
        %v1646 = vunpack.c.l.b16 %v1634
        %v1647 = vunpack.c.l.b16 %v1635
        %v1648 = vpack.c.b16 %v1645, %v1644
        %v1649 = vpack.c.b16 %v1647, %v1646
        %v1653 = vsel %vm998, %v1638, 0
        %1655 = vmatpush.bf16.msra.mxu0 0
        %1656 = vmatpush.bf16.msra.mxu0 0
        %1657 = vmatpush.bf16.msra.mxu0 0
        %1658 = vmatpush.bf16.msra.mxu0 0
        %1659 = vmatpush.bf16.msra.mxu0 0
        %1660 = vmatpush.bf16.msra.mxu0 0
        %1661 = vmatpush.bf16.msra.mxu0 %v1649
        %1662 = vmatpush.bf16.msra.mxu0 %v1648
        %1663 = vmatmul.bf16.gmra.mxu0 %v1653
        %v1664 = vpop.f32.mrf.mxu0
        %v1665 = vadd.f32 %v1639, %v1664
        %v1666 = vpop.f32.mrf.mxu0
        %v1667 = vadd.f32 %v1639, %v1666
        %1668 = vdwg.mxu0
        %v1669 = vld [vmem:[%s941] sm:$0xf]
        %v1670 = vld [vmem:[%s941 + $0x4] sm:$0xf]
        %v1671 = vld [vmem:[%s941 + $0x8] sm:$0xf]
        %v1672 = vld [vmem:[%s941 + $0xc] sm:$0xf]
        %s1673 = scalar_lea.vmem %s11, %s44
        %v1674 = vld [vmem:[%s1673] sm:$0x1]
        %v1675 = vpack.c.bf16 %v971, %v970
        %v1676 = vperm.slane %v1674, 0
        %v1681 = vunpack.c.l.b16 %v1669
        %v1682 = vunpack.c.l.b16 %v1670
        %v1683 = vunpack.c.l.b16 %v1671
        %v1684 = vunpack.c.l.b16 %v1672
        %v1685 = vpack.c.b16 %v1682, %v1681
        %v1686 = vpack.c.b16 %v1684, %v1683
        %v1690 = vsel %vm998, %v1675, 0
        %1692 = vmatpush.bf16.msra.mxu0 0
        %1693 = vmatpush.bf16.msra.mxu0 0
        %1694 = vmatpush.bf16.msra.mxu0 0
        %1695 = vmatpush.bf16.msra.mxu0 0
        %1696 = vmatpush.bf16.msra.mxu0 0
        %1697 = vmatpush.bf16.msra.mxu0 0
        %1698 = vmatpush.bf16.msra.mxu0 %v1686
        %1699 = vmatpush.bf16.msra.mxu0 %v1685
        %1700 = vmatmul.bf16.gmra.mxu0 %v1690
        %v1701 = vpop.f32.mrf.mxu0
        %v1702 = vadd.f32 %v1676, %v1701
        %v1703 = vpop.f32.mrf.mxu0
        %v1704 = vadd.f32 %v1676, %v1703
        %1705 = vdwg.mxu0
        %v1706 = vmul.f32 %v1665, 0.35355338
        %v1707 = vmul.f32 %v1667, 0.35355338
        %v1708 = vpack.c.bf16 %v1706, %v1706
        %v1709 = vpack.c.bf16 %v1707, %v1707
        %v1710 = vpack.c.bf16 %v1702, %v1702
        %v1711 = vpack.c.bf16 %v1704, %v1704
        %1714 = vrot.lane.b32.xlu0 %v1708, 120
        %v1715 = vpop.permute.xlu0 %1714
        %1716 = vrot.lane.b32.xlu0 %v1709, 120
        %v1717 = vpop.permute.xlu0 %1716
        %1718 = vrot.lane.b32.xlu0 %v1708, 112
        %v1719 = vpop.permute.xlu0 %1718
        %1720 = vrot.lane.b32.xlu0 %v1709, 112
        %v1721 = vpop.permute.xlu0 %1720
        %1722 = vrot.lane.b32.xlu0 %v1708, 104
        %v1723 = vpop.permute.xlu0 %1722
        %1724 = vrot.lane.b32.xlu0 %v1709, 104
        %v1725 = vpop.permute.xlu0 %1724
        %1728 = vrot.lane.b32.xlu0 %v1710, 120
        %v1729 = vpop.permute.xlu0 %1728
        %1730 = vrot.lane.b32.xlu0 %v1711, 120
        %v1731 = vpop.permute.xlu0 %1730
        %1732 = vrot.lane.b32.xlu0 %v1710, 112
        %v1733 = vpop.permute.xlu0 %1732
        %1734 = vrot.lane.b32.xlu0 %v1711, 112
        %v1735 = vpop.permute.xlu0 %1734
        %1736 = vrot.lane.b32.xlu0 %v1710, 104
        %v1737 = vpop.permute.xlu0 %1736
        %1738 = vrot.lane.b32.xlu0 %v1711, 104
        %v1739 = vpop.permute.xlu0 %1738
        %v1741 = vsel %vm1054, %v1708, 0
        %v1744 = vsel %vm1054, %v1710, 0
        %1746 = vmatpush.bf16.xpose.msra.mxu0 0
        %1747 = vmatpush.bf16.xpose.msra.mxu0 0
        %1748 = vmatpush.bf16.xpose.msra.mxu0 0
        %1749 = vmatpush.bf16.xpose.msra.mxu0 0
        %1750 = vmatpush.bf16.xpose.msra.mxu0 0
        %1751 = vmatpush.bf16.xpose.msra.mxu0 0
        %1752 = vmatpush.bf16.xpose.msra.mxu0 0
        %1753 = vmatpush.bf16.xpose.msra.mxu0 %v1744
        %1754 = vmatmul.bf16.gmra.mxu0 %v1741
        %v1755 = vpop.f32.mrf.mxu0
        %v1756 = vadd.f32 0.0, %v1755
        %v1757 = vpop.f32.mrf.mxu0
        %1758 = vdwg.mxu0
        %v1760 = vsel %vm1054, %v1709, 0
        %v1763 = vsel %vm1054, %v1711, 0
        %1765 = vmatpush.bf16.xpose.msra.mxu0 0
        %1766 = vmatpush.bf16.xpose.msra.mxu0 0
        %1767 = vmatpush.bf16.xpose.msra.mxu0 0
        %1768 = vmatpush.bf16.xpose.msra.mxu0 0
        %1769 = vmatpush.bf16.xpose.msra.mxu0 0
        %1770 = vmatpush.bf16.xpose.msra.mxu0 0
        %1771 = vmatpush.bf16.xpose.msra.mxu0 0
        %1772 = vmatpush.bf16.xpose.msra.mxu0 %v1763
        %1773 = vmatmul.bf16.gmra.mxu0 %v1760
        %v1774 = vpop.f32.mrf.mxu0
        %v1775 = vadd.f32 0.0, %v1774
        %v1776 = vpop.f32.mrf.mxu0
        %1777 = vdwg.mxu0
        %v1779 = vsel %vm1054, %v1715, 0
        %v1782 = vsel %vm1054, %v1729, 0
        %1784 = vmatpush.bf16.xpose.msra.mxu0 0
        %1785 = vmatpush.bf16.xpose.msra.mxu0 0
        %1786 = vmatpush.bf16.xpose.msra.mxu0 0
        %1787 = vmatpush.bf16.xpose.msra.mxu0 0
        %1788 = vmatpush.bf16.xpose.msra.mxu0 0
        %1789 = vmatpush.bf16.xpose.msra.mxu0 0
        %1790 = vmatpush.bf16.xpose.msra.mxu0 0
        %1791 = vmatpush.bf16.xpose.msra.mxu0 %v1782
        %1792 = vmatmul.bf16.gmra.mxu0 %v1779
        %v1793 = vpop.f32.mrf.mxu0
        %v1794 = vadd.f32 0.0, %v1793
        %v1795 = vpop.f32.mrf.mxu0
        %1796 = vdwg.mxu0
        %v1798 = vsel %vm1054, %v1717, 0
        %v1801 = vsel %vm1054, %v1731, 0
        %1803 = vmatpush.bf16.xpose.msra.mxu0 0
        %1804 = vmatpush.bf16.xpose.msra.mxu0 0
        %1805 = vmatpush.bf16.xpose.msra.mxu0 0
        %1806 = vmatpush.bf16.xpose.msra.mxu0 0
        %1807 = vmatpush.bf16.xpose.msra.mxu0 0
        %1808 = vmatpush.bf16.xpose.msra.mxu0 0
        %1809 = vmatpush.bf16.xpose.msra.mxu0 0
        %1810 = vmatpush.bf16.xpose.msra.mxu0 %v1801
        %1811 = vmatmul.bf16.gmra.mxu0 %v1798
        %v1812 = vpop.f32.mrf.mxu0
        %v1813 = vadd.f32 0.0, %v1812
        %v1814 = vpop.f32.mrf.mxu0
        %1815 = vdwg.mxu0
        %v1817 = vsel %vm1054, %v1719, 0
        %v1820 = vsel %vm1054, %v1733, 0
        %1822 = vmatpush.bf16.xpose.msra.mxu0 0
        %1823 = vmatpush.bf16.xpose.msra.mxu0 0
        %1824 = vmatpush.bf16.xpose.msra.mxu0 0
        %1825 = vmatpush.bf16.xpose.msra.mxu0 0
        %1826 = vmatpush.bf16.xpose.msra.mxu0 0
        %1827 = vmatpush.bf16.xpose.msra.mxu0 0
        %1828 = vmatpush.bf16.xpose.msra.mxu0 0
        %1829 = vmatpush.bf16.xpose.msra.mxu0 %v1820
        %1830 = vmatmul.bf16.gmra.mxu0 %v1817
        %v1831 = vpop.f32.mrf.mxu0
        %v1832 = vadd.f32 0.0, %v1831
        %v1833 = vpop.f32.mrf.mxu0
        %1834 = vdwg.mxu0
        %v1836 = vsel %vm1054, %v1721, 0
        %v1839 = vsel %vm1054, %v1735, 0
        %1841 = vmatpush.bf16.xpose.msra.mxu0 0
        %1842 = vmatpush.bf16.xpose.msra.mxu0 0
        %1843 = vmatpush.bf16.xpose.msra.mxu0 0
        %1844 = vmatpush.bf16.xpose.msra.mxu0 0
        %1845 = vmatpush.bf16.xpose.msra.mxu0 0
        %1846 = vmatpush.bf16.xpose.msra.mxu0 0
        %1847 = vmatpush.bf16.xpose.msra.mxu0 0
        %1848 = vmatpush.bf16.xpose.msra.mxu0 %v1839
        %1849 = vmatmul.bf16.gmra.mxu0 %v1836
        %v1850 = vpop.f32.mrf.mxu0
        %v1851 = vadd.f32 0.0, %v1850
        %v1852 = vpop.f32.mrf.mxu0
        %1853 = vdwg.mxu0
        %v1855 = vsel %vm1054, %v1723, 0
        %v1858 = vsel %vm1054, %v1737, 0
        %1860 = vmatpush.bf16.xpose.msra.mxu0 0
        %1861 = vmatpush.bf16.xpose.msra.mxu0 0
        %1862 = vmatpush.bf16.xpose.msra.mxu0 0
        %1863 = vmatpush.bf16.xpose.msra.mxu0 0
        %1864 = vmatpush.bf16.xpose.msra.mxu0 0
        %1865 = vmatpush.bf16.xpose.msra.mxu0 0
        %1866 = vmatpush.bf16.xpose.msra.mxu0 0
        %1867 = vmatpush.bf16.xpose.msra.mxu0 %v1858
        %1868 = vmatmul.bf16.gmra.mxu0 %v1855
        %v1869 = vpop.f32.mrf.mxu0
        %v1870 = vadd.f32 0.0, %v1869
        %v1871 = vpop.f32.mrf.mxu0
        %1872 = vdwg.mxu0
        %v1874 = vsel %vm1054, %v1725, 0
        %v1877 = vsel %vm1054, %v1739, 0
        %1879 = vmatpush.bf16.xpose.msra.mxu0 0
        %1880 = vmatpush.bf16.xpose.msra.mxu0 0
        %1881 = vmatpush.bf16.xpose.msra.mxu0 0
        %1882 = vmatpush.bf16.xpose.msra.mxu0 0
        %1883 = vmatpush.bf16.xpose.msra.mxu0 0
        %1884 = vmatpush.bf16.xpose.msra.mxu0 0
        %1885 = vmatpush.bf16.xpose.msra.mxu0 0
        %1886 = vmatpush.bf16.xpose.msra.mxu0 %v1877
        %1887 = vmatmul.bf16.gmra.mxu0 %v1874
        %v1888 = vpop.f32.mrf.mxu0
        %v1889 = vadd.f32 0.0, %v1888
        %v1890 = vpop.f32.mrf.mxu0
        %1891 = vdwg.mxu0
        %v1892 = vsel %vm1054, %v1756, -inf
        %1893 = vmax.xlane.f32.xlu0 %v1892
        %v1894 = vpop.xlane.xlu0 %1893
        %v1895 = vsel %vm1054, %v1775, -inf
        %1896 = vmax.xlane.f32.xlu0 %v1895
        %v1897 = vpop.xlane.xlu0 %1896
        %v1898 = vsel %vm1054, %v1794, -inf
        %1899 = vmax.xlane.f32.xlu0 %v1898
        %v1900 = vpop.xlane.xlu0 %1899
        %v1901 = vsel %vm1054, %v1813, -inf
        %1902 = vmax.xlane.f32.xlu0 %v1901
        %v1903 = vpop.xlane.xlu0 %1902
        %v1904 = vsel %vm1054, %v1832, -inf
        %1905 = vmax.xlane.f32.xlu0 %v1904
        %v1906 = vpop.xlane.xlu0 %1905
        %v1907 = vsel %vm1054, %v1851, -inf
        %1908 = vmax.xlane.f32.xlu0 %v1907
        %v1909 = vpop.xlane.xlu0 %1908
        %v1910 = vsel %vm1054, %v1870, -inf
        %1911 = vmax.xlane.f32.xlu0 %v1910
        %v1912 = vpop.xlane.xlu0 %1911
        %v1913 = vsel %vm1054, %v1889, -inf
        %1914 = vmax.xlane.f32.xlu0 %v1913
        %v1915 = vpop.xlane.xlu0 %1914
        %v1916 = vsub.f32 %v1756, %v1894
        %v1917 = vsub.f32 %v1775, %v1897
        %v1918 = vsub.f32 %v1794, %v1900
        %v1919 = vsub.f32 %v1813, %v1903
        %v1920 = vsub.f32 %v1832, %v1906
        %v1921 = vsub.f32 %v1851, %v1909
        %v1922 = vsub.f32 %v1870, %v1912
        %v1923 = vsub.f32 %v1889, %v1915
        %v1924 = vmul.f32 %v1916, 1.442695
        %v1925 = vpow.pop %v1924
        %v1926 = vmul.f32 %v1917, 1.442695
        %v1927 = vpow.pop %v1926
        %v1928 = vmul.f32 %v1918, 1.442695
        %v1929 = vpow.pop %v1928
        %v1930 = vmul.f32 %v1919, 1.442695
        %v1931 = vpow.pop %v1930
        %v1932 = vmul.f32 %v1920, 1.442695
        %v1933 = vpow.pop %v1932
        %v1934 = vmul.f32 %v1921, 1.442695
        %v1935 = vpow.pop %v1934
        %v1936 = vmul.f32 %v1922, 1.442695
        %v1937 = vpow.pop %v1936
        %v1938 = vmul.f32 %v1923, 1.442695
        %v1939 = vpow.pop %v1938
        %v1940 = vsel %vm1054, %v1925, 0.0
        %1941 = vadd.xlane.f32.xlu0 %v1940
        %v1942 = vpop.xlane.xlu0 %1941
        %v1943 = vsel %vm1054, %v1927, 0.0
        %1944 = vadd.xlane.f32.xlu0 %v1943
        %v1945 = vpop.xlane.xlu0 %1944
        %v1946 = vsel %vm1054, %v1929, 0.0
        %1947 = vadd.xlane.f32.xlu0 %v1946
        %v1948 = vpop.xlane.xlu0 %1947
        %v1949 = vsel %vm1054, %v1931, 0.0
        %1950 = vadd.xlane.f32.xlu0 %v1949
        %v1951 = vpop.xlane.xlu0 %1950
        %v1952 = vsel %vm1054, %v1933, 0.0
        %1953 = vadd.xlane.f32.xlu0 %v1952
        %v1954 = vpop.xlane.xlu0 %1953
        %v1955 = vsel %vm1054, %v1935, 0.0
        %1956 = vadd.xlane.f32.xlu0 %v1955
        %v1957 = vpop.xlane.xlu0 %1956
        %v1958 = vsel %vm1054, %v1937, 0.0
        %1959 = vadd.xlane.f32.xlu0 %v1958
        %v1960 = vpop.xlane.xlu0 %1959
        %v1961 = vsel %vm1054, %v1939, 0.0
        %1962 = vadd.xlane.f32.xlu0 %v1961
        %v1963 = vpop.xlane.xlu0 %1962
        %v1964 = vrcp.pop %v1942
        %v1965 = vrcp.pop %v1945
        %v1966 = vrcp.pop %v1948
        %v1967 = vrcp.pop %v1951
        %v1968 = vrcp.pop %v1954
        %v1969 = vrcp.pop %v1957
        %v1970 = vrcp.pop %v1960
        %v1971 = vrcp.pop %v1963
        %v1972 = vmul.f32 %v1925, %v1964
        %v1973 = vmul.f32 %v1927, %v1965
        %v1974 = vmul.f32 %v1929, %v1966
        %v1975 = vmul.f32 %v1931, %v1967
        %v1976 = vmul.f32 %v1933, %v1968
        %v1977 = vmul.f32 %v1935, %v1969
        %v1978 = vmul.f32 %v1937, %v1970
        %v1979 = vmul.f32 %v1939, %v1971
        %v1980 = vpack.c.bf16 %v1972, %v1972
        %v1981 = vpack.c.bf16 %v1973, %v1973
        %v1982 = vpack.c.bf16 %v1974, %v1974
        %v1983 = vpack.c.bf16 %v1975, %v1975
        %v1984 = vpack.c.bf16 %v1976, %v1976
        %v1985 = vpack.c.bf16 %v1977, %v1977
        %v1986 = vpack.c.bf16 %v1978, %v1978
        %v1987 = vpack.c.bf16 %v1979, %v1979
        %v1988 = vunpack.c.l.b16 %v1710
        %v1989 = vpack.c.b16 %v1988, %v1988
        %1990 = vrot.lane.b32.xlu0 %v1989, 96
        %v1991 = vpop.permute.xlu0 %1990
        %v1993 = vsel %vm1054, %v1980, 0
        %v1996 = vsel %vm1336, %v1991, 0
        %1998 = vmatpush.bf16.msra.mxu0 0
        %1999 = vmatpush.bf16.msra.mxu0 0
        %2000 = vmatpush.bf16.msra.mxu0 0
        %2001 = vmatpush.bf16.msra.mxu0 0
        %2002 = vmatpush.bf16.msra.mxu0 0
        %2003 = vmatpush.bf16.msra.mxu0 0
        %2004 = vmatpush.bf16.msra.mxu0 0
        %2005 = vmatpush.bf16.msra.mxu0 %v1996
        %2006 = vmatmul.bf16.gmra.mxu0 %v1993
        %v2007 = vpop.f32.mrf.mxu0
        %v2008 = vadd.f32 0.0, %v2007
        %v2009 = vpop.f32.mrf.mxu0
        %2010 = vdwg.mxu0
        %v2011 = vunpack.c.l.b16 %v1711
        %v2012 = vpack.c.b16 %v2011, %v2011
        %2013 = vrot.lane.b32.xlu0 %v2012, 96
        %v2014 = vpop.permute.xlu0 %2013
        %v2016 = vsel %vm1054, %v1981, 0
        %v2019 = vsel %vm1336, %v2014, 0
        %2021 = vmatpush.bf16.msra.mxu0 0
        %2022 = vmatpush.bf16.msra.mxu0 0
        %2023 = vmatpush.bf16.msra.mxu0 0
        %2024 = vmatpush.bf16.msra.mxu0 0
        %2025 = vmatpush.bf16.msra.mxu0 0
        %2026 = vmatpush.bf16.msra.mxu0 0
        %2027 = vmatpush.bf16.msra.mxu0 0
        %2028 = vmatpush.bf16.msra.mxu0 %v2019
        %2029 = vmatmul.bf16.gmra.mxu0 %v2016
        %v2030 = vpop.f32.mrf.mxu0
        %v2031 = vadd.f32 0.0, %v2030
        %v2032 = vpop.f32.mrf.mxu0
        %2033 = vdwg.mxu0
        %v2034 = vunpack.c.l.b16 %v1729
        %v2035 = vpack.c.b16 %v2034, %v2034
        %2036 = vrot.lane.b32.xlu0 %v2035, 96
        %v2037 = vpop.permute.xlu0 %2036
        %v2039 = vsel %vm1054, %v1982, 0
        %v2042 = vsel %vm1336, %v2037, 0
        %2044 = vmatpush.bf16.msra.mxu0 0
        %2045 = vmatpush.bf16.msra.mxu0 0
        %2046 = vmatpush.bf16.msra.mxu0 0
        %2047 = vmatpush.bf16.msra.mxu0 0
        %2048 = vmatpush.bf16.msra.mxu0 0
        %2049 = vmatpush.bf16.msra.mxu0 0
        %2050 = vmatpush.bf16.msra.mxu0 0
        %2051 = vmatpush.bf16.msra.mxu0 %v2042
        %2052 = vmatmul.bf16.gmra.mxu0 %v2039
        %v2053 = vpop.f32.mrf.mxu0
        %v2054 = vadd.f32 0.0, %v2053
        %v2055 = vpop.f32.mrf.mxu0
        %2056 = vdwg.mxu0
        %v2057 = vunpack.c.l.b16 %v1731
        %v2058 = vpack.c.b16 %v2057, %v2057
        %2059 = vrot.lane.b32.xlu0 %v2058, 96
        %v2060 = vpop.permute.xlu0 %2059
        %v2062 = vsel %vm1054, %v1983, 0
        %v2065 = vsel %vm1336, %v2060, 0
        %2067 = vmatpush.bf16.msra.mxu0 0
        %2068 = vmatpush.bf16.msra.mxu0 0
        %2069 = vmatpush.bf16.msra.mxu0 0
        %2070 = vmatpush.bf16.msra.mxu0 0
        %2071 = vmatpush.bf16.msra.mxu0 0
        %2072 = vmatpush.bf16.msra.mxu0 0
        %2073 = vmatpush.bf16.msra.mxu0 0
        %2074 = vmatpush.bf16.msra.mxu0 %v2065
        %2075 = vmatmul.bf16.gmra.mxu0 %v2062
        %v2076 = vpop.f32.mrf.mxu0
        %v2077 = vadd.f32 0.0, %v2076
        %v2078 = vpop.f32.mrf.mxu0
        %2079 = vdwg.mxu0
        %v2080 = vunpack.c.l.b16 %v1733
        %v2081 = vpack.c.b16 %v2080, %v2080
        %2082 = vrot.lane.b32.xlu0 %v2081, 96
        %v2083 = vpop.permute.xlu0 %2082
        %v2085 = vsel %vm1054, %v1984, 0
        %v2088 = vsel %vm1336, %v2083, 0
        %2090 = vmatpush.bf16.msra.mxu0 0
        %2091 = vmatpush.bf16.msra.mxu0 0
        %2092 = vmatpush.bf16.msra.mxu0 0
        %2093 = vmatpush.bf16.msra.mxu0 0
        %2094 = vmatpush.bf16.msra.mxu0 0
        %2095 = vmatpush.bf16.msra.mxu0 0
        %2096 = vmatpush.bf16.msra.mxu0 0
        %2097 = vmatpush.bf16.msra.mxu0 %v2088
        %2098 = vmatmul.bf16.gmra.mxu0 %v2085
        %v2099 = vpop.f32.mrf.mxu0
        %v2100 = vadd.f32 0.0, %v2099
        %v2101 = vpop.f32.mrf.mxu0
        %2102 = vdwg.mxu0
        %v2103 = vunpack.c.l.b16 %v1735
        %v2104 = vpack.c.b16 %v2103, %v2103
        %2105 = vrot.lane.b32.xlu0 %v2104, 96
        %v2106 = vpop.permute.xlu0 %2105
        %v2108 = vsel %vm1054, %v1985, 0
        %v2111 = vsel %vm1336, %v2106, 0
        %2113 = vmatpush.bf16.msra.mxu0 0
        %2114 = vmatpush.bf16.msra.mxu0 0
        %2115 = vmatpush.bf16.msra.mxu0 0
        %2116 = vmatpush.bf16.msra.mxu0 0
        %2117 = vmatpush.bf16.msra.mxu0 0
        %2118 = vmatpush.bf16.msra.mxu0 0
        %2119 = vmatpush.bf16.msra.mxu0 0
        %2120 = vmatpush.bf16.msra.mxu0 %v2111
        %2121 = vmatmul.bf16.gmra.mxu0 %v2108
        %v2122 = vpop.f32.mrf.mxu0
        %v2123 = vadd.f32 0.0, %v2122
        %v2124 = vpop.f32.mrf.mxu0
        %2125 = vdwg.mxu0
        %v2126 = vunpack.c.l.b16 %v1737
        %v2127 = vpack.c.b16 %v2126, %v2126
        %2128 = vrot.lane.b32.xlu0 %v2127, 96
        %v2129 = vpop.permute.xlu0 %2128
        %v2131 = vsel %vm1054, %v1986, 0
        %v2134 = vsel %vm1336, %v2129, 0
        %2136 = vmatpush.bf16.msra.mxu0 0
        %2137 = vmatpush.bf16.msra.mxu0 0
        %2138 = vmatpush.bf16.msra.mxu0 0
        %2139 = vmatpush.bf16.msra.mxu0 0
        %2140 = vmatpush.bf16.msra.mxu0 0
        %2141 = vmatpush.bf16.msra.mxu0 0
        %2142 = vmatpush.bf16.msra.mxu0 0
        %2143 = vmatpush.bf16.msra.mxu0 %v2134
        %2144 = vmatmul.bf16.gmra.mxu0 %v2131
        %v2145 = vpop.f32.mrf.mxu0
        %v2146 = vadd.f32 0.0, %v2145
        %v2147 = vpop.f32.mrf.mxu0
        %2148 = vdwg.mxu0
        %v2149 = vunpack.c.l.b16 %v1739
        %v2150 = vpack.c.b16 %v2149, %v2149
        %2151 = vrot.lane.b32.xlu0 %v2150, 96
        %v2152 = vpop.permute.xlu0 %2151
        %v2154 = vsel %vm1054, %v1987, 0
        %v2157 = vsel %vm1336, %v2152, 0
        %2159 = vmatpush.bf16.msra.mxu0 0
        %2160 = vmatpush.bf16.msra.mxu0 0
        %2161 = vmatpush.bf16.msra.mxu0 0
        %2162 = vmatpush.bf16.msra.mxu0 0
        %2163 = vmatpush.bf16.msra.mxu0 0
        %2164 = vmatpush.bf16.msra.mxu0 0
        %2165 = vmatpush.bf16.msra.mxu0 0
        %2166 = vmatpush.bf16.msra.mxu0 %v2157
        %2167 = vmatmul.bf16.gmra.mxu0 %v2154
        %v2168 = vpop.f32.mrf.mxu0
        %v2169 = vadd.f32 0.0, %v2168
        %v2170 = vpop.f32.mrf.mxu0
        %2171 = vdwg.mxu0
        %2174 = vrot.lane.b32.xlu0 %v2054, 8
        %v2175 = vpop.permute.xlu0 %2174
        %2176 = vrot.lane.b32.xlu0 %v2077, 8
        %v2177 = vpop.permute.xlu0 %2176
        %2182 = vrot.lane.b32.xlu0 %v2100, 16
        %v2183 = vpop.permute.xlu0 %2182
        %2184 = vrot.lane.b32.xlu0 %v2123, 16
        %v2185 = vpop.permute.xlu0 %2184
        %2190 = vrot.lane.b32.xlu0 %v2146, 24
        %v2191 = vpop.permute.xlu0 %2190
        %2192 = vrot.lane.b32.xlu0 %v2169, 24
        %v2193 = vpop.permute.xlu0 %2192
        %v2196 = vsel %vm1054, %v2008, %v2175
        %v2197 = vsel %vm1054, %v2031, %v2177
        %v2198 = vsel %vm1526, %v2196, %v2183
        %v2199 = vsel %vm1526, %v2197, %v2185
        %v2200 = vsel %vm1529, %v2198, %v2191
        %v2201 = vsel %vm1529, %v2199, %v2193
        %v2202 = vld [vmem:[%s946] sm:$0xf]
        %v2203 = vld [vmem:[%s946 + $0x4] sm:$0xf]
        %v2204 = vld [vmem:[%s946 + $0x8] sm:$0xf]
        %v2205 = vld [vmem:[%s946 + $0xc] sm:$0xf]
        %s2206 = scalar_lea.vmem [#allocation5], %s44
        %v2207 = vld [vmem:[%s2206] sm:$0x1]
        %v2208 = vpack.c.bf16 %v2201, %v2200
        %v2209 = vperm.slane %v2207, 0
        %v2214 = vunpack.c.l.b16 %v2202
        %v2215 = vunpack.c.l.b16 %v2203
        %v2216 = vunpack.c.l.b16 %v2204
        %v2217 = vunpack.c.l.b16 %v2205
        %v2218 = vpack.c.b16 %v2215, %v2214
        %v2219 = vpack.c.b16 %v2217, %v2216
        %v2223 = vsel %vm998, %v2208, 0
        %2225 = vmatpush.bf16.msra.mxu0 0
        %2226 = vmatpush.bf16.msra.mxu0 0
        %2227 = vmatpush.bf16.msra.mxu0 0
        %2228 = vmatpush.bf16.msra.mxu0 0
        %2229 = vmatpush.bf16.msra.mxu0 0
        %2230 = vmatpush.bf16.msra.mxu0 0
        %2231 = vmatpush.bf16.msra.mxu0 %v2219
        %2232 = vmatpush.bf16.msra.mxu0 %v2218
        %2233 = vmatmul.bf16.gmra.mxu0 %v2223
        %v2234 = vpop.f32.mrf.mxu0
        %v2235 = vadd.f32 %v2209, %v2234
        %v2236 = vpop.f32.mrf.mxu0
        %v2237 = vadd.f32 %v2209, %v2236
        %2238 = vdwg.mxu0
        %s2239 = scalar_lea.vmem [#allocation7], %s44
        %v2240 = vld [vmem:[%s2239] sm:$0x1]
        %s2241 = scalar_lea.vmem [#allocation8], %s44
        %v2242 = vld [vmem:[%s2241] sm:$0x1]
        %v2243 = vadd.f32 %v2235, %v1630
        %v2244 = vadd.f32 %v2237, %v1631
        %v2245 = vsel %vm998, %v2243, 0.0
        %2246 = vadd.xlane.f32.xlu0 %v2245
        %v2247 = vpop.xlane.xlu0 %2246
        %v2248 = vsel %vm998, %v2244, 0.0
        %2249 = vadd.xlane.f32.xlu0 %v2248
        %v2250 = vpop.xlane.xlu0 %2249
        %v2251 = vmul.f32 %v2247, %v1587
        %v2252 = vmul.f32 %v2250, %v1587
        %v2253 = vsub.f32 %v2243, %v2251
        %v2254 = vsub.f32 %v2244, %v2252
        %v2255 = vmul.f32 %v2253, %v2253
        %v2256 = vmul.f32 %v2254, %v2254
        %v2257 = vsel %vm998, %v2255, 0.0
        %2258 = vadd.xlane.f32.xlu0 %v2257
        %v2259 = vpop.xlane.xlu0 %2258
        %v2260 = vsel %vm998, %v2256, 0.0
        %2261 = vadd.xlane.f32.xlu0 %v2260
        %v2262 = vpop.xlane.xlu0 %2261
        %v2263 = vmul.f32 %v2259, %v1587
        %v2264 = vmul.f32 %v2262, %v1587
        %v2265 = vadd.f32 %v2263, 1e-05
        %v2266 = vadd.f32 %v2264, 1e-05
        %v2267 = vrsqrt.pop %v2265
        %v2268 = vmul.f32 %v2267, %v2265
        %v2269 = vmul.f32 %v2268, %v2267
        %v2270 = vmul.f32 0.5, %v2269
        %v2271 = vsub.f32 1.5, %v2270
        %v2272 = vmul.f32 %v2267, %v2271
        %vm2273 = vweird.f32 %v2265
        %vm2274 = vweird.f32 %v2267
        %vm2275 = vmor %vm2273, %vm2274
        %v2276 = vsel %vm2275, %v2267, %v2272
        %v2277 = vrsqrt.pop %v2266
        %v2278 = vmul.f32 %v2277, %v2266
        %v2279 = vmul.f32 %v2278, %v2277
        %v2280 = vmul.f32 0.5, %v2279
        %v2281 = vsub.f32 1.5, %v2280
        %v2282 = vmul.f32 %v2277, %v2281
        %vm2283 = vweird.f32 %v2266
        %vm2284 = vweird.f32 %v2277
        %vm2285 = vmor %vm2283, %vm2284
        %v2286 = vsel %vm2285, %v2277, %v2282
        %v2287 = vmul.f32 %v2253, %v2276
        %v2288 = vmul.f32 %v2254, %v2286
        %v2289 = vperm.slane %v2240, 0
        %v2290 = vmul.f32 %v2287, %v2289
        %v2291 = vmul.f32 %v2288, %v2289
        %v2292 = vperm.slane %v2242, 0
        %v2293 = vadd.f32 %v2290, %v2292
        %v2294 = vadd.f32 %v2291, %v2292
        %v2295 = vld [vmem:[%s951] sm:$0xf]
        %v2296 = vld [vmem:[%s951 + $0x4] sm:$0xf]
        %v2297 = vld [vmem:[%s951 + $0x8] sm:$0xf]
        %v2298 = vld [vmem:[%s951 + $0xc] sm:$0xf]
        %s2299 = scalar_lea.vmem [#allocation10], %s44
        %v2300 = vld [vmem:[%s2299] sm:$0x1]
        %v2301 = vld [vmem:[%s956] sm:$0xf]
        %v2302 = vld [vmem:[%s956 + $0x4] sm:$0xf]
        %v2303 = vld [vmem:[%s956 + $0x8] sm:$0xf]
        %v2304 = vld [vmem:[%s956 + $0xc] sm:$0xf]
        %v2305 = vld [vmem:[%s956 + $0x10] sm:$0xf]
        %v2306 = vld [vmem:[%s956 + $0x14] sm:$0xf]
        %v2307 = vld [vmem:[%s956 + $0x18] sm:$0xf]
        %v2308 = vld [vmem:[%s956 + $0x1c] sm:$0xf]
        %s2309 = scalar_lea.vmem [#allocation11], %s44
        %v2310 = vld [vmem:[%s2309] sm:$0x1]
        %v2311 = vpack.c.bf16 %v2294, %v2293
        %v2312 = vperm.slane %v2300, 0
        %v2317 = vunpack.c.l.b16 %v2295
        %v2318 = vunpack.c.l.b16 %v2296
        %v2319 = vunpack.c.l.b16 %v2297
        %v2320 = vunpack.c.l.b16 %v2298
        %v2321 = vpack.c.b16 %v2318, %v2317
        %v2322 = vpack.c.b16 %v2320, %v2319
        %v2326 = vsel %vm998, %v2311, 0
        %2328 = vmatpush.bf16.msra.mxu0 0
        %2329 = vmatpush.bf16.msra.mxu0 0
        %2330 = vmatpush.bf16.msra.mxu0 0
        %2331 = vmatpush.bf16.msra.mxu0 0
        %2332 = vmatpush.bf16.msra.mxu0 0
        %2333 = vmatpush.bf16.msra.mxu0 0
        %2334 = vmatpush.bf16.msra.mxu0 %v2322
        %2335 = vmatpush.bf16.msra.mxu0 %v2321
        %2336 = vmatmul.bf16.gmra.mxu0 %v2326
        %v2337 = vpop.f32.mrf.mxu0
        %v2338 = vadd.f32 %v2312, %v2337
        %v2339 = vpop.f32.mrf.mxu0
        %v2340 = vadd.f32 %v2312, %v2339
        %2341 = vdwg.mxu0
        %v2342 = vmax.f32 %v2338, 0.0
        %v2343 = vmax.f32 %v2340, 0.0
        %v2344 = vpack.c.bf16 %v2343, %v2342
        %v2345 = vperm.slane %v2310, 0
        %v2354 = vunpack.c.l.b16 %v2301
        %v2355 = vunpack.c.l.b16 %v2302
        %v2356 = vunpack.c.l.b16 %v2303
        %v2357 = vunpack.c.l.b16 %v2304
        %v2358 = vunpack.c.l.b16 %v2305
        %v2359 = vunpack.c.l.b16 %v2306
        %v2360 = vunpack.c.l.b16 %v2307
        %v2361 = vunpack.c.l.b16 %v2308
        %v2362 = vpack.c.b16 %v2355, %v2354
        %v2363 = vpack.c.b16 %v2357, %v2356
        %v2364 = vpack.c.b16 %v2359, %v2358
        %v2365 = vpack.c.b16 %v2361, %v2360
        %vm2370 = vcmask 523264
        %v2372 = vsel %vm2370, %v2344, 0
        %2374 = vmatpush.bf16.msra.mxu0 0
        %2375 = vmatpush.bf16.msra.mxu0 0
        %2376 = vmatpush.bf16.msra.mxu0 0
        %2377 = vmatpush.bf16.msra.mxu0 0
        %2378 = vmatpush.bf16.msra.mxu0 %v2365
        %2379 = vmatpush.bf16.msra.mxu0 %v2364
        %2380 = vmatpush.bf16.msra.mxu0 %v2363
        %2381 = vmatpush.bf16.msra.mxu0 %v2362
        %2382 = vmatmul.bf16.gmra.mxu0 %v2372
        %v2383 = vpop.f32.mrf.mxu0
        %v2384 = vadd.f32 %v2345, %v2383
        %v2385 = vpop.f32.mrf.mxu0
        %v2386 = vadd.f32 %v2345, %v2385
        %2387 = vdwg.mxu0
        %s2388 = scalar_lea.vmem [#allocation13], %s44
        %v2389 = vld [vmem:[%s2388] sm:$0x1]
        %s2390 = scalar_lea.vmem [#allocation14], %s44
        %v2391 = vld [vmem:[%s2390] sm:$0x1]
        %v2392 = vadd.f32 %v2384, %v2293
        %v2393 = vadd.f32 %v2386, %v2294
        %v2394 = vsel %vm998, %v2392, 0.0
        %2395 = vadd.xlane.f32.xlu0 %v2394
        %v2396 = vpop.xlane.xlu0 %2395
        %v2397 = vsel %vm998, %v2393, 0.0
        %2398 = vadd.xlane.f32.xlu0 %v2397
        %v2399 = vpop.xlane.xlu0 %2398
        %v2400 = vmul.f32 %v2396, %v1587
        %v2401 = vmul.f32 %v2399, %v1587
        %v2402 = vsub.f32 %v2392, %v2400
        %v2403 = vsub.f32 %v2393, %v2401
        %v2404 = vmul.f32 %v2402, %v2402
        %v2405 = vmul.f32 %v2403, %v2403
        %v2406 = vsel %vm998, %v2404, 0.0
        %2407 = vadd.xlane.f32.xlu0 %v2406
        %v2408 = vpop.xlane.xlu0 %2407
        %v2409 = vsel %vm998, %v2405, 0.0
        %2410 = vadd.xlane.f32.xlu0 %v2409
        %v2411 = vpop.xlane.xlu0 %2410
        %v2412 = vmul.f32 %v2408, %v1587
        %v2413 = vmul.f32 %v2411, %v1587
        %v2414 = vadd.f32 %v2412, 1e-05
        %v2415 = vadd.f32 %v2413, 1e-05
        %v2416 = vrsqrt.pop %v2414
        %v2417 = vmul.f32 %v2416, %v2414
        %v2418 = vmul.f32 %v2417, %v2416
        %v2419 = vmul.f32 0.5, %v2418
        %v2420 = vsub.f32 1.5, %v2419
        %v2421 = vmul.f32 %v2416, %v2420
        %vm2422 = vweird.f32 %v2414
        %vm2423 = vweird.f32 %v2416
        %vm2424 = vmor %vm2422, %vm2423
        %v2425 = vsel %vm2424, %v2416, %v2421
        %v2426 = vrsqrt.pop %v2415
        %v2427 = vmul.f32 %v2426, %v2415
        %v2428 = vmul.f32 %v2427, %v2426
        %v2429 = vmul.f32 0.5, %v2428
        %v2430 = vsub.f32 1.5, %v2429
        %v2431 = vmul.f32 %v2426, %v2430
        %vm2432 = vweird.f32 %v2415
        %vm2433 = vweird.f32 %v2426
        %vm2434 = vmor %vm2432, %vm2433
        %v2435 = vsel %vm2434, %v2426, %v2431
        %v2436 = vmul.f32 %v2402, %v2425
        %v2437 = vmul.f32 %v2403, %v2435
        %v2438 = vperm.slane %v2389, 0
        %v2439 = vmul.f32 %v2436, %v2438
        %v2440 = vmul.f32 %v2437, %v2438
        %v2441 = vperm.slane %v2391, 0
        %v2442 = vadd.f32 %v2439, %v2441
        %v2443 = vadd.f32 %v2440, %v2441
        %2444 = vst.msk [vmem:[#allocation16] sm:$0xff] %vm998, %v2442
        %2445 = vst.msk [vmem:[#allocation16 + $0x8] sm:$0xff] %vm998, %v2443
        // Predicated region
        $region145: #{transformer_forward.3} parent=107 // pred_check
          %p2446 = pneg %p576
        $region146: #{transformer_forward.3} parent=107 // pred_check_branch
          %2448 = sbr.rel (%p2446) target = $region148
        $region147: #{transformer_forward.3} parent=107 // pred_region
          %s2449 = smul.u32 2, %s43
          %2451 = vsyncadd [#allocation4], 0
          %s2452 = smul.addr %s2449, 8
          %s2453 = scalar_lea.hbm %s22, %s2452
          %s2454 = sshll.u32 [#allocation16], 4
          %s2455 = int_to_ptr.vmem [resolvable:$true] %s2454
          %s2456 = sshll.u32 %s2453, 4
          %s2457 = int_to_ptr.hbm [resolvable:$true] %s2456
          %2462 = dma.vmem_to_hbm [thread:$0]  %s2455, 256, %s2457, [#allocation4], 128, 128, 8
        $region148: #{transformer_forward.3} parent=107 // pred_fallthru
          _
        // Predicated region
        $region149: #{transformer_forward.3} parent=107 // pred_check
          %p2463 = pneg %p576
        $region150: #{transformer_forward.3} parent=107 // pred_check_branch
          %2465 = sbr.rel (%p2463) target = $region152
        $region151: #{transformer_forward.3} parent=107 // pred_region
          %2467 = dma.done [#allocation4], 256
        $region152: #{transformer_forward.3} parent=107 // pred_fallthru
          _
      $region108: #{transformer_forward.3} parent=5 // pred_fallthru
        _
      %p2468 = scmp.le.s32.totalorder 2, %s34
      // Predicated region
      $region153: #{transformer_forward.3} parent=5 // pred_check
        %p2469 = pneg %p2468
      $region154: #{transformer_forward.3} parent=5 // pred_check_branch
        %2471 = sbr.rel (%p2469) target = $region156
      $region155: #{transformer_forward.3} parent=5 // pred_region
        %s2472 = ssub.s32 %s34, 2
      $region156: #{transformer_forward.3} parent=5 // pred_fallthru
        _
    $region6: #{transformer_forward.3} parent=1 // loop_footer
      %s38 = sadd.s32 1, %s34
    $region7: #{transformer_forward.3} parent=1 // loop_footer_branch
      %33 = sbr.rel target = $region3
    $region8: #{transformer_forward.3} parent=1 // loop_exit
      _
    %2473 = vsyncpa [#allocation3], 1
    %s2474 = scalar_lea.sflag [#allocation3], 1
    %2475 = vsyncpa %s2474, 1
    %2476 = vsyncpa [#allocation6], 1
    %2477 = vsyncpa [#allocation9], 1
    %2478 = vsyncpa [#allocation12], 1
    %2479 = vsyncpa [#allocation15], 1
    %2480 = vsyncpa [#allocation4], 1
    %s2481 = scalar_lea.sflag [#allocation4], 1
    %2482 = vsyncpa %s2481, 1

// kernel: transformer_forward.2
$region0: #{transformer_forward.2}
  #allocation0 [shape = 'u32[]', space=smem, size = 0x4, offset = 0x4, fixed_abs, tag = 'smem constant byte address 0x4 - core index']
  #allocation1 [shape = 'u32[72,128]{1,0:T(1,128)}', space=vmem, size = 0x9000, scoped, tag = 'internal scratch']
  %s0 = inlined_call_operand.vmem [shape: f32[2,8,32], index: 0, kind: input, shape index: {}]
  %s1 = inlined_call_operand.vmem [shape: bf16[2,32,96], index: 1, kind: input, shape index: {}]
  %s2 = inlined_call_operand.vmem [shape: f32[2,96], index: 2, kind: input, shape index: {}]
  %s3 = inlined_call_operand.vmem [shape: bf16[2,32,32], index: 3, kind: input, shape index: {}]
  %s4 = inlined_call_operand.vmem [shape: f32[2,32], index: 4, kind: input, shape index: {}]
  %s5 = inlined_call_operand.vmem [shape: f32[2,32], index: 5, kind: input, shape index: {}]
  %s6 = inlined_call_operand.vmem [shape: f32[2,32], index: 6, kind: input, shape index: {}]
  %s7 = inlined_call_operand.hbm [shape: bf16[2,32,64], index: 7, kind: input, shape index: {}]
  %s8 = inlined_call_operand.vmem [shape: f32[2,64], index: 8, kind: input, shape index: {}]
  %s9 = inlined_call_operand.vmem [shape: bf16[2,64,32], index: 9, kind: input, shape index: {}]
  %s10 = inlined_call_operand.vmem [shape: f32[2,32], index: 10, kind: input, shape index: {}]
  %s11 = inlined_call_operand.hbm [shape: f32[2,32], index: 11, kind: input, shape index: {}]
  %s12 = inlined_call_operand.hbm [shape: f32[2,32], index: 12, kind: input, shape index: {}]
  %s13 = inlined_call_operand.vmem [shape: f32[2,8,32], index: 13, kind: output, shape index: {}]
  %s14 = sld [smem:[#allocation0]]
  $region101: #{transformer_forward.2} parent=0
    _
  %s16 = ssub.s32 1, %s14
  %s17 = scalar_select 0, %s16, %s14
  $region1: #{transformer_forward.2} parent=0
    #allocation2 [shape = 'u8[16384]{0}', space=vmem, size = 0x4000, scoped, tag = 'input window, operand 7']
    #allocation3 [shape = 's32[2]{0}', space=sflag, size = 0x8, scoped, tag = 'scoped memory for transformer_forward.2']
    #allocation4 [shape = 'u8[1024]{0}', space=vmem, size = 0x400, scoped, tag = 'input window, operand 11, single buffered']
    #allocation5 [shape = 's32[1]{0}', space=sflag, size = 0x4, scoped, tag = 'scoped memory for transformer_forward.2']
    #allocation6 [shape = 'u8[1024]{0}', space=vmem, size = 0x400, scoped, tag = 'input window, operand 12, single buffered']
    %18 = vsyncpa [#allocation3], 0
    %s19 = scalar_lea.sflag [#allocation3], 1
    %20 = vsyncpa %s19, 0
    %21 = vsyncpa [#allocation5], 0
    loop: start=0, step=1, limit=4
    $region2: #{transformer_forward.2} parent=1 // loop_pre_header
      _
    $region3: #{transformer_forward.2} parent=1 // loop_header
      %s23 = sphi 0, %s27
      %p24 = scmp.ge.s32.totalorder %s23, 4
      %s30 = sphi 0, %s42
      %s31 = sphi 0, %s38
      %s32 = sphi 0, %s30
      %s33 = sphi 0, %s31
      %s34 = sphi 0, %s32
      %s35 = sphi 0, %s33
      %s45 = sphi 0, %s47
      %s48 = sphi 0, %s45
      %s49 = sphi 0, %s48
      %s65 = sphi 0, %s49
      %s71 = sphi 0, %s73
      %s74 = sphi 0, %s71
      %s75 = sphi 0, %s74
      %s91 = sphi 0, %s75
      %s95 = sphi 0, %s95
      %s97 = sphi 0, %s95
      %s98 = sphi 0, %s97
      %s112 = sphi 0, %s98
      %s118 = sphi 0, %s120
      %s121 = sphi 0, %s118
      %s122 = sphi 0, %s121
      %s138 = sphi 0, %s122
      %s142 = sphi 0, %s142
      %s144 = sphi 0, %s142
      %s145 = sphi 0, %s144
      %s159 = sphi 0, %s145
      %s163 = sphi 0, %s163
      %s165 = sphi 0, %s163
      %s166 = sphi 0, %s165
      %s180 = sphi 0, %s166
      %s184 = sphi 0, %s184
      %s186 = sphi 0, %s184
      %s187 = sphi 0, %s186
      %s201 = sphi 0, %s187
      %s207 = sphi 0, %s209
      %s210 = sphi 0, %s207
      %s211 = sphi 0, %s210
      %s227 = sphi 0, %s211
      %s231 = sphi 0, %s231
      %s233 = sphi 0, %s231
      %s234 = sphi 0, %s233
      %s248 = sphi 0, %s234
      %s254 = sphi 0, %s256
      %s257 = sphi 0, %s254
      %s258 = sphi 0, %s257
      %s274 = sphi 0, %s258
      %s278 = sphi 0, %s278
      %s280 = sphi 0, %s278
      %s281 = sphi 0, %s280
      %s295 = sphi 0, %s281
      %s299 = sphi 0, %s299
      %s301 = sphi 0, %s299
      %s302 = sphi 0, %s301
      %s316 = sphi 0, %s302
      %s320 = sphi 0, %s320
      %s322 = sphi 0, %s320
      %s323 = sphi 0, %s322
      %s337 = sphi 0, %s323
      %s343 = sphi 0, %s345
      %s346 = sphi 0, %s343
      %s347 = sphi 0, %s346
      %s363 = sphi 0, %s347
    $region4: #{transformer_forward.2} parent=1 // loop_header_branch
      %26 = sbr.rel (%p24) target = $region8
    $region5: #{transformer_forward.2} parent=1 // loop_body
      %s28 = ssub.s32 %s23, 1
      %s29 = ssub.s32 %s23, 2
      %s36 = sadd.s32 1, %s31
      %p37 = scmp.ge.s32.totalorder %s36, 2
      %s38 = scalar_select %p37, 0, %s36
      %s39 = sadd.s32 1, %s30
      %s40 = scalar_select %p37, %s39, %s30
      %p41 = scmp.ge.s32.totalorder %s40, 1
      %s42 = scalar_select %p41, 0, %s40
      %s43 = ssub.s32 %s30, %s42
      %p44 = scmp.eq.s32.totalorder %s43, 0
      %s46 = sadd.s32 %s45, 1
      %s47 = scalar_select %p44, %s45, %s46
      %p50 = pneg %p44
      %p51 = scmp.eq.s32.totalorder %s23, 1
      %p52 = por %p50, %p51
      %p53 = scmp.ne.s32.totalorder %s45, %s48
      %p54 = scmp.eq.s32.totalorder %s23, 0
      %p55 = por %p53, %p54
      %p56 = scmp.ne.s32.totalorder %s45, %s48
      %p57 = scmp.eq.s32.totalorder %s28, 1
      %p58 = por %p56, %p57
      %p59 = scmp.ne.s32.totalorder %s48, %s49
      %p60 = scmp.eq.s32.totalorder %s28, 0
      %p61 = por %p59, %p60
      %p62 = scmp.ne.s32.totalorder %s48, %s49
      %p63 = scmp.eq.s32.totalorder %s29, 1
      %p64 = por %p62, %p63
      %p66 = scmp.ne.s32.totalorder %s49, %s65
      %p67 = scmp.eq.s32.totalorder %s29, 0
      %p68 = por %p66, %p67
      %s69 = ssub.s32 %s31, %s38
      %p70 = scmp.eq.s32.totalorder %s69, 0
      %s72 = sadd.s32 %s71, 1
      %s73 = scalar_select %p70, %s71, %s72
      %p76 = pneg %p70
      %p77 = scmp.eq.s32.totalorder %s23, 1
      %p78 = por %p76, %p77
      %p79 = scmp.ne.s32.totalorder %s71, %s74
      %p80 = scmp.eq.s32.totalorder %s23, 0
      %p81 = por %p79, %p80
      %p82 = scmp.ne.s32.totalorder %s71, %s74
      %p83 = scmp.eq.s32.totalorder %s28, 1
      %p84 = por %p82, %p83
      %p85 = scmp.ne.s32.totalorder %s74, %s75
      %p86 = scmp.eq.s32.totalorder %s28, 0
      %p87 = por %p85, %p86
      %p88 = scmp.ne.s32.totalorder %s74, %s75
      %p89 = scmp.eq.s32.totalorder %s29, 1
      %p90 = por %p88, %p89
      %p92 = scmp.ne.s32.totalorder %s75, %s91
      %p93 = scmp.eq.s32.totalorder %s29, 0
      %p94 = por %p92, %p93
      %s96 = sadd.s32 %s95, 1
      %p99 = scmp.eq.s32.totalorder %s23, 1
      %p100 = scmp.ne.s32.totalorder %s95, %s97
      %p101 = scmp.eq.s32.totalorder %s23, 0
      %p102 = por %p100, %p101
      %p103 = scmp.ne.s32.totalorder %s95, %s97
      %p104 = scmp.eq.s32.totalorder %s28, 1
      %p105 = por %p103, %p104
      %p106 = scmp.ne.s32.totalorder %s97, %s98
      %p107 = scmp.eq.s32.totalorder %s28, 0
      %p108 = por %p106, %p107
      %p109 = scmp.ne.s32.totalorder %s97, %s98
      %p110 = scmp.eq.s32.totalorder %s29, 1
      %p111 = por %p109, %p110
      %p113 = scmp.ne.s32.totalorder %s98, %s112
      %p114 = scmp.eq.s32.totalorder %s29, 0
      %p115 = por %p113, %p114
      %s116 = ssub.s32 %s31, %s38
      %p117 = scmp.eq.s32.totalorder %s116, 0
      %s119 = sadd.s32 %s118, 1
      %s120 = scalar_select %p117, %s118, %s119
      %p123 = pneg %p117
      %p124 = scmp.eq.s32.totalorder %s23, 1
      %p125 = por %p123, %p124
      %p126 = scmp.ne.s32.totalorder %s118, %s121
      %p127 = scmp.eq.s32.totalorder %s23, 0
      %p128 = por %p126, %p127
      %p129 = scmp.ne.s32.totalorder %s118, %s121
      %p130 = scmp.eq.s32.totalorder %s28, 1
      %p131 = por %p129, %p130
      %p132 = scmp.ne.s32.totalorder %s121, %s122
      %p133 = scmp.eq.s32.totalorder %s28, 0
      %p134 = por %p132, %p133
      %p135 = scmp.ne.s32.totalorder %s121, %s122
      %p136 = scmp.eq.s32.totalorder %s29, 1
      %p137 = por %p135, %p136
      %p139 = scmp.ne.s32.totalorder %s122, %s138
      %p140 = scmp.eq.s32.totalorder %s29, 0
      %p141 = por %p139, %p140
      %s143 = sadd.s32 %s142, 1
      %p146 = scmp.eq.s32.totalorder %s23, 1
      %p147 = scmp.ne.s32.totalorder %s142, %s144
      %p148 = scmp.eq.s32.totalorder %s23, 0
      %p149 = por %p147, %p148
      %p150 = scmp.ne.s32.totalorder %s142, %s144
      %p151 = scmp.eq.s32.totalorder %s28, 1
      %p152 = por %p150, %p151
      %p153 = scmp.ne.s32.totalorder %s144, %s145
      %p154 = scmp.eq.s32.totalorder %s28, 0
      %p155 = por %p153, %p154
      %p156 = scmp.ne.s32.totalorder %s144, %s145
      %p157 = scmp.eq.s32.totalorder %s29, 1
      %p158 = por %p156, %p157
      %p160 = scmp.ne.s32.totalorder %s145, %s159
      %p161 = scmp.eq.s32.totalorder %s29, 0
      %p162 = por %p160, %p161
      %s164 = sadd.s32 %s163, 1
      %p167 = scmp.eq.s32.totalorder %s23, 1
      %p168 = scmp.ne.s32.totalorder %s163, %s165
      %p169 = scmp.eq.s32.totalorder %s23, 0
      %p170 = por %p168, %p169
      %p171 = scmp.ne.s32.totalorder %s163, %s165
      %p172 = scmp.eq.s32.totalorder %s28, 1
      %p173 = por %p171, %p172
      %p174 = scmp.ne.s32.totalorder %s165, %s166
      %p175 = scmp.eq.s32.totalorder %s28, 0
      %p176 = por %p174, %p175
      %p177 = scmp.ne.s32.totalorder %s165, %s166
      %p178 = scmp.eq.s32.totalorder %s29, 1
      %p179 = por %p177, %p178
      %p181 = scmp.ne.s32.totalorder %s166, %s180
      %p182 = scmp.eq.s32.totalorder %s29, 0
      %p183 = por %p181, %p182
      %s185 = sadd.s32 %s184, 1
      %p188 = scmp.eq.s32.totalorder %s23, 1
      %p189 = scmp.ne.s32.totalorder %s184, %s186
      %p190 = scmp.eq.s32.totalorder %s23, 0
      %p191 = por %p189, %p190
      %p192 = scmp.ne.s32.totalorder %s184, %s186
      %p193 = scmp.eq.s32.totalorder %s28, 1
      %p194 = por %p192, %p193
      %p195 = scmp.ne.s32.totalorder %s186, %s187
      %p196 = scmp.eq.s32.totalorder %s28, 0
      %p197 = por %p195, %p196
      %p198 = scmp.ne.s32.totalorder %s186, %s187
      %p199 = scmp.eq.s32.totalorder %s29, 1
      %p200 = por %p198, %p199
      %p202 = scmp.ne.s32.totalorder %s187, %s201
      %p203 = scmp.eq.s32.totalorder %s29, 0
      %p204 = por %p202, %p203
      %s205 = ssub.s32 %s31, %s38
      %p206 = scmp.eq.s32.totalorder %s205, 0
      %s208 = sadd.s32 %s207, 1
      %s209 = scalar_select %p206, %s207, %s208
      %p212 = pneg %p206
      %p213 = scmp.eq.s32.totalorder %s23, 1
      %p214 = por %p212, %p213
      %p215 = scmp.ne.s32.totalorder %s207, %s210
      %p216 = scmp.eq.s32.totalorder %s23, 0
      %p217 = por %p215, %p216
      %p218 = scmp.ne.s32.totalorder %s207, %s210
      %p219 = scmp.eq.s32.totalorder %s28, 1
      %p220 = por %p218, %p219
      %p221 = scmp.ne.s32.totalorder %s210, %s211
      %p222 = scmp.eq.s32.totalorder %s28, 0
      %p223 = por %p221, %p222
      %p224 = scmp.ne.s32.totalorder %s210, %s211
      %p225 = scmp.eq.s32.totalorder %s29, 1
      %p226 = por %p224, %p225
      %p228 = scmp.ne.s32.totalorder %s211, %s227
      %p229 = scmp.eq.s32.totalorder %s29, 0
      %p230 = por %p228, %p229
      %s232 = sadd.s32 %s231, 1
      %p235 = scmp.eq.s32.totalorder %s23, 1
      %p236 = scmp.ne.s32.totalorder %s231, %s233
      %p237 = scmp.eq.s32.totalorder %s23, 0
      %p238 = por %p236, %p237
      %p239 = scmp.ne.s32.totalorder %s231, %s233
      %p240 = scmp.eq.s32.totalorder %s28, 1
      %p241 = por %p239, %p240
      %p242 = scmp.ne.s32.totalorder %s233, %s234
      %p243 = scmp.eq.s32.totalorder %s28, 0
      %p244 = por %p242, %p243
      %p245 = scmp.ne.s32.totalorder %s233, %s234
      %p246 = scmp.eq.s32.totalorder %s29, 1
      %p247 = por %p245, %p246
      %p249 = scmp.ne.s32.totalorder %s234, %s248
      %p250 = scmp.eq.s32.totalorder %s29, 0
      %p251 = por %p249, %p250
      %s252 = ssub.s32 %s31, %s38
      %p253 = scmp.eq.s32.totalorder %s252, 0
      %s255 = sadd.s32 %s254, 1
      %s256 = scalar_select %p253, %s254, %s255
      %p259 = pneg %p253
      %p260 = scmp.eq.s32.totalorder %s23, 1
      %p261 = por %p259, %p260
      %p262 = scmp.ne.s32.totalorder %s254, %s257
      %p263 = scmp.eq.s32.totalorder %s23, 0
      %p264 = por %p262, %p263
      %p265 = scmp.ne.s32.totalorder %s254, %s257
      %p266 = scmp.eq.s32.totalorder %s28, 1
      %p267 = por %p265, %p266
      %p268 = scmp.ne.s32.totalorder %s257, %s258
      %p269 = scmp.eq.s32.totalorder %s28, 0
      %p270 = por %p268, %p269
      %p271 = scmp.ne.s32.totalorder %s257, %s258
      %p272 = scmp.eq.s32.totalorder %s29, 1
      %p273 = por %p271, %p272
      %p275 = scmp.ne.s32.totalorder %s258, %s274
      %p276 = scmp.eq.s32.totalorder %s29, 0
      %p277 = por %p275, %p276
      %s279 = sadd.s32 %s278, 1
      %p282 = scmp.eq.s32.totalorder %s23, 1
      %p283 = scmp.ne.s32.totalorder %s278, %s280
      %p284 = scmp.eq.s32.totalorder %s23, 0
      %p285 = por %p283, %p284
      %p286 = scmp.ne.s32.totalorder %s278, %s280
      %p287 = scmp.eq.s32.totalorder %s28, 1
      %p288 = por %p286, %p287
      %p289 = scmp.ne.s32.totalorder %s280, %s281
      %p290 = scmp.eq.s32.totalorder %s28, 0
      %p291 = por %p289, %p290
      %p292 = scmp.ne.s32.totalorder %s280, %s281
      %p293 = scmp.eq.s32.totalorder %s29, 1
      %p294 = por %p292, %p293
      %p296 = scmp.ne.s32.totalorder %s281, %s295
      %p297 = scmp.eq.s32.totalorder %s29, 0
      %p298 = por %p296, %p297
      %s300 = sadd.s32 %s299, 1
      %p303 = scmp.eq.s32.totalorder %s23, 1
      %p304 = scmp.ne.s32.totalorder %s299, %s301
      %p305 = scmp.eq.s32.totalorder %s23, 0
      %p306 = por %p304, %p305
      %p307 = scmp.ne.s32.totalorder %s299, %s301
      %p308 = scmp.eq.s32.totalorder %s28, 1
      %p309 = por %p307, %p308
      %p310 = scmp.ne.s32.totalorder %s301, %s302
      %p311 = scmp.eq.s32.totalorder %s28, 0
      %p312 = por %p310, %p311
      %p313 = scmp.ne.s32.totalorder %s301, %s302
      %p314 = scmp.eq.s32.totalorder %s29, 1
      %p315 = por %p313, %p314
      %p317 = scmp.ne.s32.totalorder %s302, %s316
      %p318 = scmp.eq.s32.totalorder %s29, 0
      %p319 = por %p317, %p318
      %s321 = sadd.s32 %s320, 1
      %p324 = scmp.eq.s32.totalorder %s23, 1
      %p325 = scmp.ne.s32.totalorder %s320, %s322
      %p326 = scmp.eq.s32.totalorder %s23, 0
      %p327 = por %p325, %p326
      %p328 = scmp.ne.s32.totalorder %s320, %s322
      %p329 = scmp.eq.s32.totalorder %s28, 1
      %p330 = por %p328, %p329
      %p331 = scmp.ne.s32.totalorder %s322, %s323
      %p332 = scmp.eq.s32.totalorder %s28, 0
      %p333 = por %p331, %p332
      %p334 = scmp.ne.s32.totalorder %s322, %s323
      %p335 = scmp.eq.s32.totalorder %s29, 1
      %p336 = por %p334, %p335
      %p338 = scmp.ne.s32.totalorder %s323, %s337
      %p339 = scmp.eq.s32.totalorder %s29, 0
      %p340 = por %p338, %p339
      %s341 = ssub.s32 %s30, %s42
      %p342 = scmp.eq.s32.totalorder %s341, 0
      %s344 = sadd.s32 %s343, 1
      %s345 = scalar_select %p342, %s343, %s344
      %p348 = pneg %p342
      %p349 = scmp.eq.s32.totalorder %s23, 1
      %p350 = por %p348, %p349
      %p351 = scmp.ne.s32.totalorder %s343, %s346
      %p352 = scmp.eq.s32.totalorder %s23, 0
      %p353 = por %p351, %p352
      %p354 = scmp.ne.s32.totalorder %s343, %s346
      %p355 = scmp.eq.s32.totalorder %s28, 1
      %p356 = por %p354, %p355
      %p357 = scmp.ne.s32.totalorder %s346, %s347
      %p358 = scmp.eq.s32.totalorder %s28, 0
      %p359 = por %p357, %p358
      %p360 = scmp.ne.s32.totalorder %s346, %s347
      %p361 = scmp.eq.s32.totalorder %s29, 1
      %p362 = por %p360, %p361
      %p364 = scmp.ne.s32.totalorder %s347, %s363
      %p365 = scmp.eq.s32.totalorder %s29, 0
      %p366 = por %p364, %p365
      %p367 = scmp.le.s32.totalorder 1, %s23
      %p368 = scmp.lt.s32.totalorder %s23, 3
      %p369 = pnand %p367, %p368
      %p370 = pneg %p369
      // Predicated region
      $region9: #{transformer_forward.2} parent=5 // pred_check
        _
      $region10: #{transformer_forward.2} parent=5 // pred_check_branch
        %372 = sbr.rel (%p369) target = $region12
      $region11: #{transformer_forward.2} parent=5 // pred_region
        %s373 = ssub.s32 %s23, 1
        // Predicated region
        $region13: #{transformer_forward.2} parent=11 // pred_check
          %p374 = pneg %p61
        $region14: #{transformer_forward.2} parent=11 // pred_check_branch
          %376 = sbr.rel (%p374) target = $region16
        $region15: #{transformer_forward.2} parent=11 // pred_region
          %s377 = smul.u32 2, %s32
          %p378 = scmp.lt.s32.totalorder %s377, 1
          %s379 = scalar_select %p378, %s377, 1
          %s380 = smul.addr %s379, 8
          %s381 = scalar_lea.vmem %s0, %s380
          %s382 = smul.u32 2, %s32
        $region16: #{transformer_forward.2} parent=11 // pred_fallthru
          _
        // Predicated region
        $region17: #{transformer_forward.2} parent=11 // pred_check
          %p383 = pneg %p108
        $region18: #{transformer_forward.2} parent=11 // pred_check_branch
          %385 = sbr.rel (%p383) target = $region20
        $region19: #{transformer_forward.2} parent=11 // pred_region
          _
        $region20: #{transformer_forward.2} parent=11 // pred_fallthru
          _
        // Predicated region
        $region21: #{transformer_forward.2} parent=11 // pred_check
          %p386 = pneg %p155
        $region22: #{transformer_forward.2} parent=11 // pred_check_branch
          %388 = sbr.rel (%p386) target = $region24
        $region23: #{transformer_forward.2} parent=11 // pred_region
          _
        $region24: #{transformer_forward.2} parent=11 // pred_fallthru
          _
        // Predicated region
        $region25: #{transformer_forward.2} parent=11 // pred_check
          %p389 = pneg %p176
        $region26: #{transformer_forward.2} parent=11 // pred_check_branch
          %391 = sbr.rel (%p389) target = $region28
        $region27: #{transformer_forward.2} parent=11 // pred_region
          _
        $region28: #{transformer_forward.2} parent=11 // pred_fallthru
          _
        // Predicated region
        $region29: #{transformer_forward.2} parent=11 // pred_check
          %p392 = pneg %p197
        $region30: #{transformer_forward.2} parent=11 // pred_check_branch
          %394 = sbr.rel (%p392) target = $region32
        $region31: #{transformer_forward.2} parent=11 // pred_region
          _
        $region32: #{transformer_forward.2} parent=11 // pred_fallthru
          _
        // Predicated region
        $region33: #{transformer_forward.2} parent=11 // pred_check
          %p395 = pneg %p244
        $region34: #{transformer_forward.2} parent=11 // pred_check_branch
          %397 = sbr.rel (%p395) target = $region36
        $region35: #{transformer_forward.2} parent=11 // pred_region
          _
        $region36: #{transformer_forward.2} parent=11 // pred_fallthru
          _
        // Predicated region
        $region37: #{transformer_forward.2} parent=11 // pred_check
          %p398 = pneg %p291
        $region38: #{transformer_forward.2} parent=11 // pred_check_branch
          %400 = sbr.rel (%p398) target = $region40
        $region39: #{transformer_forward.2} parent=11 // pred_region
          _
        $region40: #{transformer_forward.2} parent=11 // pred_fallthru
          _
        // Predicated region
        $region41: #{transformer_forward.2} parent=11 // pred_check
          %p401 = pneg %p312
        $region42: #{transformer_forward.2} parent=11 // pred_check_branch
          %403 = sbr.rel (%p401) target = $region44
        $region43: #{transformer_forward.2} parent=11 // pred_region
          %405 = vsyncadd [#allocation5], 0
          %s407 = sshll.u32 %s11, 4
          %s408 = int_to_ptr.hbm [resolvable:$true] %s407
          %s409 = sshll.u32 [#allocation4], 4
          %s410 = int_to_ptr.vmem [resolvable:$true] %s409
          %412 = dma.hbm_to_vmem [thread:$0]  %s408, 32, %s410, [#allocation5]
        $region44: #{transformer_forward.2} parent=11 // pred_fallthru
          _
        // Predicated region
        $region45: #{transformer_forward.2} parent=11 // pred_check
          %p413 = pneg %p333
        $region46: #{transformer_forward.2} parent=11 // pred_check_branch
          %415 = sbr.rel (%p413) target = $region48
        $region47: #{transformer_forward.2} parent=11 // pred_region
          %417 = vsyncadd [#allocation5], 0
          %s419 = sshll.u32 %s12, 4
          %s420 = int_to_ptr.hbm [resolvable:$true] %s419
          %s421 = sshll.u32 [#allocation6], 4
          %s422 = int_to_ptr.vmem [resolvable:$true] %s421
          %424 = dma.hbm_to_vmem [thread:$0]  %s420, 32, %s422, [#allocation5]
        $region48: #{transformer_forward.2} parent=11 // pred_fallthru
          _
      $region12: #{transformer_forward.2} parent=5 // pred_fallthru
        _
      %p425 = scmp.lt.s32.totalorder %s23, 2
      // Predicated region
      $region49: #{transformer_forward.2} parent=5 // pred_check
        %p426 = pneg %p425
      $region50: #{transformer_forward.2} parent=5 // pred_check_branch
        %428 = sbr.rel (%p426) target = $region52
      $region51: #{transformer_forward.2} parent=5 // pred_region
        // Predicated region
        $region53: #{transformer_forward.2} parent=51 // pred_check
          %p429 = pneg %p81
        $region54: #{transformer_forward.2} parent=51 // pred_check_branch
          %431 = sbr.rel (%p429) target = $region56
        $region55: #{transformer_forward.2} parent=51 // pred_region
          %p432 = scmp.lt.s32.totalorder %s31, 1
          %s433 = scalar_select %p432, %s31, 1
          %s434 = smul.addr %s433, 4
          %s435 = smul.addr %s434, 4
          %s436 = scalar_lea.vmem %s1, %s435
        $region56: #{transformer_forward.2} parent=51 // pred_fallthru
          _
        // Predicated region
        $region57: #{transformer_forward.2} parent=51 // pred_check
          %p437 = pneg %p128
        $region58: #{transformer_forward.2} parent=51 // pred_check_branch
          %439 = sbr.rel (%p437) target = $region60
        $region59: #{transformer_forward.2} parent=51 // pred_region
          %p440 = scmp.lt.s32.totalorder %s31, 1
          %s441 = scalar_select %p440, %s31, 1
          %s442 = smul.addr %s441, 4
          %s443 = smul.addr %s442, 4
          %s444 = scalar_lea.vmem %s3, %s443
        $region60: #{transformer_forward.2} parent=51 // pred_fallthru
          _
        // Predicated region
        $region61: #{transformer_forward.2} parent=51 // pred_check
          %p445 = pneg %p217
        $region62: #{transformer_forward.2} parent=51 // pred_check_branch
          %447 = sbr.rel (%p445) target = $region64
        $region63: #{transformer_forward.2} parent=51 // pred_region
          %s448 = sand.u32 %s207, 1
          %s449 = scalar_lea.sflag [#allocation3], %s448
          %s450 = sand.u32 %s207, 1
          %s451 = smul.addr %s450, 16
          %s452 = scalar_lea.vmem [#allocation2], %s451
          %454 = vsyncadd %s449, 0
          %s455 = smul.addr %s31, 4
          %s456 = smul.addr %s455, 4
          %s457 = scalar_lea.hbm %s7, %s456
          %s458 = sshll.u32 %s457, 4
          %s459 = int_to_ptr.hbm [resolvable:$true] %s458
          %s460 = sshll.u32 %s452, 4
          %s461 = int_to_ptr.vmem [resolvable:$true] %s460
          %466 = dma.hbm_to_vmem [thread:$0]  %s459, 256, %s461, %s449, 64, 64, 4
        $region64: #{transformer_forward.2} parent=51 // pred_fallthru
          _
        // Predicated region
        $region65: #{transformer_forward.2} parent=51 // pred_check
          %p467 = pneg %p264
        $region66: #{transformer_forward.2} parent=51 // pred_check_branch
          %469 = sbr.rel (%p467) target = $region68
        $region67: #{transformer_forward.2} parent=51 // pred_region
          %p470 = scmp.lt.s32.totalorder %s31, 1
          %s471 = scalar_select %p470, %s31, 1
          %s472 = smul.addr %s471, 8
          %s473 = smul.addr %s472, 4
          %s474 = scalar_lea.vmem %s9, %s473
        $region68: #{transformer_forward.2} parent=51 // pred_fallthru
          _
      $region52: #{transformer_forward.2} parent=5 // pred_fallthru
        _
      %p475 = scmp.le.s32.totalorder 1, %s23
      %p476 = scmp.lt.s32.totalorder %s23, 3
      %p477 = pnand %p475, %p476
      %p478 = pneg %p477
      // Predicated region
      $region69: #{transformer_forward.2} parent=5 // pred_check
        _
      $region70: #{transformer_forward.2} parent=5 // pred_check_branch
        %480 = sbr.rel (%p477) target = $region72
      $region71: #{transformer_forward.2} parent=5 // pred_region
        %s481 = ssub.s32 %s23, 1
        %s482 = sand.u32 %s210, 1
        %s483 = scalar_lea.sflag [#allocation3], %s482
        %s484 = sand.u32 %s210, 1
        %s485 = smul.addr %s484, 16
        %s486 = scalar_lea.vmem [#allocation2], %s485
        // Predicated region
        $region73: #{transformer_forward.2} parent=71 // pred_check
          %p487 = pneg %p223
        $region74: #{transformer_forward.2} parent=71 // pred_check_branch
          %489 = sbr.rel (%p487) target = $region76
        $region75: #{transformer_forward.2} parent=71 // pred_region
          %491 = dma.done %s483, 256
        $region76: #{transformer_forward.2} parent=71 // pred_fallthru
          _
        // Predicated region
        $region77: #{transformer_forward.2} parent=71 // pred_check
          %p492 = pneg %p312
        $region78: #{transformer_forward.2} parent=71 // pred_check_branch
          %494 = sbr.rel (%p492) target = $region80
        $region79: #{transformer_forward.2} parent=71 // pred_region
          %496 = dma.done [#allocation5], 32
        $region80: #{transformer_forward.2} parent=71 // pred_fallthru
          _
        // Predicated region
        $region81: #{transformer_forward.2} parent=71 // pred_check
          %p497 = pneg %p333
        $region82: #{transformer_forward.2} parent=71 // pred_check_branch
          %499 = sbr.rel (%p497) target = $region84
        $region83: #{transformer_forward.2} parent=71 // pred_region
          %501 = dma.done [#allocation5], 32
        $region84: #{transformer_forward.2} parent=71 // pred_fallthru
          _
        %s502 = smul.u32 2, %s32
        %p503 = scmp.lt.s32.totalorder %s502, 1
        %s504 = scalar_select %p503, %s502, 1
        %s505 = smul.addr %s504, 8
        %s506 = scalar_lea.vmem %s0, %s505
        %p507 = pneg %p61
        %p508 = pneg %p58
        %p509 = scmp.lt.s32.totalorder %s33, 1
        %s510 = scalar_select %p509, %s33, 1
        %s511 = smul.addr %s510, 4
        %s512 = smul.addr %s511, 4
        %s513 = scalar_lea.vmem %s1, %s512
        %p514 = pneg %p87
        %p515 = pneg %p84
        %p516 = pneg %p108
        %p517 = pneg %p105
        %p518 = scmp.lt.s32.totalorder %s33, 1
        %s519 = scalar_select %p518, %s33, 1
        %s520 = smul.addr %s519, 4
        %s521 = smul.addr %s520, 4
        %s522 = scalar_lea.vmem %s3, %s521
        %p523 = pneg %p134
        %p524 = pneg %p131
        %p525 = pneg %p155
        %p526 = pneg %p152
        %p527 = pneg %p176
        %p528 = pneg %p173
        %p529 = pneg %p197
        %p530 = pneg %p194
        %s531 = sand.u32 %s210, 1
        %s532 = scalar_lea.sflag [#allocation3], %s531
        %s533 = sand.u32 %s210, 1
        %s534 = smul.addr %s533, 16
        %s535 = scalar_lea.vmem [#allocation2], %s534
        %p536 = pneg %p223
        %p537 = pneg %p220
        %p538 = pneg %p244
        %p539 = pneg %p241
        %p540 = scmp.lt.s32.totalorder %s33, 1
        %s541 = scalar_select %p540, %s33, 1
        %s542 = smul.addr %s541, 8
        %s543 = smul.addr %s542, 4
        %s544 = scalar_lea.vmem %s9, %s543
        %p545 = pneg %p270
        %p546 = pneg %p267
        %p547 = pneg %p291
        %p548 = pneg %p288
        %p549 = pneg %p312
        %p550 = pneg %p309
        %p551 = pneg %p333
        %p552 = pneg %p330
        %p553 = pneg %p359
        %p554 = pneg %p356
        %s555 = smul.u32 2, %s32
        %p556 = scmp.lt.s32.totalorder %s555, 1
        %s557 = scalar_select %p556, %s555, 1
        %s558 = smul.addr %s557, 8
        %s559 = scalar_lea.vmem %s13, %s558
        %s560 = smul.u32 2, %s32
        %p561 = scmp.lt.s32.totalorder %s560, 1
        %s562 = scalar_select %p561, %s560, 1
        %s563 = smul.addr %s562, 8
        %s564 = scalar_lea.vmem %s0, %s563
        %s565 = smul.u32 2, %s32
        %p566 = scmp.lt.s32.totalorder %s33, 1
        %s567 = scalar_select %p566, %s33, 1
        %s568 = smul.addr %s567, 4
        %s569 = smul.addr %s568, 4
        %s570 = scalar_lea.vmem %s1, %s569
        %p571 = scmp.lt.s32.totalorder %s33, 1
        %s572 = scalar_select %p571, %s33, 1
        %s573 = smul.addr %s572, 4
        %s574 = smul.addr %s573, 4
        %s575 = scalar_lea.vmem %s3, %s574
        %p576 = scmp.lt.s32.totalorder %s33, 1
        %s577 = scalar_select %p576, %s33, 1
        %s578 = smul.addr %s577, 8
        %s579 = smul.addr %s578, 4
        %s580 = scalar_lea.vmem %s9, %s579
        %s581 = smul.u32 2, %s32
        %p582 = scmp.lt.s32.totalorder %s581, 1
        %s583 = scalar_select %p582, %s581, 1
        %s584 = smul.addr %s583, 8
        %s585 = scalar_lea.vmem %s13, %s584
        %s586 = smul.u32 2, %s32
        %p588 = scmp.eq.s32.totalorder %s33, 0
        // Predicated region
        $region85: #{transformer_forward.2} parent=71 // pred_check
          %p589 = pneg %p588
        $region86: #{transformer_forward.2} parent=71 // pred_check_branch
          %591 = sbr.rel (%p589) target = $region88
        $region87: #{transformer_forward.2} parent=71 // pred_region
          %v592 = vld [vmem:[%s564] sm:$0xff]
          %v593 = vld [vmem:[%s564 + $0x8] sm:$0xff]
          %vm594 = vcmask 261120
          %595 = vst.msk [vmem:[%s585] sm:$0xff] %vm594, %v592
          %596 = vst.msk [vmem:[%s585 + $0x8] sm:$0xff] %vm594, %v593
        $region88: #{transformer_forward.2} parent=71 // pred_fallthru
          _
        %v597 = vld [vmem:[%s585] sm:$0xff]
        %v598 = vld [vmem:[%s585 + $0x8] sm:$0xff]
        %v599 = vlaneseq
        %v600 = vshrl.u32 %v599, 7
        %v601 = vlaneseq
        %v602 = vand.u32 %v601, 127
        %vm603 = vcmp.gt.s32.totalorder %v602, %v600
        %v604 = vsel %vm603, -1e+30, 0.0
        %v605 = vld [vmem:[%s570] sm:$0xf]
        %v606 = vld [vmem:[%s570 + $0x4] sm:$0xf]
        %v607 = vld [vmem:[%s570 + $0x8] sm:$0xf]
        %v608 = vld [vmem:[%s570 + $0xc] sm:$0xf]
        %s609 = scalar_lea.vmem %s2, %s33
        %v610 = vld [vmem:[%s609] sm:$0x1]
        %v611 = vpack.c.bf16 %v598, %v597
        %v612 = vperm.slane %v610, 0
        %v617 = vunpack.c.l.b16 %v605
        %v618 = vunpack.c.l.b16 %v606
        %v619 = vunpack.c.l.b16 %v607
        %v620 = vunpack.c.l.b16 %v608
        %v621 = vpack.c.b16 %v618, %v617
        %v622 = vpack.c.b16 %v620, %v619
        %vm625 = vcmask 261120
        %v627 = vsel %vm625, %v611, 0
        %629 = vmatpush.bf16.msra.mxu0 0
        %630 = vmatpush.bf16.msra.mxu0 0
        %631 = vmatpush.bf16.msra.mxu0 0
        %632 = vmatpush.bf16.msra.mxu0 0
        %633 = vmatpush.bf16.msra.mxu0 0
        %634 = vmatpush.bf16.msra.mxu0 0
        %635 = vmatpush.bf16.msra.mxu0 %v622
        %636 = vmatpush.bf16.msra.mxu0 %v621
        %637 = vmatmul.bf16.gmra.mxu0 %v627
        %v638 = vpop.f32.mrf.mxu0
        %v639 = vadd.f32 %v612, %v638
        %v640 = vpop.f32.mrf.mxu0
        %v641 = vadd.f32 %v612, %v640
        %642 = vdwg.mxu0
        %v643 = vmul.f32 %v639, 0.35355338
        %v644 = vmul.f32 %v641, 0.35355338
        %v645 = vpack.c.bf16 %v643, %v643
        %v646 = vpack.c.bf16 %v644, %v644
        %v647 = vpack.c.bf16 %v639, %v639
        %v648 = vpack.c.bf16 %v641, %v641
        %651 = vrot.lane.b32.xlu0 %v645, 120
        %v652 = vpop.permute.xlu0 %651
        %653 = vrot.lane.b32.xlu0 %v646, 120
        %v654 = vpop.permute.xlu0 %653
        %655 = vrot.lane.b32.xlu0 %v645, 112
        %v656 = vpop.permute.xlu0 %655
        %657 = vrot.lane.b32.xlu0 %v646, 112
        %v658 = vpop.permute.xlu0 %657
        %659 = vrot.lane.b32.xlu0 %v645, 104
        %v660 = vpop.permute.xlu0 %659
        %661 = vrot.lane.b32.xlu0 %v646, 104
        %v662 = vpop.permute.xlu0 %661
        %665 = vrot.lane.b32.xlu0 %v647, 120
        %v666 = vpop.permute.xlu0 %665
        %667 = vrot.lane.b32.xlu0 %v648, 120
        %v668 = vpop.permute.xlu0 %667
        %669 = vrot.lane.b32.xlu0 %v647, 112
        %v670 = vpop.permute.xlu0 %669
        %671 = vrot.lane.b32.xlu0 %v648, 112
        %v672 = vpop.permute.xlu0 %671
        %673 = vrot.lane.b32.xlu0 %v647, 104
        %v674 = vpop.permute.xlu0 %673
        %675 = vrot.lane.b32.xlu0 %v648, 104
        %v676 = vpop.permute.xlu0 %675
        %v677 = vunpack.c.l.b16 %v647
        %v678 = vpack.c.b16 %v677, %v677
        %679 = vrot.lane.b32.xlu0 %v678, 96
        %v680 = vpop.permute.xlu0 %679
        %vm681 = vcmask 64512
        %v683 = vsel %vm681, %v645, 0
        %v686 = vsel %vm681, %v680, 0
        %688 = vmatpush.bf16.xpose.msra.mxu0 0
        %689 = vmatpush.bf16.xpose.msra.mxu0 0
        %690 = vmatpush.bf16.xpose.msra.mxu0 0
        %691 = vmatpush.bf16.xpose.msra.mxu0 0
        %692 = vmatpush.bf16.xpose.msra.mxu0 0
        %693 = vmatpush.bf16.xpose.msra.mxu0 0
        %694 = vmatpush.bf16.xpose.msra.mxu0 0
        %695 = vmatpush.bf16.xpose.msra.mxu0 %v686
        %696 = vmatmul.bf16.gmra.mxu0 %v683
        %v697 = vpop.f32.mrf.mxu0
        %v698 = vadd.f32 %v604, %v697
        %v699 = vpop.f32.mrf.mxu0
        %700 = vdwg.mxu0
        %v701 = vunpack.c.l.b16 %v648
        %v702 = vpack.c.b16 %v701, %v701
        %703 = vrot.lane.b32.xlu0 %v702, 96
        %v704 = vpop.permute.xlu0 %703
        %v706 = vsel %vm681, %v646, 0
        %v709 = vsel %vm681, %v704, 0
        %711 = vmatpush.bf16.xpose.msra.mxu0 0
        %712 = vmatpush.bf16.xpose.msra.mxu0 0
        %713 = vmatpush.bf16.xpose.msra.mxu0 0
        %714 = vmatpush.bf16.xpose.msra.mxu0 0
        %715 = vmatpush.bf16.xpose.msra.mxu0 0
        %716 = vmatpush.bf16.xpose.msra.mxu0 0
        %717 = vmatpush.bf16.xpose.msra.mxu0 0
        %718 = vmatpush.bf16.xpose.msra.mxu0 %v709
        %719 = vmatmul.bf16.gmra.mxu0 %v706
        %v720 = vpop.f32.mrf.mxu0
        %v721 = vadd.f32 %v604, %v720
        %v722 = vpop.f32.mrf.mxu0
        %723 = vdwg.mxu0
        %v724 = vunpack.c.l.b16 %v666
        %v725 = vpack.c.b16 %v724, %v724
        %726 = vrot.lane.b32.xlu0 %v725, 96
        %v727 = vpop.permute.xlu0 %726
        %v729 = vsel %vm681, %v652, 0
        %v732 = vsel %vm681, %v727, 0
        %734 = vmatpush.bf16.xpose.msra.mxu0 0
        %735 = vmatpush.bf16.xpose.msra.mxu0 0
        %736 = vmatpush.bf16.xpose.msra.mxu0 0
        %737 = vmatpush.bf16.xpose.msra.mxu0 0
        %738 = vmatpush.bf16.xpose.msra.mxu0 0
        %739 = vmatpush.bf16.xpose.msra.mxu0 0
        %740 = vmatpush.bf16.xpose.msra.mxu0 0
        %741 = vmatpush.bf16.xpose.msra.mxu0 %v732
        %742 = vmatmul.bf16.gmra.mxu0 %v729
        %v743 = vpop.f32.mrf.mxu0
        %v744 = vadd.f32 %v604, %v743
        %v745 = vpop.f32.mrf.mxu0
        %746 = vdwg.mxu0
        %v747 = vunpack.c.l.b16 %v668
        %v748 = vpack.c.b16 %v747, %v747
        %749 = vrot.lane.b32.xlu0 %v748, 96
        %v750 = vpop.permute.xlu0 %749
        %v752 = vsel %vm681, %v654, 0
        %v755 = vsel %vm681, %v750, 0
        %757 = vmatpush.bf16.xpose.msra.mxu0 0
        %758 = vmatpush.bf16.xpose.msra.mxu0 0
        %759 = vmatpush.bf16.xpose.msra.mxu0 0
        %760 = vmatpush.bf16.xpose.msra.mxu0 0
        %761 = vmatpush.bf16.xpose.msra.mxu0 0
        %762 = vmatpush.bf16.xpose.msra.mxu0 0
        %763 = vmatpush.bf16.xpose.msra.mxu0 0
        %764 = vmatpush.bf16.xpose.msra.mxu0 %v755
        %765 = vmatmul.bf16.gmra.mxu0 %v752
        %v766 = vpop.f32.mrf.mxu0
        %v767 = vadd.f32 %v604, %v766
        %v768 = vpop.f32.mrf.mxu0
        %769 = vdwg.mxu0
        %v770 = vunpack.c.l.b16 %v670
        %v771 = vpack.c.b16 %v770, %v770
        %772 = vrot.lane.b32.xlu0 %v771, 96
        %v773 = vpop.permute.xlu0 %772
        %v775 = vsel %vm681, %v656, 0
        %v778 = vsel %vm681, %v773, 0
        %780 = vmatpush.bf16.xpose.msra.mxu0 0
        %781 = vmatpush.bf16.xpose.msra.mxu0 0
        %782 = vmatpush.bf16.xpose.msra.mxu0 0
        %783 = vmatpush.bf16.xpose.msra.mxu0 0
        %784 = vmatpush.bf16.xpose.msra.mxu0 0
        %785 = vmatpush.bf16.xpose.msra.mxu0 0
        %786 = vmatpush.bf16.xpose.msra.mxu0 0
        %787 = vmatpush.bf16.xpose.msra.mxu0 %v778
        %788 = vmatmul.bf16.gmra.mxu0 %v775
        %v789 = vpop.f32.mrf.mxu0
        %v790 = vadd.f32 %v604, %v789
        %v791 = vpop.f32.mrf.mxu0
        %792 = vdwg.mxu0
        %v793 = vunpack.c.l.b16 %v672
        %v794 = vpack.c.b16 %v793, %v793
        %795 = vrot.lane.b32.xlu0 %v794, 96
        %v796 = vpop.permute.xlu0 %795
        %v798 = vsel %vm681, %v658, 0
        %v801 = vsel %vm681, %v796, 0
        %803 = vmatpush.bf16.xpose.msra.mxu0 0
        %804 = vmatpush.bf16.xpose.msra.mxu0 0
        %805 = vmatpush.bf16.xpose.msra.mxu0 0
        %806 = vmatpush.bf16.xpose.msra.mxu0 0
        %807 = vmatpush.bf16.xpose.msra.mxu0 0
        %808 = vmatpush.bf16.xpose.msra.mxu0 0
        %809 = vmatpush.bf16.xpose.msra.mxu0 0
        %810 = vmatpush.bf16.xpose.msra.mxu0 %v801
        %811 = vmatmul.bf16.gmra.mxu0 %v798
        %v812 = vpop.f32.mrf.mxu0
        %v813 = vadd.f32 %v604, %v812
        %v814 = vpop.f32.mrf.mxu0
        %815 = vdwg.mxu0
        %v816 = vunpack.c.l.b16 %v674
        %v817 = vpack.c.b16 %v816, %v816
        %818 = vrot.lane.b32.xlu0 %v817, 96
        %v819 = vpop.permute.xlu0 %818
        %v821 = vsel %vm681, %v660, 0
        %v824 = vsel %vm681, %v819, 0
        %826 = vmatpush.bf16.xpose.msra.mxu0 0
        %827 = vmatpush.bf16.xpose.msra.mxu0 0
        %828 = vmatpush.bf16.xpose.msra.mxu0 0
        %829 = vmatpush.bf16.xpose.msra.mxu0 0
        %830 = vmatpush.bf16.xpose.msra.mxu0 0
        %831 = vmatpush.bf16.xpose.msra.mxu0 0
        %832 = vmatpush.bf16.xpose.msra.mxu0 0
        %833 = vmatpush.bf16.xpose.msra.mxu0 %v824
        %834 = vmatmul.bf16.gmra.mxu0 %v821
        %v835 = vpop.f32.mrf.mxu0
        %v836 = vadd.f32 %v604, %v835
        %v837 = vpop.f32.mrf.mxu0
        %838 = vdwg.mxu0
        %v839 = vunpack.c.l.b16 %v676
        %v840 = vpack.c.b16 %v839, %v839
        %841 = vrot.lane.b32.xlu0 %v840, 96
        %v842 = vpop.permute.xlu0 %841
        %v844 = vsel %vm681, %v662, 0
        %v847 = vsel %vm681, %v842, 0
        %849 = vmatpush.bf16.xpose.msra.mxu0 0
        %850 = vmatpush.bf16.xpose.msra.mxu0 0
        %851 = vmatpush.bf16.xpose.msra.mxu0 0
        %852 = vmatpush.bf16.xpose.msra.mxu0 0
        %853 = vmatpush.bf16.xpose.msra.mxu0 0
        %854 = vmatpush.bf16.xpose.msra.mxu0 0
        %855 = vmatpush.bf16.xpose.msra.mxu0 0
        %856 = vmatpush.bf16.xpose.msra.mxu0 %v847
        %857 = vmatmul.bf16.gmra.mxu0 %v844
        %v858 = vpop.f32.mrf.mxu0
        %v859 = vadd.f32 %v604, %v858
        %v860 = vpop.f32.mrf.mxu0
        %861 = vdwg.mxu0
        %v862 = vsel %vm681, %v698, -inf
        %863 = vmax.xlane.f32.xlu0 %v862
        %v864 = vpop.xlane.xlu0 %863
        %v865 = vsel %vm681, %v721, -inf
        %866 = vmax.xlane.f32.xlu0 %v865
        %v867 = vpop.xlane.xlu0 %866
        %v868 = vsel %vm681, %v744, -inf
        %869 = vmax.xlane.f32.xlu0 %v868
        %v870 = vpop.xlane.xlu0 %869
        %v871 = vsel %vm681, %v767, -inf
        %872 = vmax.xlane.f32.xlu0 %v871
        %v873 = vpop.xlane.xlu0 %872
        %v874 = vsel %vm681, %v790, -inf
        %875 = vmax.xlane.f32.xlu0 %v874
        %v876 = vpop.xlane.xlu0 %875
        %v877 = vsel %vm681, %v813, -inf
        %878 = vmax.xlane.f32.xlu0 %v877
        %v879 = vpop.xlane.xlu0 %878
        %v880 = vsel %vm681, %v836, -inf
        %881 = vmax.xlane.f32.xlu0 %v880
        %v882 = vpop.xlane.xlu0 %881
        %v883 = vsel %vm681, %v859, -inf
        %884 = vmax.xlane.f32.xlu0 %v883
        %v885 = vpop.xlane.xlu0 %884
        %v886 = vsub.f32 %v698, %v864
        %v887 = vsub.f32 %v721, %v867
        %v888 = vsub.f32 %v744, %v870
        %v889 = vsub.f32 %v767, %v873
        %v890 = vsub.f32 %v790, %v876
        %v891 = vsub.f32 %v813, %v879
        %v892 = vsub.f32 %v836, %v882
        %v893 = vsub.f32 %v859, %v885
        %v894 = vmul.f32 %v886, 1.442695
        %v895 = vpow.pop %v894
        %v896 = vmul.f32 %v887, 1.442695
        %v897 = vpow.pop %v896
        %v898 = vmul.f32 %v888, 1.442695
        %v899 = vpow.pop %v898
        %v900 = vmul.f32 %v889, 1.442695
        %v901 = vpow.pop %v900
        %v902 = vmul.f32 %v890, 1.442695
        %v903 = vpow.pop %v902
        %v904 = vmul.f32 %v891, 1.442695
        %v905 = vpow.pop %v904
        %v906 = vmul.f32 %v892, 1.442695
        %v907 = vpow.pop %v906
        %v908 = vmul.f32 %v893, 1.442695
        %v909 = vpow.pop %v908
        %v910 = vsel %vm681, %v895, 0.0
        %911 = vadd.xlane.f32.xlu0 %v910
        %v912 = vpop.xlane.xlu0 %911
        %v913 = vsel %vm681, %v897, 0.0
        %914 = vadd.xlane.f32.xlu0 %v913
        %v915 = vpop.xlane.xlu0 %914
        %v916 = vsel %vm681, %v899, 0.0
        %917 = vadd.xlane.f32.xlu0 %v916
        %v918 = vpop.xlane.xlu0 %917
        %v919 = vsel %vm681, %v901, 0.0
        %920 = vadd.xlane.f32.xlu0 %v919
        %v921 = vpop.xlane.xlu0 %920
        %v922 = vsel %vm681, %v903, 0.0
        %923 = vadd.xlane.f32.xlu0 %v922
        %v924 = vpop.xlane.xlu0 %923
        %v925 = vsel %vm681, %v905, 0.0
        %926 = vadd.xlane.f32.xlu0 %v925
        %v927 = vpop.xlane.xlu0 %926
        %v928 = vsel %vm681, %v907, 0.0
        %929 = vadd.xlane.f32.xlu0 %v928
        %v930 = vpop.xlane.xlu0 %929
        %v931 = vsel %vm681, %v909, 0.0
        %932 = vadd.xlane.f32.xlu0 %v931
        %v933 = vpop.xlane.xlu0 %932
        %v934 = vrcp.pop %v912
        %v935 = vrcp.pop %v915
        %v936 = vrcp.pop %v918
        %v937 = vrcp.pop %v921
        %v938 = vrcp.pop %v924
        %v939 = vrcp.pop %v927
        %v940 = vrcp.pop %v930
        %v941 = vrcp.pop %v933
        %v942 = vmul.f32 %v895, %v934
        %v943 = vmul.f32 %v897, %v935
        %v944 = vmul.f32 %v899, %v936
        %v945 = vmul.f32 %v901, %v937
        %v946 = vmul.f32 %v903, %v938
        %v947 = vmul.f32 %v905, %v939
        %v948 = vmul.f32 %v907, %v940
        %v949 = vmul.f32 %v909, %v941
        %v950 = vpack.c.bf16 %v942, %v942
        %v951 = vpack.c.bf16 %v943, %v943
        %v952 = vpack.c.bf16 %v944, %v944
        %v953 = vpack.c.bf16 %v945, %v945
        %v954 = vpack.c.bf16 %v946, %v946
        %v955 = vpack.c.bf16 %v947, %v947
        %v956 = vpack.c.bf16 %v948, %v948
        %v957 = vpack.c.bf16 %v949, %v949
        %958 = vrot.lane.b32.xlu0 %v678, 64
        %v959 = vpop.permute.xlu0 %958
        %v961 = vsel %vm681, %v950, 0
        %vm963 = vcmask 1043456
        %v965 = vsel %vm963, %v959, 0
        %967 = vmatpush.bf16.msra.mxu0 0
        %968 = vmatpush.bf16.msra.mxu0 0
        %969 = vmatpush.bf16.msra.mxu0 0
        %970 = vmatpush.bf16.msra.mxu0 0
        %971 = vmatpush.bf16.msra.mxu0 0
        %972 = vmatpush.bf16.msra.mxu0 0
        %973 = vmatpush.bf16.msra.mxu0 0
        %974 = vmatpush.bf16.msra.mxu0 %v965
        %975 = vmatmul.bf16.gmra.mxu0 %v961
        %v976 = vpop.f32.mrf.mxu0
        %v977 = vadd.f32 0.0, %v976
        %v978 = vpop.f32.mrf.mxu0
        %979 = vdwg.mxu0
        %980 = vrot.lane.b32.xlu0 %v702, 64
        %v981 = vpop.permute.xlu0 %980
        %v983 = vsel %vm681, %v951, 0
        %v986 = vsel %vm963, %v981, 0
        %988 = vmatpush.bf16.msra.mxu0 0
        %989 = vmatpush.bf16.msra.mxu0 0
        %990 = vmatpush.bf16.msra.mxu0 0
        %991 = vmatpush.bf16.msra.mxu0 0
        %992 = vmatpush.bf16.msra.mxu0 0
        %993 = vmatpush.bf16.msra.mxu0 0
        %994 = vmatpush.bf16.msra.mxu0 0
        %995 = vmatpush.bf16.msra.mxu0 %v986
        %996 = vmatmul.bf16.gmra.mxu0 %v983
        %v997 = vpop.f32.mrf.mxu0
        %v998 = vadd.f32 0.0, %v997
        %v999 = vpop.f32.mrf.mxu0
        %1000 = vdwg.mxu0
        %1001 = vrot.lane.b32.xlu0 %v725, 64
        %v1002 = vpop.permute.xlu0 %1001
        %v1004 = vsel %vm681, %v952, 0
        %v1007 = vsel %vm963, %v1002, 0
        %1009 = vmatpush.bf16.msra.mxu0 0
        %1010 = vmatpush.bf16.msra.mxu0 0
        %1011 = vmatpush.bf16.msra.mxu0 0
        %1012 = vmatpush.bf16.msra.mxu0 0
        %1013 = vmatpush.bf16.msra.mxu0 0
        %1014 = vmatpush.bf16.msra.mxu0 0
        %1015 = vmatpush.bf16.msra.mxu0 0
        %1016 = vmatpush.bf16.msra.mxu0 %v1007
        %1017 = vmatmul.bf16.gmra.mxu0 %v1004
        %v1018 = vpop.f32.mrf.mxu0
        %v1019 = vadd.f32 0.0, %v1018
        %v1020 = vpop.f32.mrf.mxu0
        %1021 = vdwg.mxu0
        %1022 = vrot.lane.b32.xlu0 %v748, 64
        %v1023 = vpop.permute.xlu0 %1022
        %v1025 = vsel %vm681, %v953, 0
        %v1028 = vsel %vm963, %v1023, 0
        %1030 = vmatpush.bf16.msra.mxu0 0
        %1031 = vmatpush.bf16.msra.mxu0 0
        %1032 = vmatpush.bf16.msra.mxu0 0
        %1033 = vmatpush.bf16.msra.mxu0 0
        %1034 = vmatpush.bf16.msra.mxu0 0
        %1035 = vmatpush.bf16.msra.mxu0 0
        %1036 = vmatpush.bf16.msra.mxu0 0
        %1037 = vmatpush.bf16.msra.mxu0 %v1028
        %1038 = vmatmul.bf16.gmra.mxu0 %v1025
        %v1039 = vpop.f32.mrf.mxu0
        %v1040 = vadd.f32 0.0, %v1039
        %v1041 = vpop.f32.mrf.mxu0
        %1042 = vdwg.mxu0
        %1043 = vrot.lane.b32.xlu0 %v771, 64
        %v1044 = vpop.permute.xlu0 %1043
        %v1046 = vsel %vm681, %v954, 0
        %v1049 = vsel %vm963, %v1044, 0
        %1051 = vmatpush.bf16.msra.mxu0 0
        %1052 = vmatpush.bf16.msra.mxu0 0
        %1053 = vmatpush.bf16.msra.mxu0 0
        %1054 = vmatpush.bf16.msra.mxu0 0
        %1055 = vmatpush.bf16.msra.mxu0 0
        %1056 = vmatpush.bf16.msra.mxu0 0
        %1057 = vmatpush.bf16.msra.mxu0 0
        %1058 = vmatpush.bf16.msra.mxu0 %v1049
        %1059 = vmatmul.bf16.gmra.mxu0 %v1046
        %v1060 = vpop.f32.mrf.mxu0
        %v1061 = vadd.f32 0.0, %v1060
        %v1062 = vpop.f32.mrf.mxu0
        %1063 = vdwg.mxu0
        %1064 = vrot.lane.b32.xlu0 %v794, 64
        %v1065 = vpop.permute.xlu0 %1064
        %v1067 = vsel %vm681, %v955, 0
        %v1070 = vsel %vm963, %v1065, 0
        %1072 = vmatpush.bf16.msra.mxu0 0
        %1073 = vmatpush.bf16.msra.mxu0 0
        %1074 = vmatpush.bf16.msra.mxu0 0
        %1075 = vmatpush.bf16.msra.mxu0 0
        %1076 = vmatpush.bf16.msra.mxu0 0
        %1077 = vmatpush.bf16.msra.mxu0 0
        %1078 = vmatpush.bf16.msra.mxu0 0
        %1079 = vmatpush.bf16.msra.mxu0 %v1070
        %1080 = vmatmul.bf16.gmra.mxu0 %v1067
        %v1081 = vpop.f32.mrf.mxu0
        %v1082 = vadd.f32 0.0, %v1081
        %v1083 = vpop.f32.mrf.mxu0
        %1084 = vdwg.mxu0
        %1085 = vrot.lane.b32.xlu0 %v817, 64
        %v1086 = vpop.permute.xlu0 %1085
        %v1088 = vsel %vm681, %v956, 0
        %v1091 = vsel %vm963, %v1086, 0
        %1093 = vmatpush.bf16.msra.mxu0 0
        %1094 = vmatpush.bf16.msra.mxu0 0
        %1095 = vmatpush.bf16.msra.mxu0 0
        %1096 = vmatpush.bf16.msra.mxu0 0
        %1097 = vmatpush.bf16.msra.mxu0 0
        %1098 = vmatpush.bf16.msra.mxu0 0
        %1099 = vmatpush.bf16.msra.mxu0 0
        %1100 = vmatpush.bf16.msra.mxu0 %v1091
        %1101 = vmatmul.bf16.gmra.mxu0 %v1088
        %v1102 = vpop.f32.mrf.mxu0
        %v1103 = vadd.f32 0.0, %v1102
        %v1104 = vpop.f32.mrf.mxu0
        %1105 = vdwg.mxu0
        %1106 = vrot.lane.b32.xlu0 %v840, 64
        %v1107 = vpop.permute.xlu0 %1106
        %v1109 = vsel %vm681, %v957, 0
        %v1112 = vsel %vm963, %v1107, 0
        %1114 = vmatpush.bf16.msra.mxu0 0
        %1115 = vmatpush.bf16.msra.mxu0 0
        %1116 = vmatpush.bf16.msra.mxu0 0
        %1117 = vmatpush.bf16.msra.mxu0 0
        %1118 = vmatpush.bf16.msra.mxu0 0
        %1119 = vmatpush.bf16.msra.mxu0 0
        %1120 = vmatpush.bf16.msra.mxu0 0
        %1121 = vmatpush.bf16.msra.mxu0 %v1112
        %1122 = vmatmul.bf16.gmra.mxu0 %v1109
        %v1123 = vpop.f32.mrf.mxu0
        %v1124 = vadd.f32 0.0, %v1123
        %v1125 = vpop.f32.mrf.mxu0
        %1126 = vdwg.mxu0
        %1129 = vrot.lane.b32.xlu0 %v1019, 8
        %v1130 = vpop.permute.xlu0 %1129
        %1131 = vrot.lane.b32.xlu0 %v1040, 8
        %v1132 = vpop.permute.xlu0 %1131
        %1137 = vrot.lane.b32.xlu0 %v1061, 16
        %v1138 = vpop.permute.xlu0 %1137
        %1139 = vrot.lane.b32.xlu0 %v1082, 16
        %v1140 = vpop.permute.xlu0 %1139
        %1145 = vrot.lane.b32.xlu0 %v1103, 24
        %v1146 = vpop.permute.xlu0 %1145
        %1147 = vrot.lane.b32.xlu0 %v1124, 24
        %v1148 = vpop.permute.xlu0 %1147
        %v1151 = vsel %vm681, %v977, %v1130
        %v1152 = vsel %vm681, %v998, %v1132
        %vm1153 = vcmask 130048
        %v1154 = vsel %vm1153, %v1151, %v1138
        %v1155 = vsel %vm1153, %v1152, %v1140
        %vm1156 = vcmask 195584
        %v1157 = vsel %vm1156, %v1154, %v1146
        %v1158 = vsel %vm1156, %v1155, %v1148
        %v1159 = vld [vmem:[%s575] sm:$0xf]
        %v1160 = vld [vmem:[%s575 + $0x4] sm:$0xf]
        %v1161 = vld [vmem:[%s575 + $0x8] sm:$0xf]
        %v1162 = vld [vmem:[%s575 + $0xc] sm:$0xf]
        %s1163 = scalar_lea.vmem %s4, %s33
        %v1164 = vld [vmem:[%s1163] sm:$0x1]
        %v1165 = vpack.c.bf16 %v1158, %v1157
        %v1166 = vperm.slane %v1164, 0
        %v1171 = vunpack.c.l.b16 %v1159
        %v1172 = vunpack.c.l.b16 %v1160
        %v1173 = vunpack.c.l.b16 %v1161
        %v1174 = vunpack.c.l.b16 %v1162
        %v1175 = vpack.c.b16 %v1172, %v1171
        %v1176 = vpack.c.b16 %v1174, %v1173
        %v1180 = vsel %vm625, %v1165, 0
        %1182 = vmatpush.bf16.msra.mxu0 0
        %1183 = vmatpush.bf16.msra.mxu0 0
        %1184 = vmatpush.bf16.msra.mxu0 0
        %1185 = vmatpush.bf16.msra.mxu0 0
        %1186 = vmatpush.bf16.msra.mxu0 0
        %1187 = vmatpush.bf16.msra.mxu0 0
        %1188 = vmatpush.bf16.msra.mxu0 %v1176
        %1189 = vmatpush.bf16.msra.mxu0 %v1175
        %1190 = vmatmul.bf16.gmra.mxu0 %v1180
        %v1191 = vpop.f32.mrf.mxu0
        %v1192 = vadd.f32 %v1166, %v1191
        %v1193 = vpop.f32.mrf.mxu0
        %v1194 = vadd.f32 %v1166, %v1193
        %1195 = vdwg.mxu0
        %s1196 = scalar_lea.vmem %s5, %s33
        %v1197 = vld [vmem:[%s1196] sm:$0x1]
        %s1198 = scalar_lea.vmem %s6, %s33
        %v1199 = vld [vmem:[%s1198] sm:$0x1]
        %v1200 = vadd.f32 %v1192, %v597
        %v1201 = vadd.f32 %v1194, %v598
        %v1202 = vsel %vm625, %v1200, 0.0
        %1203 = vadd.xlane.f32.xlu0 %v1202
        %v1204 = vpop.xlane.xlu0 %1203
        %v1205 = vsel %vm625, %v1201, 0.0
        %1206 = vadd.xlane.f32.xlu0 %v1205
        %v1207 = vpop.xlane.xlu0 %1206
        %v1208 = vrcp.pop 32.0
        %v1209 = vmul.f32 32.0, %v1208
        %v1210 = vsub.f32 1.0, %v1209
        %v1211 = vmul.f32 %v1208, %v1210
        %v1212 = vadd.f32 %v1208, %v1211
        %vm1213 = vweird.f32 %v1208
        %v1214 = vsel %vm1213, %v1208, %v1212
        %v1215 = vmul.f32 %v1204, %v1214
        %v1216 = vmul.f32 %v1207, %v1214
        %v1217 = vsub.f32 %v1200, %v1215
        %v1218 = vsub.f32 %v1201, %v1216
        %v1219 = vmul.f32 %v1217, %v1217
        %v1220 = vmul.f32 %v1218, %v1218
        %v1221 = vsel %vm625, %v1219, 0.0
        %1222 = vadd.xlane.f32.xlu0 %v1221
        %v1223 = vpop.xlane.xlu0 %1222
        %v1224 = vsel %vm625, %v1220, 0.0
        %1225 = vadd.xlane.f32.xlu0 %v1224
        %v1226 = vpop.xlane.xlu0 %1225
        %v1227 = vmul.f32 %v1223, %v1214
        %v1228 = vmul.f32 %v1226, %v1214
        %v1229 = vadd.f32 %v1227, 1e-05
        %v1230 = vadd.f32 %v1228, 1e-05
        %v1231 = vrsqrt.pop %v1229
        %v1232 = vmul.f32 %v1231, %v1229
        %v1233 = vmul.f32 %v1232, %v1231
        %v1234 = vmul.f32 0.5, %v1233
        %v1235 = vsub.f32 1.5, %v1234
        %v1236 = vmul.f32 %v1231, %v1235
        %vm1237 = vweird.f32 %v1229
        %vm1238 = vweird.f32 %v1231
        %vm1239 = vmor %vm1237, %vm1238
        %v1240 = vsel %vm1239, %v1231, %v1236
        %v1241 = vrsqrt.pop %v1230
        %v1242 = vmul.f32 %v1241, %v1230
        %v1243 = vmul.f32 %v1242, %v1241
        %v1244 = vmul.f32 0.5, %v1243
        %v1245 = vsub.f32 1.5, %v1244
        %v1246 = vmul.f32 %v1241, %v1245
        %vm1247 = vweird.f32 %v1230
        %vm1248 = vweird.f32 %v1241
        %vm1249 = vmor %vm1247, %vm1248
        %v1250 = vsel %vm1249, %v1241, %v1246
        %v1251 = vmul.f32 %v1217, %v1240
        %v1252 = vmul.f32 %v1218, %v1250
        %v1253 = vperm.slane %v1197, 0
        %v1254 = vmul.f32 %v1251, %v1253
        %v1255 = vmul.f32 %v1252, %v1253
        %v1256 = vperm.slane %v1199, 0
        %v1257 = vadd.f32 %v1254, %v1256
        %v1258 = vadd.f32 %v1255, %v1256
        %v1259 = vld [vmem:[%s486] sm:$0xf]
        %v1260 = vld [vmem:[%s486 + $0x4] sm:$0xf]
        %v1261 = vld [vmem:[%s486 + $0x8] sm:$0xf]
        %v1262 = vld [vmem:[%s486 + $0xc] sm:$0xf]
        %s1263 = scalar_lea.vmem %s8, %s33
        %v1264 = vld [vmem:[%s1263] sm:$0x1]
        %v1265 = vld [vmem:[%s580] sm:$0xf]
        %v1266 = vld [vmem:[%s580 + $0x4] sm:$0xf]
        %v1267 = vld [vmem:[%s580 + $0x8] sm:$0xf]
        %v1268 = vld [vmem:[%s580 + $0xc] sm:$0xf]
        %v1269 = vld [vmem:[%s580 + $0x10] sm:$0xf]
        %v1270 = vld [vmem:[%s580 + $0x14] sm:$0xf]
        %v1271 = vld [vmem:[%s580 + $0x18] sm:$0xf]
        %v1272 = vld [vmem:[%s580 + $0x1c] sm:$0xf]
        %s1273 = scalar_lea.vmem %s10, %s33
        %v1274 = vld [vmem:[%s1273] sm:$0x1]
        %v1275 = vpack.c.bf16 %v1258, %v1257
        %v1276 = vperm.slane %v1264, 0
        %v1281 = vunpack.c.l.b16 %v1259
        %v1282 = vunpack.c.l.b16 %v1260
        %v1283 = vunpack.c.l.b16 %v1261
        %v1284 = vunpack.c.l.b16 %v1262
        %v1285 = vpack.c.b16 %v1282, %v1281
        %v1286 = vpack.c.b16 %v1284, %v1283
        %v1290 = vsel %vm625, %v1275, 0
        %1292 = vmatpush.bf16.msra.mxu0 0
        %1293 = vmatpush.bf16.msra.mxu0 0
        %1294 = vmatpush.bf16.msra.mxu0 0
        %1295 = vmatpush.bf16.msra.mxu0 0
        %1296 = vmatpush.bf16.msra.mxu0 0
        %1297 = vmatpush.bf16.msra.mxu0 0
        %1298 = vmatpush.bf16.msra.mxu0 %v1286
        %1299 = vmatpush.bf16.msra.mxu0 %v1285
        %1300 = vmatmul.bf16.gmra.mxu0 %v1290
        %v1301 = vpop.f32.mrf.mxu0
        %v1302 = vadd.f32 %v1276, %v1301
        %v1303 = vpop.f32.mrf.mxu0
        %v1304 = vadd.f32 %v1276, %v1303
        %1305 = vdwg.mxu0
        %v1306 = vmax.f32 %v1302, 0.0
        %v1307 = vmax.f32 %v1304, 0.0
        %v1308 = vpack.c.bf16 %v1307, %v1306
        %v1309 = vperm.slane %v1274, 0
        %v1318 = vunpack.c.l.b16 %v1265
        %v1319 = vunpack.c.l.b16 %v1266
        %v1320 = vunpack.c.l.b16 %v1267
        %v1321 = vunpack.c.l.b16 %v1268
        %v1322 = vunpack.c.l.b16 %v1269
        %v1323 = vunpack.c.l.b16 %v1270
        %v1324 = vunpack.c.l.b16 %v1271
        %v1325 = vunpack.c.l.b16 %v1272
        %v1326 = vpack.c.b16 %v1319, %v1318
        %v1327 = vpack.c.b16 %v1321, %v1320
        %v1328 = vpack.c.b16 %v1323, %v1322
        %v1329 = vpack.c.b16 %v1325, %v1324
        %vm1334 = vcmask 523264
        %v1336 = vsel %vm1334, %v1308, 0
        %1338 = vmatpush.bf16.msra.mxu0 0
        %1339 = vmatpush.bf16.msra.mxu0 0
        %1340 = vmatpush.bf16.msra.mxu0 0
        %1341 = vmatpush.bf16.msra.mxu0 0
        %1342 = vmatpush.bf16.msra.mxu0 %v1329
        %1343 = vmatpush.bf16.msra.mxu0 %v1328
        %1344 = vmatpush.bf16.msra.mxu0 %v1327
        %1345 = vmatpush.bf16.msra.mxu0 %v1326
        %1346 = vmatmul.bf16.gmra.mxu0 %v1336
        %v1347 = vpop.f32.mrf.mxu0
        %v1348 = vadd.f32 %v1309, %v1347
        %v1349 = vpop.f32.mrf.mxu0
        %v1350 = vadd.f32 %v1309, %v1349
        %1351 = vdwg.mxu0
        %s1352 = scalar_lea.vmem [#allocation4], %s33
        %v1353 = vld [vmem:[%s1352] sm:$0x1]
        %s1354 = scalar_lea.vmem [#allocation6], %s33
        %v1355 = vld [vmem:[%s1354] sm:$0x1]
        %v1356 = vadd.f32 %v1348, %v1257
        %v1357 = vadd.f32 %v1350, %v1258
        %v1358 = vsel %vm625, %v1356, 0.0
        %1359 = vadd.xlane.f32.xlu0 %v1358
        %v1360 = vpop.xlane.xlu0 %1359
        %v1361 = vsel %vm625, %v1357, 0.0
        %1362 = vadd.xlane.f32.xlu0 %v1361
        %v1363 = vpop.xlane.xlu0 %1362
        %v1364 = vmul.f32 %v1360, %v1214
        %v1365 = vmul.f32 %v1363, %v1214
        %v1366 = vsub.f32 %v1356, %v1364
        %v1367 = vsub.f32 %v1357, %v1365
        %v1368 = vmul.f32 %v1366, %v1366
        %v1369 = vmul.f32 %v1367, %v1367
        %v1370 = vsel %vm625, %v1368, 0.0
        %1371 = vadd.xlane.f32.xlu0 %v1370
        %v1372 = vpop.xlane.xlu0 %1371
        %v1373 = vsel %vm625, %v1369, 0.0
        %1374 = vadd.xlane.f32.xlu0 %v1373
        %v1375 = vpop.xlane.xlu0 %1374
        %v1376 = vmul.f32 %v1372, %v1214
        %v1377 = vmul.f32 %v1375, %v1214
        %v1378 = vadd.f32 %v1376, 1e-05
        %v1379 = vadd.f32 %v1377, 1e-05
        %v1380 = vrsqrt.pop %v1378
        %v1381 = vmul.f32 %v1380, %v1378
        %v1382 = vmul.f32 %v1381, %v1380
        %v1383 = vmul.f32 0.5, %v1382
        %v1384 = vsub.f32 1.5, %v1383
        %v1385 = vmul.f32 %v1380, %v1384
        %vm1386 = vweird.f32 %v1378
        %vm1387 = vweird.f32 %v1380
        %vm1388 = vmor %vm1386, %vm1387
        %v1389 = vsel %vm1388, %v1380, %v1385
        %v1390 = vrsqrt.pop %v1379
        %v1391 = vmul.f32 %v1390, %v1379
        %v1392 = vmul.f32 %v1391, %v1390
        %v1393 = vmul.f32 0.5, %v1392
        %v1394 = vsub.f32 1.5, %v1393
        %v1395 = vmul.f32 %v1390, %v1394
        %vm1396 = vweird.f32 %v1379
        %vm1397 = vweird.f32 %v1390
        %vm1398 = vmor %vm1396, %vm1397
        %v1399 = vsel %vm1398, %v1390, %v1395
        %v1400 = vmul.f32 %v1366, %v1389
        %v1401 = vmul.f32 %v1367, %v1399
        %v1402 = vperm.slane %v1353, 0
        %v1403 = vmul.f32 %v1400, %v1402
        %v1404 = vmul.f32 %v1401, %v1402
        %v1405 = vperm.slane %v1355, 0
        %v1406 = vadd.f32 %v1403, %v1405
        %v1407 = vadd.f32 %v1404, %v1405
        %1408 = vst.msk [vmem:[%s585] sm:$0xff] %vm625, %v1406
        %1409 = vst.msk [vmem:[%s585 + $0x8] sm:$0xff] %vm625, %v1407
        %s1410 = smul.u32 2, %s32
        %p1411 = scmp.lt.s32.totalorder %s1410, 1
        %s1412 = scalar_select %p1411, %s1410, 1
        %s1413 = smul.addr %s1412, 8
        %s1414 = scalar_lea.vmem %s13, %s1413
        // Predicated region
        $region89: #{transformer_forward.2} parent=71 // pred_check
          %p1415 = pneg %p356
        $region90: #{transformer_forward.2} parent=71 // pred_check_branch
          %1417 = sbr.rel (%p1415) target = $region92
        $region91: #{transformer_forward.2} parent=71 // pred_region
          %s1418 = smul.u32 2, %s32
        $region92: #{transformer_forward.2} parent=71 // pred_fallthru
          _
        // Predicated region
        $region93: #{transformer_forward.2} parent=71 // pred_check
          %p1419 = pneg %p356
        $region94: #{transformer_forward.2} parent=71 // pred_check_branch
          %1421 = sbr.rel (%p1419) target = $region96
        $region95: #{transformer_forward.2} parent=71 // pred_region
          %s1422 = smul.u32 2, %s32
          %p1423 = scmp.lt.s32.totalorder %s1422, 1
          %s1424 = scalar_select %p1423, %s1422, 1
          %s1425 = smul.addr %s1424, 8
          %s1426 = scalar_lea.vmem %s13, %s1425
        $region96: #{transformer_forward.2} parent=71 // pred_fallthru
          _
      $region72: #{transformer_forward.2} parent=5 // pred_fallthru
        _
      %p1427 = scmp.le.s32.totalorder 2, %s23
      // Predicated region
      $region97: #{transformer_forward.2} parent=5 // pred_check
        %p1428 = pneg %p1427
      $region98: #{transformer_forward.2} parent=5 // pred_check_branch
        %1430 = sbr.rel (%p1428) target = $region100
      $region99: #{transformer_forward.2} parent=5 // pred_region
        %s1431 = ssub.s32 %s23, 2
      $region100: #{transformer_forward.2} parent=5 // pred_fallthru
        _
    $region6: #{transformer_forward.2} parent=1 // loop_footer
      %s27 = sadd.s32 1, %s23
    $region7: #{transformer_forward.2} parent=1 // loop_footer_branch
      %22 = sbr.rel target = $region3
    $region8: #{transformer_forward.2} parent=1 // loop_exit
      _
    %1432 = vsyncpa [#allocation3], 1
    %s1433 = scalar_lea.sflag [#allocation3], 1
    %1434 = vsyncpa %s1433, 1
    %1435 = vsyncpa [#allocation5], 1

</llo_original>
